<compile_context>
chip_gen: v7x
topology: tpu7x:2x2x1
jax: 0.10.0
libtpu: 0.0.40
codegen_flags: <defaults>
</compile_context>

<pallas_src>
import functools

import jax
import jax.numpy as jnp
from jax.experimental import pallas as pl
from jax.experimental.pallas import tpu as pltpu

_LN_EPS = 1e-5          # PyTorch LayerNorm default
_OUT_LANES = 128        # lane-dense output width (first S lanes hold real values)


def _layernorm(h, gamma, beta):
    mu = jnp.mean(h, axis=-1, keepdims=True)
    var = jnp.mean((h - mu) ** 2, axis=-1, keepdims=True)
    return (h - mu) * jax.lax.rsqrt(var + _LN_EPS) * gamma + beta


def _value_network_kernel(x_ref, wq_ref, wk_ref, wv_ref, wo_ref, w1_ref, w2_ref,
                          gt_ref, wsa_ref, mask_ref, smat_ref, w2dt_ref, bsa_ref,
                          rows_ref, out_ref, *, d_model, ffn_dim):
    D, F = d_model, ffn_dim
    bf16, f32 = jnp.bfloat16, jnp.float32

    x_bf = x_ref[...]                       # [M, D] bf16 flat rows (M = b_tile * S)
    x = x_bf.astype(f32)

    rows = rows_ref[...]                    # [16, 128] f32; one parameter per row, lane 0
    b_q  = rows[0:1, :D]
    b_k  = rows[1:2, :D]
    b_v  = rows[2:3, :D]
    b_o  = rows[3:4, :D]
    ln1g = rows[4:5, :D]
    ln1b = rows[5:6, :D]
    b_1  = rows[6:7, :F]
    b_2  = rows[7:8, :D]
    ln2g = rows[8:9, :D]
    ln2b = rows[9:10, :D]
    b_r  = rows[10:11, 0:1]

    # ---- transformer encoder layer (single head, post-norm, ReLU FFN) ----
    # Separate Q/K/V projections: every [M, D] result starts at lane 0 (no relayout).
    # 1/sqrt(D) is folded into wq / bq host-side.
    q = (jnp.dot(x_bf, wq_ref[...], preferred_element_type=f32) + b_q).astype(bf16)
    k = (jnp.dot(x_bf, wk_ref[...], preferred_element_type=f32) + b_k).astype(bf16)
    v = (jnp.dot(x_bf, wv_ref[...], preferred_element_type=f32) + b_v).astype(bf16)

    # Block-diagonal attention on the flat [M, D] layout: sequences never mix.
    # mask_ref is a precomputed additive block-diagonal mask (0 / -1e30), f32.
    scores = jax.lax.dot_general(q, k, (((1,), (1,)), ((), ())),
                                 preferred_element_type=f32)            # [M, M]
    scores = scores + mask_ref[...]
    mmax = jnp.max(scores, axis=-1, keepdims=True)
    # exp on bf16 (EUP bf16 on v6e/v7x); masked lanes (~ -1e30) still underflow to 0.
    e = jnp.exp((scores - mmax).astype(bf16))                           # [M, M] bf16
    denom = jnp.sum(e.astype(f32), axis=-1, keepdims=True)              # f32 row sums
    ao = jnp.dot(e, v, preferred_element_type=f32)                      # [M, D]
    ao = ao * pl.reciprocal(denom, approx=True)      # softmax normalization after @V
    ao = jnp.dot(ao.astype(bf16), wo_ref[...], preferred_element_type=f32) + b_o
    h1 = _layernorm(x + ao, ln1g, ln1b)                                 # fp32

    ff = jnp.dot(h1.astype(bf16), w1_ref[...], preferred_element_type=f32) + b_1
    ff = jnp.maximum(ff, 0.0)
    ff = jnp.dot(ff.astype(bf16), w2_ref[...], preferred_element_type=f32) + b_2
    hidden = _layernorm(h1 + ff, ln2g, ln2b)                            # [M, D] f32

    # ---- z = sigmoid(selfatten(hidden^T)), computed transposed & block-diagonal ----
    zt = jax.nn.sigmoid(
        jnp.dot(wsa_ref[...], hidden.astype(bf16), preferred_element_type=f32)
        + bsa_ref[...])                                                 # [M, D] f32
    gated = hidden * zt                    # == (hidden^T * z)^T, flat [M, D]

    # ---- torch.reshape((D,S)->(S,D)) + regression Linear(D,1), folded ----
    m_ = gated * w2dt_ref[...]                                          # [M, D] f32
    # per-sequence row-group sum via precomputed 0/1 selection matmul (no reshape)
    colsum = jnp.dot(smat_ref[...], m_.astype(bf16),
                     preferred_element_type=f32)                        # [b_tile, D]
    out_ref[...] = jnp.dot(colsum.astype(bf16), gt_ref[...],
                           preferred_element_type=f32) + b_r            # [b_tile, 128]


def value_network_forward(x, params, *, b_tile=32):
    """x: [B, S, D] float32 — B independent observations of shape [S, D]
    (S = the 'batch' dim in the torch docstring, D = state_dim = d_model).
    Returns [B, S, 1].

    b_tile=32 -> m_tile=256 rows/step (fills the 256-row MXU on v6e/v7x, even grid
    for v7x's 2 TCs at B=64).  On single-TC v5e/v6e, b_tile=64 (grid=1) is also fine.
    """
    B, S, D = x.shape
    F = params['w1'].shape[1]
    assert D % S == 0, "kernel folds torch.reshape into weights; needs D % S == 0"
    assert B % b_tile == 0, "pad the batch to a multiple of b_tile"
    assert b_tile % 8 == 0 and S <= _OUT_LANES
    g = D // S
    m_tile = b_tile * S
    inv_sqrt_d = 1.0 / (float(D) ** 0.5)
    bf16 = jnp.bfloat16

    # -- regression-fold matrices (exact torch.reshape((D,S)->(S,D)) semantics) --
    a_idx = jnp.arange(D)
    r_idx = jnp.arange(S)
    wr_vec = params['wr'][:, 0]
    w2dt = wr_vec[(a_idx[None, :] % g) * S + r_idx[:, None]]            # [S, D] f32
    gt = (a_idx[:, None] // g == r_idx[None, :]).astype(jnp.float32)    # [D, S]
    gt_pad = jnp.pad(gt, ((0, 0), (0, _OUT_LANES - S))).astype(bf16)    # [D, 128]

    # -- weights: separate, lane-0-aligned operands; all resident in VMEM --
    wq_s = (params['wq'] * inv_sqrt_d).astype(bf16)
    wk_b = params['wk'].astype(bf16)
    wv_b = params['wv'].astype(bf16)
    wo_b = params['wo'].astype(bf16)
    w1_b = params['w1'].astype(bf16)
    w2_b = params['w2'].astype(bf16)

    # block-diagonal selfatten + fold matrices (per flat tile of m_tile rows)
    wsa_blk = jnp.kron(jnp.eye(b_tile, dtype=jnp.float32),
                       params['wsa'].T).astype(bf16)                    # [m_tile, m_tile]
    bsa_col = jnp.tile(params['bsa'], b_tile)[:, None]                  # [m_tile, 1] f32
    w2dt_flat = jnp.tile(w2dt, (b_tile, 1))                             # [m_tile, D] f32

    # precomputed block-diagonal additive mask + per-sequence 0/1 selection matrix
    seq_id = jnp.arange(m_tile) // S
    mask = jnp.where(seq_id[:, None] == seq_id[None, :],
                     0.0, -1e30).astype(jnp.float32)                    # [m_tile, m_tile]
    s_mat = (jnp.arange(b_tile)[:, None] == seq_id[None, :]).astype(bf16)  # [b_tile, m_tile]

    # biases / LN params: one per row, starting at lane 0 (sublane-broadcast in kernel)
    rows = jnp.zeros((16, _OUT_LANES), jnp.float32)
    rows = rows.at[0, :D].set(params['bq'] * inv_sqrt_d)
    rows = rows.at[1, :D].set(params['bk'])
    rows = rows.at[2, :D].set(params['bv'])
    rows = rows.at[3, :D].set(params['bo'])
    rows = rows.at[4, :D].set(params['ln1_g'])
    rows = rows.at[5, :D].set(params['ln1_b'])
    rows = rows.at[6, :F].set(params['b1'])
    rows = rows.at[7, :D].set(params['b2'])
    rows = rows.at[8, :D].set(params['ln2_g'])
    rows = rows.at[9, :D].set(params['ln2_b'])
    rows = rows.at[10, 0].set(params['br'][0])

    x_flat = x.reshape(B * S, D).astype(bf16)                           # [B*S, D]

    resident = lambda shape: pl.BlockSpec(shape, lambda i: (0, 0))
    kernel = functools.partial(_value_network_kernel, d_model=D, ffn_dim=F)
    out = pl.pallas_call(
        kernel,
        out_shape=jax.ShapeDtypeStruct((B, _OUT_LANES), jnp.float32),
        grid=(B // b_tile,),
        in_specs=[
            pl.BlockSpec((m_tile, D), lambda i: (i, 0)),   # x: tiled over the batch axis
            resident(wq_s.shape),
            resident(wk_b.shape),
            resident(wv_b.shape),
            resident(wo_b.shape),
            resident(w1_b.shape),
            resident(w2_b.shape),
            resident(gt_pad.shape),
            resident(wsa_blk.shape),
            resident(mask.shape),
            resident(s_mat.shape),
            resident(w2dt_flat.shape),
            resident(bsa_col.shape),
            resident(rows.shape),
        ],
        out_specs=pl.BlockSpec((b_tile, _OUT_LANES), lambda i: (i, 0)),
        compiler_params=pltpu.CompilerParams(
            dimension_semantics=("parallel",),             # v7x: shard tiles across 2 TCs
            vmem_limit_bytes=32 * 1024 * 1024),
    )(x_flat, wq_s, wk_b, wv_b, wo_b, w1_b, w2_b, gt_pad,
      wsa_blk, mask, s_mat, w2dt_flat, bsa_col, rows)
    return out[:, :S].reshape(B, S, 1)


def value_network_reference(x, p):
    """Pure-JAX fp32 mirror of the torch forward for ONE [S, D] observation."""
    S, D = x.shape
    q = x @ p['wq'] + p['bq']
    k = x @ p['wk'] + p['bk']
    v = x @ p['wv'] + p['bv']
    attn = jax.nn.softmax((q @ k.T) / jnp.sqrt(jnp.float32(D)), axis=-1)
    ao = attn @ v @ p['wo'] + p['bo']
    h1 = _layernorm(x + ao, p['ln1_g'], p['ln1_b'])
    ff = jnp.maximum(h1 @ p['w1'] + p['b1'], 0.0) @ p['w2'] + p['b2']
    hidden = _layernorm(h1 + ff, p['ln2_g'], p['ln2_b'])
    hT = hidden.T                                          # transpose(1, 0)
    z = jax.nn.sigmoid(hT @ p['wsa'] + p['bsa'])           # selfatten + sigmoid
    gated = hT * z
    hs = gated.reshape(S, D)                               # torch.reshape semantics
    return hs @ p['wr'] + p['br']                          # regression -> [S, 1]


if __name__ == "__main__":
    B, S, D, F = 64, 8, 32, 64   # batch of observations, seq ("batch"), d_model, FFN dim
    key = jax.random.PRNGKey(0)
    ks = jax.random.split(key, 24)

    def nrm(k, shape, scale=0.1):
        return (scale * jax.random.normal(k, shape)).astype(jnp.float32)

    params = dict(
        wq=nrm(ks[0], (D, D)),  bq=nrm(ks[1], (D,)),
        wk=nrm(ks[2], (D, D)),  bk=nrm(ks[3], (D,)),
        wv=nrm(ks[4], (D, D)),  bv=nrm(ks[5], (D,)),
        wo=nrm(ks[6], (D, D)),  bo=nrm(ks[7], (D,)),
        ln1_g=(1.0 + nrm(ks[8], (D,))), ln1_b=nrm(ks[9], (D,)),
        w1=nrm(ks[10], (D, F)), b1=nrm(ks[11], (F,)),
        w2=nrm(ks[12], (F, D)), b2=nrm(ks[13], (D,)),
        ln2_g=(1.0 + nrm(ks[14], (D,))), ln2_b=nrm(ks[15], (D,)),
        wsa=nrm(ks[16], (S, S)), bsa=nrm(ks[17], (S,)),
        wr=nrm(ks[18], (D, 1)),  br=nrm(ks[19], (1,)),
    )
    x = jax.random.normal(ks[20], (B, S, D), dtype=jnp.float32)

    out = jax.jit(value_network_forward)(x, params)
    out = jax.block_until_ready(out)

    ref = jax.vmap(lambda xb: value_network_reference(xb, params))(x)
    assert out.shape == (B, S, 1), out.shape
    if not jnp.allclose(out, ref, rtol=2e-2, atol=2e-2):   # bf16 matmuls vs fp32 reference
        err = jnp.max(jnp.abs(out - ref))
        raise SystemExit(f"MISMATCH max_abs_err={err}\nkernel={out[:2].ravel()}\nref={ref[:2].ravel()}")
    print("KERNEL_OK")
</pallas_src>

<mosaic_0001>
module attributes {stable_mosaic.version = 11 : i64} {
  func.func @_value_network_kernel(%arg0: i32, %arg1: memref<256x32xbf16, #tpu.memory_space<vmem>>, %arg2: memref<32x32xbf16, #tpu.memory_space<vmem>>, %arg3: memref<32x32xbf16, #tpu.memory_space<vmem>>, %arg4: memref<32x32xbf16, #tpu.memory_space<vmem>>, %arg5: memref<32x32xbf16, #tpu.memory_space<vmem>>, %arg6: memref<32x64xbf16, #tpu.memory_space<vmem>>, %arg7: memref<64x32xbf16, #tpu.memory_space<vmem>>, %arg8: memref<32x128xbf16, #tpu.memory_space<vmem>>, %arg9: memref<256x256xbf16, #tpu.memory_space<vmem>>, %arg10: memref<256x256xf32, #tpu.memory_space<vmem>>, %arg11: memref<32x256xbf16, #tpu.memory_space<vmem>>, %arg12: memref<256x32xf32, #tpu.memory_space<vmem>>, %arg13: memref<256x1xf32, #tpu.memory_space<vmem>>, %arg14: memref<16x128xf32, #tpu.memory_space<vmem>>, %arg15: memref<32x128xf32, #tpu.memory_space<vmem>>) attributes {dimension_semantics = [#tpu.dimension_semantics<parallel>], iteration_bounds = array<i64: 2>, scalar_prefetch = 0 : i64, scratch_operands = 0 : i64, tpu.core_type = #tpu.core_type<tc>, window_params = [{transform_indices = @transform_0, window_bounds = array<i64: 256, 32>}, {pipeline_mode = #tpu.pipeline_mode<synchronous>, transform_indices = @transform_1, window_bounds = array<i64: 32, 32>}, {pipeline_mode = #tpu.pipeline_mode<synchronous>, transform_indices = @transform_2, window_bounds = array<i64: 32, 32>}, {pipeline_mode = #tpu.pipeline_mode<synchronous>, transform_indices = @transform_3, window_bounds = array<i64: 32, 32>}, {pipeline_mode = #tpu.pipeline_mode<synchronous>, transform_indices = @transform_4, window_bounds = array<i64: 32, 32>}, {pipeline_mode = #tpu.pipeline_mode<synchronous>, transform_indices = @transform_5, window_bounds = array<i64: 32, 64>}, {pipeline_mode = #tpu.pipeline_mode<synchronous>, transform_indices = @transform_6, window_bounds = array<i64: 64, 32>}, {pipeline_mode = #tpu.pipeline_mode<synchronous>, transform_indices = @transform_7, window_bounds = array<i64: 32, 128>}, {pipeline_mode = #tpu.pipeline_mode<synchronous>, transform_indices = @transform_8, window_bounds = array<i64: 256, 256>}, {pipeline_mode = #tpu.pipeline_mode<synchronous>, transform_indices = @transform_9, window_bounds = array<i64: 256, 256>}, {pipeline_mode = #tpu.pipeline_mode<synchronous>, transform_indices = @transform_10, window_bounds = array<i64: 32, 256>}, {pipeline_mode = #tpu.pipeline_mode<synchronous>, transform_indices = @transform_11, window_bounds = array<i64: 256, 32>}, {pipeline_mode = #tpu.pipeline_mode<synchronous>, transform_indices = @transform_12, window_bounds = array<i64: 256, 1>}, {pipeline_mode = #tpu.pipeline_mode<synchronous>, transform_indices = @transform_13, window_bounds = array<i64: 16, 128>}, {transform_indices = @transform_14, window_bounds = array<i64: 32, 128>}]} {
    %c0 = arith.constant 0 : index
    %c0_0 = arith.constant 0 : index
    %0 = vector.load %arg1[%c0, %c0_0] : memref<256x32xbf16, #tpu.memory_space<vmem>>, vector<256x32xbf16>
    %1 = arith.extf %0 : vector<256x32xbf16> to vector<256x32xf32>
    %c0_1 = arith.constant 0 : index
    %c0_2 = arith.constant 0 : index
    %2 = vector.load %arg14[%c0_1, %c0_2] : memref<16x128xf32, #tpu.memory_space<vmem>>, vector<16x128xf32>
    %3 = vector.extract_strided_slice %2 {offsets = [0, 0], sizes = [1, 32], strides = [1, 1]} : vector<16x128xf32> to vector<1x32xf32>
    %4 = vector.extract_strided_slice %2 {offsets = [1, 0], sizes = [1, 32], strides = [1, 1]} : vector<16x128xf32> to vector<1x32xf32>
    %5 = vector.extract_strided_slice %2 {offsets = [2, 0], sizes = [1, 32], strides = [1, 1]} : vector<16x128xf32> to vector<1x32xf32>
    %6 = vector.extract_strided_slice %2 {offsets = [3, 0], sizes = [1, 32], strides = [1, 1]} : vector<16x128xf32> to vector<1x32xf32>
    %7 = vector.extract_strided_slice %2 {offsets = [4, 0], sizes = [1, 32], strides = [1, 1]} : vector<16x128xf32> to vector<1x32xf32>
    %8 = vector.extract_strided_slice %2 {offsets = [5, 0], sizes = [1, 32], strides = [1, 1]} : vector<16x128xf32> to vector<1x32xf32>
    %9 = vector.extract_strided_slice %2 {offsets = [6, 0], sizes = [1, 64], strides = [1, 1]} : vector<16x128xf32> to vector<1x64xf32>
    %10 = vector.extract_strided_slice %2 {offsets = [7, 0], sizes = [1, 32], strides = [1, 1]} : vector<16x128xf32> to vector<1x32xf32>
    %11 = vector.extract_strided_slice %2 {offsets = [8, 0], sizes = [1, 32], strides = [1, 1]} : vector<16x128xf32> to vector<1x32xf32>
    %12 = vector.extract_strided_slice %2 {offsets = [9, 0], sizes = [1, 32], strides = [1, 1]} : vector<16x128xf32> to vector<1x32xf32>
    %13 = vector.extract_strided_slice %2 {offsets = [10, 0], sizes = [1, 1], strides = [1, 1]} : vector<16x128xf32> to vector<1x1xf32>
    %c0_3 = arith.constant 0 : index
    %c0_4 = arith.constant 0 : index
    %14 = vector.load %arg2[%c0_3, %c0_4] : memref<32x32xbf16, #tpu.memory_space<vmem>>, vector<32x32xbf16>
    %cst = arith.constant dense<0.000000e+00> : vector<256x32xf32>
    %15 = tpu.matmul %0, %14, %cst {dimension_numbers = #tpu.dot_dimension_numbers<[1], [0], [0], [1], [0, 0, 1, 1], [], []>} : vector<256x32xbf16>, vector<32x32xbf16>, vector<256x32xf32> -> vector<256x32xf32>
    %16 = vector.broadcast %3 : vector<1x32xf32> to vector<256x32xf32>
    %17 = arith.addf %15, %16 : vector<256x32xf32>
    %18 = arith.truncf %17 : vector<256x32xf32> to vector<256x32xbf16>
    %c0_5 = arith.constant 0 : index
    %c0_6 = arith.constant 0 : index
    %19 = vector.load %arg3[%c0_5, %c0_6] : memref<32x32xbf16, #tpu.memory_space<vmem>>, vector<32x32xbf16>
    %cst_7 = arith.constant dense<0.000000e+00> : vector<256x32xf32>
    %20 = tpu.matmul %0, %19, %cst_7 {dimension_numbers = #tpu.dot_dimension_numbers<[1], [0], [0], [1], [0, 0, 1, 1], [], []>} : vector<256x32xbf16>, vector<32x32xbf16>, vector<256x32xf32> -> vector<256x32xf32>
    %21 = vector.broadcast %4 : vector<1x32xf32> to vector<256x32xf32>
    %22 = arith.addf %20, %21 : vector<256x32xf32>
    %23 = arith.truncf %22 : vector<256x32xf32> to vector<256x32xbf16>
    %c0_8 = arith.constant 0 : index
    %c0_9 = arith.constant 0 : index
    %24 = vector.load %arg4[%c0_8, %c0_9] : memref<32x32xbf16, #tpu.memory_space<vmem>>, vector<32x32xbf16>
    %cst_10 = arith.constant dense<0.000000e+00> : vector<256x32xf32>
    %25 = tpu.matmul %0, %24, %cst_10 {dimension_numbers = #tpu.dot_dimension_numbers<[1], [0], [0], [1], [0, 0, 1, 1], [], []>} : vector<256x32xbf16>, vector<32x32xbf16>, vector<256x32xf32> -> vector<256x32xf32>
    %26 = vector.broadcast %5 : vector<1x32xf32> to vector<256x32xf32>
    %27 = arith.addf %25, %26 : vector<256x32xf32>
    %28 = arith.truncf %27 : vector<256x32xf32> to vector<256x32xbf16>
    %cst_11 = arith.constant dense<0.000000e+00> : vector<256x256xf32>
    %29 = tpu.matmul %18, %23, %cst_11 {dimension_numbers = #tpu.dot_dimension_numbers<[1], [1], [0], [0], [0, 0, 1, 0], [], []>} : vector<256x32xbf16>, vector<256x32xbf16>, vector<256x256xf32> -> vector<256x256xf32>
    %c0_12 = arith.constant 0 : index
    %c0_13 = arith.constant 0 : index
    %30 = vector.load %arg10[%c0_12, %c0_13] : memref<256x256xf32, #tpu.memory_space<vmem>>, vector<256x256xf32>
    %31 = arith.addf %29, %30 : vector<256x256xf32>
    %cst_14 = arith.constant dense<0xFF800000> : vector<256xf32>
    %32 = vector.multi_reduction <maximumf>, %31, %cst_14 [1] : vector<256x256xf32> to vector<256xf32>
    %33 = vector.shape_cast %32 : vector<256xf32> to vector<256x1xf32>
    %34 = vector.broadcast %33 : vector<256x1xf32> to vector<256x256xf32>
    %35 = arith.subf %31, %34 : vector<256x256xf32>
    %36 = arith.truncf %35 : vector<256x256xf32> to vector<256x256xbf16>
    %37 = math.exp %36 : vector<256x256xbf16>
    %38 = arith.extf %37 : vector<256x256xbf16> to vector<256x256xf32>
    %cst_15 = arith.constant dense<0.000000e+00> : vector<256xf32>
    %39 = vector.multi_reduction <add>, %38, %cst_15 [1] : vector<256x256xf32> to vector<256xf32>
    %40 = vector.shape_cast %39 : vector<256xf32> to vector<256x1xf32>
    %cst_16 = arith.constant dense<0.000000e+00> : vector<256x32xf32>
    %41 = tpu.matmul %37, %28, %cst_16 {dimension_numbers = #tpu.dot_dimension_numbers<[1], [0], [0], [1], [0, 0, 1, 1], [], []>} : vector<256x256xbf16>, vector<256x32xbf16>, vector<256x32xf32> -> vector<256x32xf32>
    %42 = tpu.reciprocal %40 {approx = true} : vector<256x1xf32> -> vector<256x1xf32>
    %43 = vector.broadcast %42 : vector<256x1xf32> to vector<256x32xf32>
    %44 = arith.mulf %41, %43 : vector<256x32xf32>
    %45 = arith.truncf %44 : vector<256x32xf32> to vector<256x32xbf16>
    %c0_17 = arith.constant 0 : index
    %c0_18 = arith.constant 0 : index
    %46 = vector.load %arg5[%c0_17, %c0_18] : memref<32x32xbf16, #tpu.memory_space<vmem>>, vector<32x32xbf16>
    %cst_19 = arith.constant dense<0.000000e+00> : vector<256x32xf32>
    %47 = tpu.matmul %45, %46, %cst_19 {dimension_numbers = #tpu.dot_dimension_numbers<[1], [0], [0], [1], [0, 0, 1, 1], [], []>} : vector<256x32xbf16>, vector<32x32xbf16>, vector<256x32xf32> -> vector<256x32xf32>
    %48 = vector.broadcast %6 : vector<1x32xf32> to vector<256x32xf32>
    %49 = arith.addf %47, %48 : vector<256x32xf32>
    %50 = arith.addf %1, %49 : vector<256x32xf32>
    %cst_20 = arith.constant dense<0.000000e+00> : vector<256xf32>
    %51 = vector.multi_reduction <add>, %50, %cst_20 [1] : vector<256x32xf32> to vector<256xf32>
    %52 = vector.shape_cast %51 : vector<256xf32> to vector<256x1xf32>
    %cst_21 = arith.constant 3.200000e+01 : f32
    %53 = vector.broadcast %cst_21 : f32 to vector<256x1xf32>
    %54 = arith.divf %52, %53 : vector<256x1xf32>
    %55 = vector.broadcast %54 : vector<256x1xf32> to vector<256x32xf32>
    %56 = arith.subf %50, %55 : vector<256x32xf32>
    %57 = arith.mulf %56, %56 : vector<256x32xf32>
    %cst_22 = arith.constant dense<0.000000e+00> : vector<256xf32>
    %58 = vector.multi_reduction <add>, %57, %cst_22 [1] : vector<256x32xf32> to vector<256xf32>
    %59 = vector.shape_cast %58 : vector<256xf32> to vector<256x1xf32>
    %cst_23 = arith.constant 3.200000e+01 : f32
    %60 = vector.broadcast %cst_23 : f32 to vector<256x1xf32>
    %61 = arith.divf %59, %60 : vector<256x1xf32>
    %62 = vector.broadcast %54 : vector<256x1xf32> to vector<256x32xf32>
    %63 = arith.subf %50, %62 : vector<256x32xf32>
    %cst_24 = arith.constant 9.99999974E-6 : f32
    %64 = vector.broadcast %cst_24 : f32 to vector<256x1xf32>
    %65 = arith.addf %61, %64 : vector<256x1xf32>
    %66 = math.rsqrt %65 : vector<256x1xf32>
    %67 = vector.broadcast %66 : vector<256x1xf32> to vector<256x32xf32>
    %68 = arith.mulf %63, %67 : vector<256x32xf32>
    %69 = vector.broadcast %7 : vector<1x32xf32> to vector<256x32xf32>
    %70 = arith.mulf %68, %69 : vector<256x32xf32>
    %71 = vector.broadcast %8 : vector<1x32xf32> to vector<256x32xf32>
    %72 = arith.addf %70, %71 : vector<256x32xf32>
    %73 = arith.truncf %72 : vector<256x32xf32> to vector<256x32xbf16>
    %c0_25 = arith.constant 0 : index
    %c0_26 = arith.constant 0 : index
    %74 = vector.load %arg6[%c0_25, %c0_26] : memref<32x64xbf16, #tpu.memory_space<vmem>>, vector<32x64xbf16>
    %cst_27 = arith.constant dense<0.000000e+00> : vector<256x64xf32>
    %75 = tpu.matmul %73, %74, %cst_27 {dimension_numbers = #tpu.dot_dimension_numbers<[1], [0], [0], [1], [0, 0, 1, 1], [], []>} : vector<256x32xbf16>, vector<32x64xbf16>, vector<256x64xf32> -> vector<256x64xf32>
    %76 = vector.broadcast %9 : vector<1x64xf32> to vector<256x64xf32>
    %77 = arith.addf %75, %76 : vector<256x64xf32>
    %cst_28 = arith.constant 0.000000e+00 : f32
    %78 = vector.broadcast %cst_28 : f32 to vector<256x64xf32>
    %79 = arith.maximumf %77, %78 : vector<256x64xf32>
    %80 = arith.truncf %79 : vector<256x64xf32> to vector<256x64xbf16>
    %c0_29 = arith.constant 0 : index
    %c0_30 = arith.constant 0 : index
    %81 = vector.load %arg7[%c0_29, %c0_30] : memref<64x32xbf16, #tpu.memory_space<vmem>>, vector<64x32xbf16>
    %cst_31 = arith.constant dense<0.000000e+00> : vector<256x32xf32>
    %82 = tpu.matmul %80, %81, %cst_31 {dimension_numbers = #tpu.dot_dimension_numbers<[1], [0], [0], [1], [0, 0, 1, 1], [], []>} : vector<256x64xbf16>, vector<64x32xbf16>, vector<256x32xf32> -> vector<256x32xf32>
    %83 = vector.broadcast %10 : vector<1x32xf32> to vector<256x32xf32>
    %84 = arith.addf %82, %83 : vector<256x32xf32>
    %85 = arith.addf %72, %84 : vector<256x32xf32>
    %cst_32 = arith.constant dense<0.000000e+00> : vector<256xf32>
    %86 = vector.multi_reduction <add>, %85, %cst_32 [1] : vector<256x32xf32> to vector<256xf32>
    %87 = vector.shape_cast %86 : vector<256xf32> to vector<256x1xf32>
    %cst_33 = arith.constant 3.200000e+01 : f32
    %88 = vector.broadcast %cst_33 : f32 to vector<256x1xf32>
    %89 = arith.divf %87, %88 : vector<256x1xf32>
    %90 = vector.broadcast %89 : vector<256x1xf32> to vector<256x32xf32>
    %91 = arith.subf %85, %90 : vector<256x32xf32>
    %92 = arith.mulf %91, %91 : vector<256x32xf32>
    %cst_34 = arith.constant dense<0.000000e+00> : vector<256xf32>
    %93 = vector.multi_reduction <add>, %92, %cst_34 [1] : vector<256x32xf32> to vector<256xf32>
    %94 = vector.shape_cast %93 : vector<256xf32> to vector<256x1xf32>
    %cst_35 = arith.constant 3.200000e+01 : f32
    %95 = vector.broadcast %cst_35 : f32 to vector<256x1xf32>
    %96 = arith.divf %94, %95 : vector<256x1xf32>
    %97 = vector.broadcast %89 : vector<256x1xf32> to vector<256x32xf32>
    %98 = arith.subf %85, %97 : vector<256x32xf32>
    %cst_36 = arith.constant 9.99999974E-6 : f32
    %99 = vector.broadcast %cst_36 : f32 to vector<256x1xf32>
    %100 = arith.addf %96, %99 : vector<256x1xf32>
    %101 = math.rsqrt %100 : vector<256x1xf32>
    %102 = vector.broadcast %101 : vector<256x1xf32> to vector<256x32xf32>
    %103 = arith.mulf %98, %102 : vector<256x32xf32>
    %104 = vector.broadcast %11 : vector<1x32xf32> to vector<256x32xf32>
    %105 = arith.mulf %103, %104 : vector<256x32xf32>
    %106 = vector.broadcast %12 : vector<1x32xf32> to vector<256x32xf32>
    %107 = arith.addf %105, %106 : vector<256x32xf32>
    %c0_37 = arith.constant 0 : index
    %c0_38 = arith.constant 0 : index
    %108 = vector.load %arg9[%c0_37, %c0_38] : memref<256x256xbf16, #tpu.memory_space<vmem>>, vector<256x256xbf16>
    %109 = arith.truncf %107 : vector<256x32xf32> to vector<256x32xbf16>
    %cst_39 = arith.constant dense<0.000000e+00> : vector<256x32xf32>
    %110 = tpu.matmul %108, %109, %cst_39 {dimension_numbers = #tpu.dot_dimension_numbers<[1], [0], [0], [1], [0, 0, 1, 1], [], []>} : vector<256x256xbf16>, vector<256x32xbf16>, vector<256x32xf32> -> vector<256x32xf32>
    %c0_40 = arith.constant 0 : index
    %c0_41 = arith.constant 0 : index
    %111 = vector.load %arg13[%c0_40, %c0_41] : memref<256x1xf32, #tpu.memory_space<vmem>>, vector<256x1xf32>
    %112 = vector.broadcast %111 : vector<256x1xf32> to vector<256x32xf32>
    %113 = arith.addf %110, %112 : vector<256x32xf32>
    %114 = arith.negf %113 : vector<256x32xf32>
    %115 = math.exp %114 : vector<256x32xf32>
    %cst_42 = arith.constant 1.000000e+00 : f32
    %116 = vector.broadcast %cst_42 : f32 to vector<256x32xf32>
    %117 = arith.addf %116, %115 : vector<256x32xf32>
    %118 = arith.divf %116, %117 : vector<256x32xf32>
    %119 = arith.mulf %107, %118 : vector<256x32xf32>
    %c0_43 = arith.constant 0 : index
    %c0_44 = arith.constant 0 : index
    %120 = vector.load %arg12[%c0_43, %c0_44] : memref<256x32xf32, #tpu.memory_space<vmem>>, vector<256x32xf32>
    %121 = arith.mulf %119, %120 : vector<256x32xf32>
    %c0_45 = arith.constant 0 : index
    %c0_46 = arith.constant 0 : index
    %122 = vector.load %arg11[%c0_45, %c0_46] : memref<32x256xbf16, #tpu.memory_space<vmem>>, vector<32x256xbf16>
    %123 = arith.truncf %121 : vector<256x32xf32> to vector<256x32xbf16>
    %cst_47 = arith.constant dense<0.000000e+00> : vector<32x32xf32>
    %124 = tpu.matmul %122, %123, %cst_47 {dimension_numbers = #tpu.dot_dimension_numbers<[1], [0], [0], [1], [0, 0, 1, 1], [], []>} : vector<32x256xbf16>, vector<256x32xbf16>, vector<32x32xf32> -> vector<32x32xf32>
    %125 = arith.truncf %124 : vector<32x32xf32> to vector<32x32xbf16>
    %c0_48 = arith.constant 0 : index
    %c0_49 = arith.constant 0 : index
    %126 = vector.load %arg8[%c0_48, %c0_49] : memref<32x128xbf16, #tpu.memory_space<vmem>>, vector<32x128xbf16>
    %cst_50 = arith.constant dense<0.000000e+00> : vector<32x128xf32>
    %127 = tpu.matmul %125, %126, %cst_50 {dimension_numbers = #tpu.dot_dimension_numbers<[1], [0], [0], [1], [0, 0, 1, 1], [], []>} : vector<32x32xbf16>, vector<32x128xbf16>, vector<32x128xf32> -> vector<32x128xf32>
    %128 = vector.broadcast %13 : vector<1x1xf32> to vector<32x128xf32>
    %129 = arith.addf %127, %128 : vector<32x128xf32>
    %c0_51 = arith.constant 0 : index
    %c0_52 = arith.constant 0 : index
    %130 = vector.load %arg15[%c0_51, %c0_52] : memref<32x128xf32, #tpu.memory_space<vmem>>, vector<32x128xf32>
    tpu.vector_store %arg15[%c0_51, %c0_52], %129 {strides = array<i32>} : memref<32x128xf32, #tpu.memory_space<vmem>>, vector<32x128xf32>,
    return
  }
  func.func @transform_0(%arg0: i32) -> (i32, i32) {
    %c0_i32 = arith.constant 0 : i32
    %c0_i32_0 = arith.constant 0 : i32
    return %arg0, %c0_i32 : i32, i32
  }
  func.func @transform_1(%arg0: i32) -> (i32, i32) {
    %c0_i32 = arith.constant 0 : i32
    %c0_i32_0 = arith.constant 0 : i32
    %c0_i32_1 = arith.constant 0 : i32
    return %c0_i32, %c0_i32_0 : i32, i32
  }
  func.func @transform_2(%arg0: i32) -> (i32, i32) {
    %c0_i32 = arith.constant 0 : i32
    %c0_i32_0 = arith.constant 0 : i32
    %c0_i32_1 = arith.constant 0 : i32
    return %c0_i32, %c0_i32_0 : i32, i32
  }
  func.func @transform_3(%arg0: i32) -> (i32, i32) {
    %c0_i32 = arith.constant 0 : i32
    %c0_i32_0 = arith.constant 0 : i32
    %c0_i32_1 = arith.constant 0 : i32
    return %c0_i32, %c0_i32_0 : i32, i32
  }
  func.func @transform_4(%arg0: i32) -> (i32, i32) {
    %c0_i32 = arith.constant 0 : i32
    %c0_i32_0 = arith.constant 0 : i32
    %c0_i32_1 = arith.constant 0 : i32
    return %c0_i32, %c0_i32_0 : i32, i32
  }
  func.func @transform_5(%arg0: i32) -> (i32, i32) {
    %c0_i32 = arith.constant 0 : i32
    %c0_i32_0 = arith.constant 0 : i32
    %c0_i32_1 = arith.constant 0 : i32
    return %c0_i32, %c0_i32_0 : i32, i32
  }
  func.func @transform_6(%arg0: i32) -> (i32, i32) {
    %c0_i32 = arith.constant 0 : i32
    %c0_i32_0 = arith.constant 0 : i32
    %c0_i32_1 = arith.constant 0 : i32
    return %c0_i32, %c0_i32_0 : i32, i32
  }
  func.func @transform_7(%arg0: i32) -> (i32, i32) {
    %c0_i32 = arith.constant 0 : i32
    %c0_i32_0 = arith.constant 0 : i32
    %c0_i32_1 = arith.constant 0 : i32
    return %c0_i32, %c0_i32_0 : i32, i32
  }
  func.func @transform_8(%arg0: i32) -> (i32, i32) {
    %c0_i32 = arith.constant 0 : i32
    %c0_i32_0 = arith.constant 0 : i32
    %c0_i32_1 = arith.constant 0 : i32
    return %c0_i32, %c0_i32_0 : i32, i32
  }
  func.func @transform_9(%arg0: i32) -> (i32, i32) {
    %c0_i32 = arith.constant 0 : i32
    %c0_i32_0 = arith.constant 0 : i32
    %c0_i32_1 = arith.constant 0 : i32
    return %c0_i32, %c0_i32_0 : i32, i32
  }
  func.func @transform_10(%arg0: i32) -> (i32, i32) {
    %c0_i32 = arith.constant 0 : i32
    %c0_i32_0 = arith.constant 0 : i32
    %c0_i32_1 = arith.constant 0 : i32
    return %c0_i32, %c0_i32_0 : i32, i32
  }
  func.func @transform_11(%arg0: i32) -> (i32, i32) {
    %c0_i32 = arith.constant 0 : i32
    %c0_i32_0 = arith.constant 0 : i32
    %c0_i32_1 = arith.constant 0 : i32
    return %c0_i32, %c0_i32_0 : i32, i32
  }
  func.func @transform_12(%arg0: i32) -> (i32, i32) {
    %c0_i32 = arith.constant 0 : i32
    %c0_i32_0 = arith.constant 0 : i32
    %c0_i32_1 = arith.constant 0 : i32
    return %c0_i32, %c0_i32_0 : i32, i32
  }
  func.func @transform_13(%arg0: i32) -> (i32, i32) {
    %c0_i32 = arith.constant 0 : i32
    %c0_i32_0 = arith.constant 0 : i32
    %c0_i32_1 = arith.constant 0 : i32
    return %c0_i32, %c0_i32_0 : i32, i32
  }
  func.func @transform_14(%arg0: i32) -> (i32, i32) {
    %c0_i32 = arith.constant 0 : i32
    %c0_i32_0 = arith.constant 0 : i32
    return %arg0, %c0_i32 : i32, i32
  }
}

</mosaic_0001>

<llo_original>
// kernel: tile.13
$region0: #{tile.13}
  #allocation0 [shape = 's32[1]{0}', space=sflag, size = 0x4, scoped, tag = 'scoped memory for tile.13']
  %s0 = inlined_call_operand.vmem [shape: f32[8], index: 0, kind: input, shape index: {}]
  %s1 = inlined_call_operand.vmem [shape: f32[32,8], index: 1, kind: output, shape index: {}]
  // Predicated region
  $region2: #{tile.13} parent=0 // pred_check
    _
  $region3: #{tile.13} parent=0 // pred_check_branch
    %3 = sbr.rel (0) target = $region5
  $region4: #{tile.13} parent=0 // pred_region
    _
  $region5: #{tile.13} parent=0 // pred_fallthru
    _
  %v4 = vld [vmem:[%s0] ss:$0 sm:$0xff]
  %5 = vst [vmem:[%s1] sm:$0xff] %v4
  %s6 = scalar_lea.vmem %s1, 8
  %7 = vst [vmem:[%s6] sm:$0xff] %v4
  %s8 = scalar_lea.vmem %s1, 16
  %9 = vst [vmem:[%s8] sm:$0xff] %v4
  %s10 = scalar_lea.vmem %s1, 24
  %11 = vst [vmem:[%s10] sm:$0xff] %v4

// kernel: tile.0
$region0: #{tile.0}
  %s0 = inlined_call_operand.vmem [shape: f32[32,8], index: 0, kind: input, shape index: {}]
  %s1 = inlined_call_operand.vmem [shape: f32[256,1], index: 1, kind: output, shape index: {}]
  %v2 = vld [vmem:[%s0] sm:$0xff]
  %vm3 = vcmask 7168
  %4 = vst.msk [vmem:[%s1] ss:$8 sm:$0xf] %vm3, %v2
  %5 = vst.msk [vmem:[%s1] ss:$8 sm:$0xf0] %vm3, %v2
  %s6 = scalar_lea.vmem %s0, 8
  %v7 = vld [vmem:[%s6] sm:$0xff]
  %vm8 = vcmask 7168
  %s9 = scalar_lea.vmem %s1, 64
  %10 = vst.msk [vmem:[%s9] ss:$8 sm:$0xf] %vm8, %v7
  %s11 = scalar_lea.vmem %s1, 64
  %12 = vst.msk [vmem:[%s11] ss:$8 sm:$0xf0] %vm8, %v7
  %s13 = scalar_lea.vmem %s0, 16
  %v14 = vld [vmem:[%s13] sm:$0xff]
  %vm15 = vcmask 7168
  %s16 = scalar_lea.vmem %s1, 128
  %17 = vst.msk [vmem:[%s16] ss:$8 sm:$0xf] %vm15, %v14
  %s18 = scalar_lea.vmem %s1, 128
  %19 = vst.msk [vmem:[%s18] ss:$8 sm:$0xf0] %vm15, %v14
  %s20 = scalar_lea.vmem %s0, 24
  %v21 = vld [vmem:[%s20] sm:$0xff]
  %vm22 = vcmask 7168
  %s23 = scalar_lea.vmem %s1, 192
  %24 = vst.msk [vmem:[%s23] ss:$8 sm:$0xf] %vm22, %v21
  %s25 = scalar_lea.vmem %s1, 192
  %26 = vst.msk [vmem:[%s25] ss:$8 sm:$0xf0] %vm22, %v21
  %v27 = vld [vmem:[%s0] sm:$0xff]
  %28 = vrot.lane.b32.xlu0 %v27, 127
  %v29 = vpop.permute.xlu0 %28
  %vm30 = vcmask 7168
  %s31 = scalar_lea.vmem %s1, 1
  %32 = vst.msk [vmem:[%s31] ss:$8 sm:$0xf] %vm30, %v29
  %s33 = scalar_lea.vmem %s1, 1
  %34 = vst.msk [vmem:[%s33] ss:$8 sm:$0xf0] %vm30, %v29
  %s35 = scalar_lea.vmem %s0, 8
  %v36 = vld [vmem:[%s35] sm:$0xff]
  %37 = vrot.lane.b32.xlu0 %v36, 127
  %v38 = vpop.permute.xlu0 %37
  %vm39 = vcmask 7168
  %s40 = scalar_lea.vmem %s1, 65
  %41 = vst.msk [vmem:[%s40] ss:$8 sm:$0xf] %vm39, %v38
  %s42 = scalar_lea.vmem %s1, 65
  %43 = vst.msk [vmem:[%s42] ss:$8 sm:$0xf0] %vm39, %v38
  %s44 = scalar_lea.vmem %s0, 16
  %v45 = vld [vmem:[%s44] sm:$0xff]
  %46 = vrot.lane.b32.xlu0 %v45, 127
  %v47 = vpop.permute.xlu0 %46
  %vm48 = vcmask 7168
  %s49 = scalar_lea.vmem %s1, 129
  %50 = vst.msk [vmem:[%s49] ss:$8 sm:$0xf] %vm48, %v47
  %s51 = scalar_lea.vmem %s1, 129
  %52 = vst.msk [vmem:[%s51] ss:$8 sm:$0xf0] %vm48, %v47
  %s53 = scalar_lea.vmem %s0, 24
  %v54 = vld [vmem:[%s53] sm:$0xff]
  %55 = vrot.lane.b32.xlu0 %v54, 127
  %v56 = vpop.permute.xlu0 %55
  %vm57 = vcmask 7168
  %s58 = scalar_lea.vmem %s1, 193
  %59 = vst.msk [vmem:[%s58] ss:$8 sm:$0xf] %vm57, %v56
  %s60 = scalar_lea.vmem %s1, 193
  %61 = vst.msk [vmem:[%s60] ss:$8 sm:$0xf0] %vm57, %v56
  %v62 = vld [vmem:[%s0] sm:$0xff]
  %63 = vrot.lane.b32.xlu0 %v62, 126
  %v64 = vpop.permute.xlu0 %63
  %vm65 = vcmask 7168
  %s66 = scalar_lea.vmem %s1, 2
  %67 = vst.msk [vmem:[%s66] ss:$8 sm:$0xf] %vm65, %v64
  %s68 = scalar_lea.vmem %s1, 2
  %69 = vst.msk [vmem:[%s68] ss:$8 sm:$0xf0] %vm65, %v64
  %s70 = scalar_lea.vmem %s0, 8
  %v71 = vld [vmem:[%s70] sm:$0xff]
  %72 = vrot.lane.b32.xlu0 %v71, 126
  %v73 = vpop.permute.xlu0 %72
  %vm74 = vcmask 7168
  %s75 = scalar_lea.vmem %s1, 66
  %76 = vst.msk [vmem:[%s75] ss:$8 sm:$0xf] %vm74, %v73
  %s77 = scalar_lea.vmem %s1, 66
  %78 = vst.msk [vmem:[%s77] ss:$8 sm:$0xf0] %vm74, %v73
  %s79 = scalar_lea.vmem %s0, 16
  %v80 = vld [vmem:[%s79] sm:$0xff]
  %81 = vrot.lane.b32.xlu0 %v80, 126
  %v82 = vpop.permute.xlu0 %81
  %vm83 = vcmask 7168
  %s84 = scalar_lea.vmem %s1, 130
  %85 = vst.msk [vmem:[%s84] ss:$8 sm:$0xf] %vm83, %v82
  %s86 = scalar_lea.vmem %s1, 130
  %87 = vst.msk [vmem:[%s86] ss:$8 sm:$0xf0] %vm83, %v82
  %s88 = scalar_lea.vmem %s0, 24
  %v89 = vld [vmem:[%s88] sm:$0xff]
  %90 = vrot.lane.b32.xlu0 %v89, 126
  %v91 = vpop.permute.xlu0 %90
  %vm92 = vcmask 7168
  %s93 = scalar_lea.vmem %s1, 194
  %94 = vst.msk [vmem:[%s93] ss:$8 sm:$0xf] %vm92, %v91
  %s95 = scalar_lea.vmem %s1, 194
  %96 = vst.msk [vmem:[%s95] ss:$8 sm:$0xf0] %vm92, %v91
  %v97 = vld [vmem:[%s0] sm:$0xff]
  %98 = vrot.lane.b32.xlu0 %v97, 125
  %v99 = vpop.permute.xlu0 %98
  %vm100 = vcmask 7168
  %s101 = scalar_lea.vmem %s1, 3
  %102 = vst.msk [vmem:[%s101] ss:$8 sm:$0xf] %vm100, %v99
  %s103 = scalar_lea.vmem %s1, 3
  %104 = vst.msk [vmem:[%s103] ss:$8 sm:$0xf0] %vm100, %v99
  %s105 = scalar_lea.vmem %s0, 8
  %v106 = vld [vmem:[%s105] sm:$0xff]
  %107 = vrot.lane.b32.xlu0 %v106, 125
  %v108 = vpop.permute.xlu0 %107
  %vm109 = vcmask 7168
  %s110 = scalar_lea.vmem %s1, 67
  %111 = vst.msk [vmem:[%s110] ss:$8 sm:$0xf] %vm109, %v108
  %s112 = scalar_lea.vmem %s1, 67
  %113 = vst.msk [vmem:[%s112] ss:$8 sm:$0xf0] %vm109, %v108
  %s114 = scalar_lea.vmem %s0, 16
  %v115 = vld [vmem:[%s114] sm:$0xff]
  %116 = vrot.lane.b32.xlu0 %v115, 125
  %v117 = vpop.permute.xlu0 %116
  %vm118 = vcmask 7168
  %s119 = scalar_lea.vmem %s1, 131
  %120 = vst.msk [vmem:[%s119] ss:$8 sm:$0xf] %vm118, %v117
  %s121 = scalar_lea.vmem %s1, 131
  %122 = vst.msk [vmem:[%s121] ss:$8 sm:$0xf0] %vm118, %v117
  %s123 = scalar_lea.vmem %s0, 24
  %v124 = vld [vmem:[%s123] sm:$0xff]
  %125 = vrot.lane.b32.xlu0 %v124, 125
  %v126 = vpop.permute.xlu0 %125
  %vm127 = vcmask 7168
  %s128 = scalar_lea.vmem %s1, 195
  %129 = vst.msk [vmem:[%s128] ss:$8 sm:$0xf] %vm127, %v126
  %s130 = scalar_lea.vmem %s1, 195
  %131 = vst.msk [vmem:[%s130] ss:$8 sm:$0xf0] %vm127, %v126
  %v132 = vld [vmem:[%s0] sm:$0xff]
  %133 = vrot.lane.b32.xlu0 %v132, 124
  %v134 = vpop.permute.xlu0 %133
  %vm135 = vcmask 7168
  %s136 = scalar_lea.vmem %s1, 4
  %137 = vst.msk [vmem:[%s136] ss:$8 sm:$0xf] %vm135, %v134
  %s138 = scalar_lea.vmem %s1, 4
  %139 = vst.msk [vmem:[%s138] ss:$8 sm:$0xf0] %vm135, %v134
  %s140 = scalar_lea.vmem %s0, 8
  %v141 = vld [vmem:[%s140] sm:$0xff]
  %142 = vrot.lane.b32.xlu0 %v141, 124
  %v143 = vpop.permute.xlu0 %142
  %vm144 = vcmask 7168
  %s145 = scalar_lea.vmem %s1, 68
  %146 = vst.msk [vmem:[%s145] ss:$8 sm:$0xf] %vm144, %v143
  %s147 = scalar_lea.vmem %s1, 68
  %148 = vst.msk [vmem:[%s147] ss:$8 sm:$0xf0] %vm144, %v143
  %s149 = scalar_lea.vmem %s0, 16
  %v150 = vld [vmem:[%s149] sm:$0xff]
  %151 = vrot.lane.b32.xlu0 %v150, 124
  %v152 = vpop.permute.xlu0 %151
  %vm153 = vcmask 7168
  %s154 = scalar_lea.vmem %s1, 132
  %155 = vst.msk [vmem:[%s154] ss:$8 sm:$0xf] %vm153, %v152
  %s156 = scalar_lea.vmem %s1, 132
  %157 = vst.msk [vmem:[%s156] ss:$8 sm:$0xf0] %vm153, %v152
  %s158 = scalar_lea.vmem %s0, 24
  %v159 = vld [vmem:[%s158] sm:$0xff]
  %160 = vrot.lane.b32.xlu0 %v159, 124
  %v161 = vpop.permute.xlu0 %160
  %vm162 = vcmask 7168
  %s163 = scalar_lea.vmem %s1, 196
  %164 = vst.msk [vmem:[%s163] ss:$8 sm:$0xf] %vm162, %v161
  %s165 = scalar_lea.vmem %s1, 196
  %166 = vst.msk [vmem:[%s165] ss:$8 sm:$0xf0] %vm162, %v161
  %v167 = vld [vmem:[%s0] sm:$0xff]
  %168 = vrot.lane.b32.xlu0 %v167, 123
  %v169 = vpop.permute.xlu0 %168
  %vm170 = vcmask 7168
  %s171 = scalar_lea.vmem %s1, 5
  %172 = vst.msk [vmem:[%s171] ss:$8 sm:$0xf] %vm170, %v169
  %s173 = scalar_lea.vmem %s1, 5
  %174 = vst.msk [vmem:[%s173] ss:$8 sm:$0xf0] %vm170, %v169
  %s175 = scalar_lea.vmem %s0, 8
  %v176 = vld [vmem:[%s175] sm:$0xff]
  %177 = vrot.lane.b32.xlu0 %v176, 123
  %v178 = vpop.permute.xlu0 %177
  %vm179 = vcmask 7168
  %s180 = scalar_lea.vmem %s1, 69
  %181 = vst.msk [vmem:[%s180] ss:$8 sm:$0xf] %vm179, %v178
  %s182 = scalar_lea.vmem %s1, 69
  %183 = vst.msk [vmem:[%s182] ss:$8 sm:$0xf0] %vm179, %v178
  %s184 = scalar_lea.vmem %s0, 16
  %v185 = vld [vmem:[%s184] sm:$0xff]
  %186 = vrot.lane.b32.xlu0 %v185, 123
  %v187 = vpop.permute.xlu0 %186
  %vm188 = vcmask 7168
  %s189 = scalar_lea.vmem %s1, 133
  %190 = vst.msk [vmem:[%s189] ss:$8 sm:$0xf] %vm188, %v187
  %s191 = scalar_lea.vmem %s1, 133
  %192 = vst.msk [vmem:[%s191] ss:$8 sm:$0xf0] %vm188, %v187
  %s193 = scalar_lea.vmem %s0, 24
  %v194 = vld [vmem:[%s193] sm:$0xff]
  %195 = vrot.lane.b32.xlu0 %v194, 123
  %v196 = vpop.permute.xlu0 %195
  %vm197 = vcmask 7168
  %s198 = scalar_lea.vmem %s1, 197
  %199 = vst.msk [vmem:[%s198] ss:$8 sm:$0xf] %vm197, %v196
  %s200 = scalar_lea.vmem %s1, 197
  %201 = vst.msk [vmem:[%s200] ss:$8 sm:$0xf0] %vm197, %v196
  %v202 = vld [vmem:[%s0] sm:$0xff]
  %203 = vrot.lane.b32.xlu0 %v202, 122
  %v204 = vpop.permute.xlu0 %203
  %vm205 = vcmask 7168
  %s206 = scalar_lea.vmem %s1, 6
  %207 = vst.msk [vmem:[%s206] ss:$8 sm:$0xf] %vm205, %v204
  %s208 = scalar_lea.vmem %s1, 6
  %209 = vst.msk [vmem:[%s208] ss:$8 sm:$0xf0] %vm205, %v204
  %s210 = scalar_lea.vmem %s0, 8
  %v211 = vld [vmem:[%s210] sm:$0xff]
  %212 = vrot.lane.b32.xlu0 %v211, 122
  %v213 = vpop.permute.xlu0 %212
  %vm214 = vcmask 7168
  %s215 = scalar_lea.vmem %s1, 70
  %216 = vst.msk [vmem:[%s215] ss:$8 sm:$0xf] %vm214, %v213
  %s217 = scalar_lea.vmem %s1, 70
  %218 = vst.msk [vmem:[%s217] ss:$8 sm:$0xf0] %vm214, %v213
  %s219 = scalar_lea.vmem %s0, 16
  %v220 = vld [vmem:[%s219] sm:$0xff]
  %221 = vrot.lane.b32.xlu0 %v220, 122
  %v222 = vpop.permute.xlu0 %221
  %vm223 = vcmask 7168
  %s224 = scalar_lea.vmem %s1, 134
  %225 = vst.msk [vmem:[%s224] ss:$8 sm:$0xf] %vm223, %v222
  %s226 = scalar_lea.vmem %s1, 134
  %227 = vst.msk [vmem:[%s226] ss:$8 sm:$0xf0] %vm223, %v222
  %s228 = scalar_lea.vmem %s0, 24
  %v229 = vld [vmem:[%s228] sm:$0xff]
  %230 = vrot.lane.b32.xlu0 %v229, 122
  %v231 = vpop.permute.xlu0 %230
  %vm232 = vcmask 7168
  %s233 = scalar_lea.vmem %s1, 198
  %234 = vst.msk [vmem:[%s233] ss:$8 sm:$0xf] %vm232, %v231
  %s235 = scalar_lea.vmem %s1, 198
  %236 = vst.msk [vmem:[%s235] ss:$8 sm:$0xf0] %vm232, %v231
  %v237 = vld [vmem:[%s0] sm:$0xff]
  %238 = vrot.lane.b32.xlu0 %v237, 121
  %v239 = vpop.permute.xlu0 %238
  %vm240 = vcmask 7168
  %s241 = scalar_lea.vmem %s1, 7
  %242 = vst.msk [vmem:[%s241] ss:$8 sm:$0xf] %vm240, %v239
  %s243 = scalar_lea.vmem %s1, 7
  %244 = vst.msk [vmem:[%s243] ss:$8 sm:$0xf0] %vm240, %v239
  %s245 = scalar_lea.vmem %s0, 8
  %v246 = vld [vmem:[%s245] sm:$0xff]
  %247 = vrot.lane.b32.xlu0 %v246, 121
  %v248 = vpop.permute.xlu0 %247
  %vm249 = vcmask 7168
  %s250 = scalar_lea.vmem %s1, 71
  %251 = vst.msk [vmem:[%s250] ss:$8 sm:$0xf] %vm249, %v248
  %s252 = scalar_lea.vmem %s1, 71
  %253 = vst.msk [vmem:[%s252] ss:$8 sm:$0xf0] %vm249, %v248
  %s254 = scalar_lea.vmem %s0, 16
  %v255 = vld [vmem:[%s254] sm:$0xff]
  %256 = vrot.lane.b32.xlu0 %v255, 121
  %v257 = vpop.permute.xlu0 %256
  %vm258 = vcmask 7168
  %s259 = scalar_lea.vmem %s1, 135
  %260 = vst.msk [vmem:[%s259] ss:$8 sm:$0xf] %vm258, %v257
  %s261 = scalar_lea.vmem %s1, 135
  %262 = vst.msk [vmem:[%s261] ss:$8 sm:$0xf0] %vm258, %v257
  %s263 = scalar_lea.vmem %s0, 24
  %v264 = vld [vmem:[%s263] sm:$0xff]
  %265 = vrot.lane.b32.xlu0 %v264, 121
  %v266 = vpop.permute.xlu0 %265
  %vm267 = vcmask 7168
  %s268 = scalar_lea.vmem %s1, 199
  %269 = vst.msk [vmem:[%s268] ss:$8 sm:$0xf] %vm267, %v266
  %s270 = scalar_lea.vmem %s1, 199
  %271 = vst.msk [vmem:[%s270] ss:$8 sm:$0xf0] %vm267, %v266

// kernel: value_network_forward.1
$region0: #{value_network_forward.1}
  #allocation0 [shape = 'u32[]', space=smem, size = 0x4, offset = 0x4, fixed_abs, tag = 'smem constant byte address 0x4 - core index']
  #allocation1 [shape = 'u32[144,128]{1,0:T(1,128)}', space=vmem, size = 0x12000, scoped, tag = 'internal scratch']
  %s0 = inlined_call_operand.vmem [shape: bf16[512,32], index: 0, kind: input, shape index: {}]
  %s1 = inlined_call_operand.vmem [shape: bf16[32,32], index: 1, kind: input, shape index: {}]
  %s2 = inlined_call_operand.vmem [shape: bf16[32,32], index: 2, kind: input, shape index: {}]
  %s3 = inlined_call_operand.vmem [shape: bf16[32,32], index: 3, kind: input, shape index: {}]
  %s4 = inlined_call_operand.vmem [shape: bf16[32,32], index: 4, kind: input, shape index: {}]
  %s5 = inlined_call_operand.vmem [shape: bf16[32,64], index: 5, kind: input, shape index: {}]
  %s6 = inlined_call_operand.vmem [shape: bf16[64,32], index: 6, kind: input, shape index: {}]
  %s7 = inlined_call_operand.vmem [shape: bf16[32,128], index: 7, kind: input, shape index: {}]
  %s8 = inlined_call_operand.vmem [shape: bf16[256,256], index: 8, kind: input, shape index: {}]
  %s9 = inlined_call_operand.vmem [shape: f32[256,256], index: 9, kind: input, shape index: {}]
  %s10 = inlined_call_operand.vmem [shape: bf16[32,256], index: 10, kind: input, shape index: {}]
  %s11 = inlined_call_operand.vmem [shape: f32[256,32], index: 11, kind: input, shape index: {}]
  %s12 = inlined_call_operand.vmem [shape: f32[256,1], index: 12, kind: input, shape index: {}]
  %s13 = inlined_call_operand.vmem [shape: f32[16,128], index: 13, kind: input, shape index: {}]
  %s14 = inlined_call_operand.vmem [shape: f32[64,128], index: 14, kind: output, shape index: {}]
  %s15 = sld [smem:[#allocation0]]
  $region89: #{value_network_forward.1} parent=0
    _
  %s17 = ssub.s32 1, %s15
  %s18 = scalar_select 0, %s17, %s15
  loop: start=0, step=1, limit=4
  $region2: #{value_network_forward.1} parent=0 // loop_pre_header
    _
  $region3: #{value_network_forward.1} parent=0 // loop_header
    %s20 = sphi 0, %s24
    %p21 = scmp.ge.s32.totalorder %s20, 4
    %s30 = sphi 0, %s32
    %s33 = sphi 0, %s30
    %s34 = sphi 0, %s33
    %s50 = sphi 0, %s34
    %s54 = sphi 0, %s54
    %s56 = sphi 0, %s54
    %s57 = sphi 0, %s56
    %s71 = sphi 0, %s57
    %s75 = sphi 0, %s75
    %s77 = sphi 0, %s75
    %s78 = sphi 0, %s77
    %s92 = sphi 0, %s78
    %s96 = sphi 0, %s96
    %s98 = sphi 0, %s96
    %s99 = sphi 0, %s98
    %s113 = sphi 0, %s99
    %s117 = sphi 0, %s117
    %s119 = sphi 0, %s117
    %s120 = sphi 0, %s119
    %s134 = sphi 0, %s120
    %s138 = sphi 0, %s138
    %s140 = sphi 0, %s138
    %s141 = sphi 0, %s140
    %s155 = sphi 0, %s141
    %s159 = sphi 0, %s159
    %s161 = sphi 0, %s159
    %s162 = sphi 0, %s161
    %s176 = sphi 0, %s162
    %s180 = sphi 0, %s180
    %s182 = sphi 0, %s180
    %s183 = sphi 0, %s182
    %s197 = sphi 0, %s183
    %s201 = sphi 0, %s201
    %s203 = sphi 0, %s201
    %s204 = sphi 0, %s203
    %s218 = sphi 0, %s204
    %s222 = sphi 0, %s222
    %s224 = sphi 0, %s222
    %s225 = sphi 0, %s224
    %s239 = sphi 0, %s225
    %s243 = sphi 0, %s243
    %s245 = sphi 0, %s243
    %s246 = sphi 0, %s245
    %s260 = sphi 0, %s246
    %s264 = sphi 0, %s264
    %s266 = sphi 0, %s264
    %s267 = sphi 0, %s266
    %s281 = sphi 0, %s267
    %s285 = sphi 0, %s285
    %s287 = sphi 0, %s285
    %s288 = sphi 0, %s287
    %s302 = sphi 0, %s288
    %s306 = sphi 0, %s306
    %s308 = sphi 0, %s306
    %s309 = sphi 0, %s308
    %s323 = sphi 0, %s309
    %s329 = sphi 0, %s331
    %s332 = sphi 0, %s329
    %s333 = sphi 0, %s332
    %s349 = sphi 0, %s333
  $region4: #{value_network_forward.1} parent=0 // loop_header_branch
    %23 = sbr.rel (%p21) target = $region8
  $region5: #{value_network_forward.1} parent=0 // loop_body
    %s25 = ssub.s32 %s20, 1
    %s26 = ssub.s32 %s20, 2
    %s27 = sadd.s32 %s20, 1
    %s28 = ssub.s32 %s20, %s27
    %p29 = scmp.eq.s32.totalorder %s28, 0
    %s31 = sadd.s32 %s30, 1
    %s32 = scalar_select %p29, %s30, %s31
    %p35 = pneg %p29
    %p36 = scmp.eq.s32.totalorder %s20, 1
    %p37 = por %p35, %p36
    %p38 = scmp.ne.s32.totalorder %s30, %s33
    %p39 = scmp.eq.s32.totalorder %s20, 0
    %p40 = por %p38, %p39
    %p41 = scmp.ne.s32.totalorder %s30, %s33
    %p42 = scmp.eq.s32.totalorder %s25, 1
    %p43 = por %p41, %p42
    %p44 = scmp.ne.s32.totalorder %s33, %s34
    %p45 = scmp.eq.s32.totalorder %s25, 0
    %p46 = por %p44, %p45
    %p47 = scmp.ne.s32.totalorder %s33, %s34
    %p48 = scmp.eq.s32.totalorder %s26, 1
    %p49 = por %p47, %p48
    %p51 = scmp.ne.s32.totalorder %s34, %s50
    %p52 = scmp.eq.s32.totalorder %s26, 0
    %p53 = por %p51, %p52
    %s55 = sadd.s32 %s54, 1
    %p58 = scmp.eq.s32.totalorder %s20, 1
    %p59 = scmp.ne.s32.totalorder %s54, %s56
    %p60 = scmp.eq.s32.totalorder %s20, 0
    %p61 = por %p59, %p60
    %p62 = scmp.ne.s32.totalorder %s54, %s56
    %p63 = scmp.eq.s32.totalorder %s25, 1
    %p64 = por %p62, %p63
    %p65 = scmp.ne.s32.totalorder %s56, %s57
    %p66 = scmp.eq.s32.totalorder %s25, 0
    %p67 = por %p65, %p66
    %p68 = scmp.ne.s32.totalorder %s56, %s57
    %p69 = scmp.eq.s32.totalorder %s26, 1
    %p70 = por %p68, %p69
    %p72 = scmp.ne.s32.totalorder %s57, %s71
    %p73 = scmp.eq.s32.totalorder %s26, 0
    %p74 = por %p72, %p73
    %s76 = sadd.s32 %s75, 1
    %p79 = scmp.eq.s32.totalorder %s20, 1
    %p80 = scmp.ne.s32.totalorder %s75, %s77
    %p81 = scmp.eq.s32.totalorder %s20, 0
    %p82 = por %p80, %p81
    %p83 = scmp.ne.s32.totalorder %s75, %s77
    %p84 = scmp.eq.s32.totalorder %s25, 1
    %p85 = por %p83, %p84
    %p86 = scmp.ne.s32.totalorder %s77, %s78
    %p87 = scmp.eq.s32.totalorder %s25, 0
    %p88 = por %p86, %p87
    %p89 = scmp.ne.s32.totalorder %s77, %s78
    %p90 = scmp.eq.s32.totalorder %s26, 1
    %p91 = por %p89, %p90
    %p93 = scmp.ne.s32.totalorder %s78, %s92
    %p94 = scmp.eq.s32.totalorder %s26, 0
    %p95 = por %p93, %p94
    %s97 = sadd.s32 %s96, 1
    %p100 = scmp.eq.s32.totalorder %s20, 1
    %p101 = scmp.ne.s32.totalorder %s96, %s98
    %p102 = scmp.eq.s32.totalorder %s20, 0
    %p103 = por %p101, %p102
    %p104 = scmp.ne.s32.totalorder %s96, %s98
    %p105 = scmp.eq.s32.totalorder %s25, 1
    %p106 = por %p104, %p105
    %p107 = scmp.ne.s32.totalorder %s98, %s99
    %p108 = scmp.eq.s32.totalorder %s25, 0
    %p109 = por %p107, %p108
    %p110 = scmp.ne.s32.totalorder %s98, %s99
    %p111 = scmp.eq.s32.totalorder %s26, 1
    %p112 = por %p110, %p111
    %p114 = scmp.ne.s32.totalorder %s99, %s113
    %p115 = scmp.eq.s32.totalorder %s26, 0
    %p116 = por %p114, %p115
    %s118 = sadd.s32 %s117, 1
    %p121 = scmp.eq.s32.totalorder %s20, 1
    %p122 = scmp.ne.s32.totalorder %s117, %s119
    %p123 = scmp.eq.s32.totalorder %s20, 0
    %p124 = por %p122, %p123
    %p125 = scmp.ne.s32.totalorder %s117, %s119
    %p126 = scmp.eq.s32.totalorder %s25, 1
    %p127 = por %p125, %p126
    %p128 = scmp.ne.s32.totalorder %s119, %s120
    %p129 = scmp.eq.s32.totalorder %s25, 0
    %p130 = por %p128, %p129
    %p131 = scmp.ne.s32.totalorder %s119, %s120
    %p132 = scmp.eq.s32.totalorder %s26, 1
    %p133 = por %p131, %p132
    %p135 = scmp.ne.s32.totalorder %s120, %s134
    %p136 = scmp.eq.s32.totalorder %s26, 0
    %p137 = por %p135, %p136
    %s139 = sadd.s32 %s138, 1
    %p142 = scmp.eq.s32.totalorder %s20, 1
    %p143 = scmp.ne.s32.totalorder %s138, %s140
    %p144 = scmp.eq.s32.totalorder %s20, 0
    %p145 = por %p143, %p144
    %p146 = scmp.ne.s32.totalorder %s138, %s140
    %p147 = scmp.eq.s32.totalorder %s25, 1
    %p148 = por %p146, %p147
    %p149 = scmp.ne.s32.totalorder %s140, %s141
    %p150 = scmp.eq.s32.totalorder %s25, 0
    %p151 = por %p149, %p150
    %p152 = scmp.ne.s32.totalorder %s140, %s141
    %p153 = scmp.eq.s32.totalorder %s26, 1
    %p154 = por %p152, %p153
    %p156 = scmp.ne.s32.totalorder %s141, %s155
    %p157 = scmp.eq.s32.totalorder %s26, 0
    %p158 = por %p156, %p157
    %s160 = sadd.s32 %s159, 1
    %p163 = scmp.eq.s32.totalorder %s20, 1
    %p164 = scmp.ne.s32.totalorder %s159, %s161
    %p165 = scmp.eq.s32.totalorder %s20, 0
    %p166 = por %p164, %p165
    %p167 = scmp.ne.s32.totalorder %s159, %s161
    %p168 = scmp.eq.s32.totalorder %s25, 1
    %p169 = por %p167, %p168
    %p170 = scmp.ne.s32.totalorder %s161, %s162
    %p171 = scmp.eq.s32.totalorder %s25, 0
    %p172 = por %p170, %p171
    %p173 = scmp.ne.s32.totalorder %s161, %s162
    %p174 = scmp.eq.s32.totalorder %s26, 1
    %p175 = por %p173, %p174
    %p177 = scmp.ne.s32.totalorder %s162, %s176
    %p178 = scmp.eq.s32.totalorder %s26, 0
    %p179 = por %p177, %p178
    %s181 = sadd.s32 %s180, 1
    %p184 = scmp.eq.s32.totalorder %s20, 1
    %p185 = scmp.ne.s32.totalorder %s180, %s182
    %p186 = scmp.eq.s32.totalorder %s20, 0
    %p187 = por %p185, %p186
    %p188 = scmp.ne.s32.totalorder %s180, %s182
    %p189 = scmp.eq.s32.totalorder %s25, 1
    %p190 = por %p188, %p189
    %p191 = scmp.ne.s32.totalorder %s182, %s183
    %p192 = scmp.eq.s32.totalorder %s25, 0
    %p193 = por %p191, %p192
    %p194 = scmp.ne.s32.totalorder %s182, %s183
    %p195 = scmp.eq.s32.totalorder %s26, 1
    %p196 = por %p194, %p195
    %p198 = scmp.ne.s32.totalorder %s183, %s197
    %p199 = scmp.eq.s32.totalorder %s26, 0
    %p200 = por %p198, %p199
    %s202 = sadd.s32 %s201, 1
    %p205 = scmp.eq.s32.totalorder %s20, 1
    %p206 = scmp.ne.s32.totalorder %s201, %s203
    %p207 = scmp.eq.s32.totalorder %s20, 0
    %p208 = por %p206, %p207
    %p209 = scmp.ne.s32.totalorder %s201, %s203
    %p210 = scmp.eq.s32.totalorder %s25, 1
    %p211 = por %p209, %p210
    %p212 = scmp.ne.s32.totalorder %s203, %s204
    %p213 = scmp.eq.s32.totalorder %s25, 0
    %p214 = por %p212, %p213
    %p215 = scmp.ne.s32.totalorder %s203, %s204
    %p216 = scmp.eq.s32.totalorder %s26, 1
    %p217 = por %p215, %p216
    %p219 = scmp.ne.s32.totalorder %s204, %s218
    %p220 = scmp.eq.s32.totalorder %s26, 0
    %p221 = por %p219, %p220
    %s223 = sadd.s32 %s222, 1
    %p226 = scmp.eq.s32.totalorder %s20, 1
    %p227 = scmp.ne.s32.totalorder %s222, %s224
    %p228 = scmp.eq.s32.totalorder %s20, 0
    %p229 = por %p227, %p228
    %p230 = scmp.ne.s32.totalorder %s222, %s224
    %p231 = scmp.eq.s32.totalorder %s25, 1
    %p232 = por %p230, %p231
    %p233 = scmp.ne.s32.totalorder %s224, %s225
    %p234 = scmp.eq.s32.totalorder %s25, 0
    %p235 = por %p233, %p234
    %p236 = scmp.ne.s32.totalorder %s224, %s225
    %p237 = scmp.eq.s32.totalorder %s26, 1
    %p238 = por %p236, %p237
    %p240 = scmp.ne.s32.totalorder %s225, %s239
    %p241 = scmp.eq.s32.totalorder %s26, 0
    %p242 = por %p240, %p241
    %s244 = sadd.s32 %s243, 1
    %p247 = scmp.eq.s32.totalorder %s20, 1
    %p248 = scmp.ne.s32.totalorder %s243, %s245
    %p249 = scmp.eq.s32.totalorder %s20, 0
    %p250 = por %p248, %p249
    %p251 = scmp.ne.s32.totalorder %s243, %s245
    %p252 = scmp.eq.s32.totalorder %s25, 1
    %p253 = por %p251, %p252
    %p254 = scmp.ne.s32.totalorder %s245, %s246
    %p255 = scmp.eq.s32.totalorder %s25, 0
    %p256 = por %p254, %p255
    %p257 = scmp.ne.s32.totalorder %s245, %s246
    %p258 = scmp.eq.s32.totalorder %s26, 1
    %p259 = por %p257, %p258
    %p261 = scmp.ne.s32.totalorder %s246, %s260
    %p262 = scmp.eq.s32.totalorder %s26, 0
    %p263 = por %p261, %p262
    %s265 = sadd.s32 %s264, 1
    %p268 = scmp.eq.s32.totalorder %s20, 1
    %p269 = scmp.ne.s32.totalorder %s264, %s266
    %p270 = scmp.eq.s32.totalorder %s20, 0
    %p271 = por %p269, %p270
    %p272 = scmp.ne.s32.totalorder %s264, %s266
    %p273 = scmp.eq.s32.totalorder %s25, 1
    %p274 = por %p272, %p273
    %p275 = scmp.ne.s32.totalorder %s266, %s267
    %p276 = scmp.eq.s32.totalorder %s25, 0
    %p277 = por %p275, %p276
    %p278 = scmp.ne.s32.totalorder %s266, %s267
    %p279 = scmp.eq.s32.totalorder %s26, 1
    %p280 = por %p278, %p279
    %p282 = scmp.ne.s32.totalorder %s267, %s281
    %p283 = scmp.eq.s32.totalorder %s26, 0
    %p284 = por %p282, %p283
    %s286 = sadd.s32 %s285, 1
    %p289 = scmp.eq.s32.totalorder %s20, 1
    %p290 = scmp.ne.s32.totalorder %s285, %s287
    %p291 = scmp.eq.s32.totalorder %s20, 0
    %p292 = por %p290, %p291
    %p293 = scmp.ne.s32.totalorder %s285, %s287
    %p294 = scmp.eq.s32.totalorder %s25, 1
    %p295 = por %p293, %p294
    %p296 = scmp.ne.s32.totalorder %s287, %s288
    %p297 = scmp.eq.s32.totalorder %s25, 0
    %p298 = por %p296, %p297
    %p299 = scmp.ne.s32.totalorder %s287, %s288
    %p300 = scmp.eq.s32.totalorder %s26, 1
    %p301 = por %p299, %p300
    %p303 = scmp.ne.s32.totalorder %s288, %s302
    %p304 = scmp.eq.s32.totalorder %s26, 0
    %p305 = por %p303, %p304
    %s307 = sadd.s32 %s306, 1
    %p310 = scmp.eq.s32.totalorder %s20, 1
    %p311 = scmp.ne.s32.totalorder %s306, %s308
    %p312 = scmp.eq.s32.totalorder %s20, 0
    %p313 = por %p311, %p312
    %p314 = scmp.ne.s32.totalorder %s306, %s308
    %p315 = scmp.eq.s32.totalorder %s25, 1
    %p316 = por %p314, %p315
    %p317 = scmp.ne.s32.totalorder %s308, %s309
    %p318 = scmp.eq.s32.totalorder %s25, 0
    %p319 = por %p317, %p318
    %p320 = scmp.ne.s32.totalorder %s308, %s309
    %p321 = scmp.eq.s32.totalorder %s26, 1
    %p322 = por %p320, %p321
    %p324 = scmp.ne.s32.totalorder %s309, %s323
    %p325 = scmp.eq.s32.totalorder %s26, 0
    %p326 = por %p324, %p325
    %s327 = ssub.s32 %s20, %s27
    %p328 = scmp.eq.s32.totalorder %s327, 0
    %s330 = sadd.s32 %s329, 1
    %s331 = scalar_select %p328, %s329, %s330
    %p334 = pneg %p328
    %p335 = scmp.eq.s32.totalorder %s20, 1
    %p336 = por %p334, %p335
    %p337 = scmp.ne.s32.totalorder %s329, %s332
    %p338 = scmp.eq.s32.totalorder %s20, 0
    %p339 = por %p337, %p338
    %p340 = scmp.ne.s32.totalorder %s329, %s332
    %p341 = scmp.eq.s32.totalorder %s25, 1
    %p342 = por %p340, %p341
    %p343 = scmp.ne.s32.totalorder %s332, %s333
    %p344 = scmp.eq.s32.totalorder %s25, 0
    %p345 = por %p343, %p344
    %p346 = scmp.ne.s32.totalorder %s332, %s333
    %p347 = scmp.eq.s32.totalorder %s26, 1
    %p348 = por %p346, %p347
    %p350 = scmp.ne.s32.totalorder %s333, %s349
    %p351 = scmp.eq.s32.totalorder %s26, 0
    %p352 = por %p350, %p351
    %p353 = scmp.le.s32.totalorder 1, %s20
    %p354 = scmp.lt.s32.totalorder %s20, 3
    %p355 = pnand %p353, %p354
    %p356 = pneg %p355
    // Predicated region
    $region9: #{value_network_forward.1} parent=5 // pred_check
      _
    $region10: #{value_network_forward.1} parent=5 // pred_check_branch
      %358 = sbr.rel (%p355) target = $region12
    $region11: #{value_network_forward.1} parent=5 // pred_region
      %s359 = ssub.s32 %s20, 1
      // Predicated region
      $region13: #{value_network_forward.1} parent=11 // pred_check
        %p360 = pneg %p67
      $region14: #{value_network_forward.1} parent=11 // pred_check_branch
        %362 = sbr.rel (%p360) target = $region16
      $region15: #{value_network_forward.1} parent=11 // pred_region
        _
      $region16: #{value_network_forward.1} parent=11 // pred_fallthru
        _
      // Predicated region
      $region17: #{value_network_forward.1} parent=11 // pred_check
        %p363 = pneg %p88
      $region18: #{value_network_forward.1} parent=11 // pred_check_branch
        %365 = sbr.rel (%p363) target = $region20
      $region19: #{value_network_forward.1} parent=11 // pred_region
        _
      $region20: #{value_network_forward.1} parent=11 // pred_fallthru
        _
      // Predicated region
      $region21: #{value_network_forward.1} parent=11 // pred_check
        %p366 = pneg %p109
      $region22: #{value_network_forward.1} parent=11 // pred_check_branch
        %368 = sbr.rel (%p366) target = $region24
      $region23: #{value_network_forward.1} parent=11 // pred_region
        _
      $region24: #{value_network_forward.1} parent=11 // pred_fallthru
        _
      // Predicated region
      $region25: #{value_network_forward.1} parent=11 // pred_check
        %p369 = pneg %p130
      $region26: #{value_network_forward.1} parent=11 // pred_check_branch
        %371 = sbr.rel (%p369) target = $region28
      $region27: #{value_network_forward.1} parent=11 // pred_region
        _
      $region28: #{value_network_forward.1} parent=11 // pred_fallthru
        _
      // Predicated region
      $region29: #{value_network_forward.1} parent=11 // pred_check
        %p372 = pneg %p151
      $region30: #{value_network_forward.1} parent=11 // pred_check_branch
        %374 = sbr.rel (%p372) target = $region32
      $region31: #{value_network_forward.1} parent=11 // pred_region
        _
      $region32: #{value_network_forward.1} parent=11 // pred_fallthru
        _
      // Predicated region
      $region33: #{value_network_forward.1} parent=11 // pred_check
        %p375 = pneg %p172
      $region34: #{value_network_forward.1} parent=11 // pred_check_branch
        %377 = sbr.rel (%p375) target = $region36
      $region35: #{value_network_forward.1} parent=11 // pred_region
        _
      $region36: #{value_network_forward.1} parent=11 // pred_fallthru
        _
      // Predicated region
      $region37: #{value_network_forward.1} parent=11 // pred_check
        %p378 = pneg %p193
      $region38: #{value_network_forward.1} parent=11 // pred_check_branch
        %380 = sbr.rel (%p378) target = $region40
      $region39: #{value_network_forward.1} parent=11 // pred_region
        _
      $region40: #{value_network_forward.1} parent=11 // pred_fallthru
        _
      // Predicated region
      $region41: #{value_network_forward.1} parent=11 // pred_check
        %p381 = pneg %p214
      $region42: #{value_network_forward.1} parent=11 // pred_check_branch
        %383 = sbr.rel (%p381) target = $region44
      $region43: #{value_network_forward.1} parent=11 // pred_region
        _
      $region44: #{value_network_forward.1} parent=11 // pred_fallthru
        _
      // Predicated region
      $region45: #{value_network_forward.1} parent=11 // pred_check
        %p384 = pneg %p235
      $region46: #{value_network_forward.1} parent=11 // pred_check_branch
        %386 = sbr.rel (%p384) target = $region48
      $region47: #{value_network_forward.1} parent=11 // pred_region
        _
      $region48: #{value_network_forward.1} parent=11 // pred_fallthru
        _
      // Predicated region
      $region49: #{value_network_forward.1} parent=11 // pred_check
        %p387 = pneg %p256
      $region50: #{value_network_forward.1} parent=11 // pred_check_branch
        %389 = sbr.rel (%p387) target = $region52
      $region51: #{value_network_forward.1} parent=11 // pred_region
        _
      $region52: #{value_network_forward.1} parent=11 // pred_fallthru
        _
      // Predicated region
      $region53: #{value_network_forward.1} parent=11 // pred_check
        %p390 = pneg %p277
      $region54: #{value_network_forward.1} parent=11 // pred_check_branch
        %392 = sbr.rel (%p390) target = $region56
      $region55: #{value_network_forward.1} parent=11 // pred_region
        _
      $region56: #{value_network_forward.1} parent=11 // pred_fallthru
        _
      // Predicated region
      $region57: #{value_network_forward.1} parent=11 // pred_check
        %p393 = pneg %p298
      $region58: #{value_network_forward.1} parent=11 // pred_check_branch
        %395 = sbr.rel (%p393) target = $region60
      $region59: #{value_network_forward.1} parent=11 // pred_region
        _
      $region60: #{value_network_forward.1} parent=11 // pred_fallthru
        _
      // Predicated region
      $region61: #{value_network_forward.1} parent=11 // pred_check
        %p396 = pneg %p319
      $region62: #{value_network_forward.1} parent=11 // pred_check_branch
        %398 = sbr.rel (%p396) target = $region64
      $region63: #{value_network_forward.1} parent=11 // pred_region
        _
      $region64: #{value_network_forward.1} parent=11 // pred_fallthru
        _
    $region12: #{value_network_forward.1} parent=5 // pred_fallthru
      _
    %p399 = scmp.lt.s32.totalorder %s20, 2
    // Predicated region
    $region65: #{value_network_forward.1} parent=5 // pred_check
      %p400 = pneg %p399
    $region66: #{value_network_forward.1} parent=5 // pred_check_branch
      %402 = sbr.rel (%p400) target = $region68
    $region67: #{value_network_forward.1} parent=5 // pred_region
      // Predicated region
      $region69: #{value_network_forward.1} parent=67 // pred_check
        %p403 = pneg %p40
      $region70: #{value_network_forward.1} parent=67 // pred_check_branch
        %405 = sbr.rel (%p403) target = $region72
      $region71: #{value_network_forward.1} parent=67 // pred_region
        %s406 = smul.u32 32, %s20
        %p407 = scmp.lt.s32.totalorder %s406, 63
        %s408 = scalar_select %p407, %s406, 63
        %s409 = smul.addr %s408, 4
        %s410 = scalar_lea.vmem %s0, %s409
        %s411 = smul.u32 32, %s20
      $region72: #{value_network_forward.1} parent=67 // pred_fallthru
        _
    $region68: #{value_network_forward.1} parent=5 // pred_fallthru
      _
    %p412 = scmp.le.s32.totalorder 1, %s20
    %p413 = scmp.lt.s32.totalorder %s20, 3
    %p414 = pnand %p412, %p413
    %p415 = pneg %p414
    // Predicated region
    $region73: #{value_network_forward.1} parent=5 // pred_check
      _
    $region74: #{value_network_forward.1} parent=5 // pred_check_branch
      %417 = sbr.rel (%p414) target = $region76
    $region75: #{value_network_forward.1} parent=5 // pred_region
      %s418 = ssub.s32 %s20, 1
      %s419 = smul.u32 32, %s25
      %p420 = scmp.lt.s32.totalorder %s419, 63
      %s421 = scalar_select %p420, %s419, 63
      %s422 = smul.addr %s421, 4
      %s423 = scalar_lea.vmem %s0, %s422
      %p424 = pneg %p46
      %p425 = pneg %p43
      %p426 = pneg %p67
      %p427 = pneg %p64
      %p428 = pneg %p88
      %p429 = pneg %p85
      %p430 = pneg %p109
      %p431 = pneg %p106
      %p432 = pneg %p130
      %p433 = pneg %p127
      %p434 = pneg %p151
      %p435 = pneg %p148
      %p436 = pneg %p172
      %p437 = pneg %p169
      %p438 = pneg %p193
      %p439 = pneg %p190
      %p440 = pneg %p214
      %p441 = pneg %p211
      %p442 = pneg %p235
      %p443 = pneg %p232
      %p444 = pneg %p256
      %p445 = pneg %p253
      %p446 = pneg %p277
      %p447 = pneg %p274
      %p448 = pneg %p298
      %p449 = pneg %p295
      %p450 = pneg %p319
      %p451 = pneg %p316
      %p452 = pneg %p345
      %p453 = pneg %p342
      %s454 = smul.u32 4, %s25
      %p455 = scmp.lt.s32.totalorder %s454, 7
      %s456 = scalar_select %p455, %s454, 7
      %s457 = smul.addr %s456, 8
      %s458 = scalar_lea.vmem %s14, %s457
      %s459 = smul.u32 32, %s25
      %p460 = scmp.lt.s32.totalorder %s459, 63
      %s461 = scalar_select %p460, %s459, 63
      %s462 = smul.addr %s461, 4
      %s463 = scalar_lea.vmem %s0, %s462
      %s464 = smul.u32 32, %s25
      %s465 = smul.u32 4, %s25
      %p466 = scmp.lt.s32.totalorder %s465, 7
      %s467 = scalar_select %p466, %s465, 7
      %s468 = smul.addr %s467, 8
      %s469 = scalar_lea.vmem %s14, %s468
      %s470 = smul.u32 4, %s25
      %v472 = vld [vmem:[%s463] sm:$0xf]
      %v473 = vld [vmem:[%s463 + $0x4] sm:$0xf]
      %v474 = vld [vmem:[%s463 + $0x8] sm:$0xf]
      %v475 = vld [vmem:[%s463 + $0xc] sm:$0xf]
      %v476 = vld [vmem:[%s463 + $0x10] sm:$0xf]
      %v477 = vld [vmem:[%s463 + $0x14] sm:$0xf]
      %v478 = vld [vmem:[%s463 + $0x18] sm:$0xf]
      %v479 = vld [vmem:[%s463 + $0x1c] sm:$0xf]
      %v480 = vld [vmem:[%s463 + $0x20] sm:$0xf]
      %v481 = vld [vmem:[%s463 + $0x24] sm:$0xf]
      %v482 = vld [vmem:[%s463 + $0x28] sm:$0xf]
      %v483 = vld [vmem:[%s463 + $0x2c] sm:$0xf]
      %v484 = vld [vmem:[%s463 + $0x30] sm:$0xf]
      %v485 = vld [vmem:[%s463 + $0x34] sm:$0xf]
      %v486 = vld [vmem:[%s463 + $0x38] sm:$0xf]
      %v487 = vld [vmem:[%s463 + $0x3c] sm:$0xf]
      %v488 = vld [vmem:[%s463 + $0x40] sm:$0xf]
      %v489 = vld [vmem:[%s463 + $0x44] sm:$0xf]
      %v490 = vld [vmem:[%s463 + $0x48] sm:$0xf]
      %v491 = vld [vmem:[%s463 + $0x4c] sm:$0xf]
      %v492 = vld [vmem:[%s463 + $0x50] sm:$0xf]
      %v493 = vld [vmem:[%s463 + $0x54] sm:$0xf]
      %v494 = vld [vmem:[%s463 + $0x58] sm:$0xf]
      %v495 = vld [vmem:[%s463 + $0x5c] sm:$0xf]
      %v496 = vld [vmem:[%s463 + $0x60] sm:$0xf]
      %v497 = vld [vmem:[%s463 + $0x64] sm:$0xf]
      %v498 = vld [vmem:[%s463 + $0x68] sm:$0xf]
      %v499 = vld [vmem:[%s463 + $0x6c] sm:$0xf]
      %v500 = vld [vmem:[%s463 + $0x70] sm:$0xf]
      %v501 = vld [vmem:[%s463 + $0x74] sm:$0xf]
      %v502 = vld [vmem:[%s463 + $0x78] sm:$0xf]
      %v503 = vld [vmem:[%s463 + $0x7c] sm:$0xf]
      %v504 = vunpack.c.l.bf16 %v472
      %v505 = vunpack.c.l.bf16 %v473
      %v506 = vunpack.c.l.bf16 %v474
      %v507 = vunpack.c.l.bf16 %v475
      %v508 = vunpack.c.l.bf16 %v476
      %v509 = vunpack.c.l.bf16 %v477
      %v510 = vunpack.c.l.bf16 %v478
      %v511 = vunpack.c.l.bf16 %v479
      %v512 = vunpack.c.l.bf16 %v480
      %v513 = vunpack.c.l.bf16 %v481
      %v514 = vunpack.c.l.bf16 %v482
      %v515 = vunpack.c.l.bf16 %v483
      %v516 = vunpack.c.l.bf16 %v484
      %v517 = vunpack.c.l.bf16 %v485
      %v518 = vunpack.c.l.bf16 %v486
      %v519 = vunpack.c.l.bf16 %v487
      %v520 = vunpack.c.l.bf16 %v488
      %v521 = vunpack.c.l.bf16 %v489
      %v522 = vunpack.c.l.bf16 %v490
      %v523 = vunpack.c.l.bf16 %v491
      %v524 = vunpack.c.l.bf16 %v492
      %v525 = vunpack.c.l.bf16 %v493
      %v526 = vunpack.c.l.bf16 %v494
      %v527 = vunpack.c.l.bf16 %v495
      %v528 = vunpack.c.l.bf16 %v496
      %v529 = vunpack.c.l.bf16 %v497
      %v530 = vunpack.c.l.bf16 %v498
      %v531 = vunpack.c.l.bf16 %v499
      %v532 = vunpack.c.l.bf16 %v500
      %v533 = vunpack.c.l.bf16 %v501
      %v534 = vunpack.c.l.bf16 %v502
      %v535 = vunpack.c.l.bf16 %v503
      %v536 = vld [vmem:[%s13] sm:$0xff]
      %v537 = vld [vmem:[%s13 + $0x8] sm:$0xff]
      %v538 = vld [vmem:[%s1] sm:$0xf]
      %v539 = vld [vmem:[%s1 + $0x4] sm:$0xf]
      %v540 = vld [vmem:[%s1 + $0x8] sm:$0xf]
      %v541 = vld [vmem:[%s1 + $0xc] sm:$0xf]
      %v542 = vlaneseq
      %v543 = vshrl.u32 %v542, 7
      %v544 = vsub.s32 0, %v543
      %v545 = vrot.slane %v536, %v544
      %v578 = vunpack.c.l.b16 %v472
      %v579 = vunpack.c.l.b16 %v473
      %v580 = vunpack.c.l.b16 %v474
      %v581 = vunpack.c.l.b16 %v475
      %v582 = vunpack.c.l.b16 %v476
      %v583 = vunpack.c.l.b16 %v477
      %v584 = vunpack.c.l.b16 %v478
      %v585 = vunpack.c.l.b16 %v479
      %v586 = vunpack.c.l.b16 %v480
      %v587 = vunpack.c.l.b16 %v481
      %v588 = vunpack.c.l.b16 %v482
      %v589 = vunpack.c.l.b16 %v483
      %v590 = vunpack.c.l.b16 %v484
      %v591 = vunpack.c.l.b16 %v485
      %v592 = vunpack.c.l.b16 %v486
      %v593 = vunpack.c.l.b16 %v487
      %v594 = vunpack.c.l.b16 %v488
      %v595 = vunpack.c.l.b16 %v489
      %v596 = vunpack.c.l.b16 %v490
      %v597 = vunpack.c.l.b16 %v491
      %v598 = vunpack.c.l.b16 %v492
      %v599 = vunpack.c.l.b16 %v493
      %v600 = vunpack.c.l.b16 %v494
      %v601 = vunpack.c.l.b16 %v495
      %v602 = vunpack.c.l.b16 %v496
      %v603 = vunpack.c.l.b16 %v497
      %v604 = vunpack.c.l.b16 %v498
      %v605 = vunpack.c.l.b16 %v499
      %v606 = vunpack.c.l.b16 %v500
      %v607 = vunpack.c.l.b16 %v501
      %v608 = vunpack.c.l.b16 %v502
      %v609 = vunpack.c.l.b16 %v503
      %v610 = vpack.c.b16 %v579, %v578
      %v611 = vpack.c.b16 %v581, %v580
      %v612 = vpack.c.b16 %v583, %v582
      %v613 = vpack.c.b16 %v585, %v584
      %v614 = vpack.c.b16 %v587, %v586
      %v615 = vpack.c.b16 %v589, %v588
      %v616 = vpack.c.b16 %v591, %v590
      %v617 = vpack.c.b16 %v593, %v592
      %v618 = vpack.c.b16 %v595, %v594
      %v619 = vpack.c.b16 %v597, %v596
      %v620 = vpack.c.b16 %v599, %v598
      %v621 = vpack.c.b16 %v601, %v600
      %v622 = vpack.c.b16 %v603, %v602
      %v623 = vpack.c.b16 %v605, %v604
      %v624 = vpack.c.b16 %v607, %v606
      %v625 = vpack.c.b16 %v609, %v608
      %v630 = vunpack.c.l.b16 %v538
      %v631 = vunpack.c.l.b16 %v539
      %v632 = vunpack.c.l.b16 %v540
      %v633 = vunpack.c.l.b16 %v541
      %v634 = vpack.c.b16 %v631, %v630
      %v635 = vpack.c.b16 %v633, %v632
      %vm638 = vcmask 261120
      %v640 = vsel %vm638, %v610, 0
      %v643 = vsel %vm638, %v611, 0
      %v646 = vsel %vm638, %v612, 0
      %v649 = vsel %vm638, %v613, 0
      %v652 = vsel %vm638, %v614, 0
      %v655 = vsel %vm638, %v615, 0
      %v658 = vsel %vm638, %v616, 0
      %v661 = vsel %vm638, %v617, 0
      %v664 = vsel %vm638, %v618, 0
      %v667 = vsel %vm638, %v619, 0
      %v670 = vsel %vm638, %v620, 0
      %v673 = vsel %vm638, %v621, 0
      %v676 = vsel %vm638, %v622, 0
      %v679 = vsel %vm638, %v623, 0
      %v682 = vsel %vm638, %v624, 0
      %v685 = vsel %vm638, %v625, 0
      %687 = vmatprep.subr.bf16.mxu0 0
      %688 = vmatpush1.bf16.msra.mxu0 %v634
      %689 = vmatprep.subr.bf16.mxu0 0
      %690 = vmatpush1.bf16.msra.mxu0 %v635
      %691 = vmatprep.subr.bf16.mxu0 0
      %692 = vmatpush1.bf16.msra.mxu0 0
      %693 = vmatprep.subr.bf16.mxu0 0
      %694 = vmatpush1.bf16.msra.mxu0 0
      %695 = vmatprep.subr.bf16.mxu0 0
      %696 = vmatpush1.bf16.msra.mxu0 0
      %697 = vmatprep.subr.bf16.mxu0 0
      %698 = vmatpush1.bf16.msra.mxu0 0
      %699 = vmatprep.subr.bf16.mxu0 0
      %700 = vmatpush1.bf16.msra.mxu0 0
      %701 = vmatprep.subr.bf16.mxu0 0
      %702 = vmatpush1.bf16.msra.mxu0 0
      %703 = vmatprep.subr.bf16.mxu0 0
      %704 = vmatpush1.bf16.msra.mxu0 0
      %705 = vmatprep.subr.bf16.mxu0 0
      %706 = vmatpush1.bf16.msra.mxu0 0
      %707 = vmatprep.subr.bf16.mxu0 0
      %708 = vmatpush1.bf16.msra.mxu0 0
      %709 = vmatprep.subr.bf16.mxu0 0
      %710 = vmatpush1.bf16.msra.mxu0 0
      %711 = vmatprep.subr.bf16.mxu0 0
      %712 = vmatpush1.bf16.msra.mxu0 0
      %713 = vmatprep.subr.bf16.mxu0 0
      %714 = vmatpush1.bf16.msra.mxu0 0
      %715 = vmatprep.subr.bf16.mxu0 0
      %716 = vmatpush1.bf16.msra.mxu0 0
      %717 = vmatprep.subr.bf16.mxu0 0
      %718 = vmatpush1.bf16.msra.mxu0 0
      %719 = vmatprep.mubr.bf16.mxu0 0
      %720 = vmatmul.mubr.bf16.gmra.mrb[0].mxu0 %v640
      %v721 = vpop.f32.mrb[0].mxu0
      %v722 = vadd.f32 %v545, %v721
      %v723 = vpop.f32.mrb[0].mxu0
      %v724 = vpop.f32.mrb[0].mxu0
      %v725 = vadd.f32 %v545, %v724
      %v726 = vpop.f32.mrb[0].mxu0
      %727 = vmatprep.mubr.bf16.mxu0 0
      %728 = vmatmul.mubr.bf16.gmra.mrb[0].mxu0 %v643
      %v729 = vpop.f32.mrb[0].mxu0
      %v730 = vadd.f32 %v545, %v729
      %v731 = vpop.f32.mrb[0].mxu0
      %v732 = vpop.f32.mrb[0].mxu0
      %v733 = vadd.f32 %v545, %v732
      %v734 = vpop.f32.mrb[0].mxu0
      %735 = vmatprep.mubr.bf16.mxu0 0
      %736 = vmatmul.mubr.bf16.gmra.mrb[0].mxu0 %v646
      %v737 = vpop.f32.mrb[0].mxu0
      %v738 = vadd.f32 %v545, %v737
      %v739 = vpop.f32.mrb[0].mxu0
      %v740 = vpop.f32.mrb[0].mxu0
      %v741 = vadd.f32 %v545, %v740
      %v742 = vpop.f32.mrb[0].mxu0
      %743 = vmatprep.mubr.bf16.mxu0 0
      %744 = vmatmul.mubr.bf16.gmra.mrb[0].mxu0 %v649
      %v745 = vpop.f32.mrb[0].mxu0
      %v746 = vadd.f32 %v545, %v745
      %v747 = vpop.f32.mrb[0].mxu0
      %v748 = vpop.f32.mrb[0].mxu0
      %v749 = vadd.f32 %v545, %v748
      %v750 = vpop.f32.mrb[0].mxu0
      %751 = vmatprep.mubr.bf16.mxu0 0
      %752 = vmatmul.mubr.bf16.gmra.mrb[0].mxu0 %v652
      %v753 = vpop.f32.mrb[0].mxu0
      %v754 = vadd.f32 %v545, %v753
      %v755 = vpop.f32.mrb[0].mxu0
      %v756 = vpop.f32.mrb[0].mxu0
      %v757 = vadd.f32 %v545, %v756
      %v758 = vpop.f32.mrb[0].mxu0
      %759 = vmatprep.mubr.bf16.mxu0 0
      %760 = vmatmul.mubr.bf16.gmra.mrb[0].mxu0 %v655
      %v761 = vpop.f32.mrb[0].mxu0
      %v762 = vadd.f32 %v545, %v761
      %v763 = vpop.f32.mrb[0].mxu0
      %v764 = vpop.f32.mrb[0].mxu0
      %v765 = vadd.f32 %v545, %v764
      %v766 = vpop.f32.mrb[0].mxu0
      %767 = vmatprep.mubr.bf16.mxu0 0
      %768 = vmatmul.mubr.bf16.gmra.mrb[0].mxu0 %v658
      %v769 = vpop.f32.mrb[0].mxu0
      %v770 = vadd.f32 %v545, %v769
      %v771 = vpop.f32.mrb[0].mxu0
      %v772 = vpop.f32.mrb[0].mxu0
      %v773 = vadd.f32 %v545, %v772
      %v774 = vpop.f32.mrb[0].mxu0
      %775 = vmatprep.mubr.bf16.mxu0 0
      %776 = vmatmul.mubr.bf16.gmra.mrb[0].mxu0 %v661
      %v777 = vpop.f32.mrb[0].mxu0
      %v778 = vadd.f32 %v545, %v777
      %v779 = vpop.f32.mrb[0].mxu0
      %v780 = vpop.f32.mrb[0].mxu0
      %v781 = vadd.f32 %v545, %v780
      %v782 = vpop.f32.mrb[0].mxu0
      %783 = vmatprep.mubr.bf16.mxu0 0
      %784 = vmatmul.mubr.bf16.gmra.mrb[0].mxu0 %v664
      %v785 = vpop.f32.mrb[0].mxu0
      %v786 = vadd.f32 %v545, %v785
      %v787 = vpop.f32.mrb[0].mxu0
      %v788 = vpop.f32.mrb[0].mxu0
      %v789 = vadd.f32 %v545, %v788
      %v790 = vpop.f32.mrb[0].mxu0
      %791 = vmatprep.mubr.bf16.mxu0 0
      %792 = vmatmul.mubr.bf16.gmra.mrb[0].mxu0 %v667
      %v793 = vpop.f32.mrb[0].mxu0
      %v794 = vadd.f32 %v545, %v793
      %v795 = vpop.f32.mrb[0].mxu0
      %v796 = vpop.f32.mrb[0].mxu0
      %v797 = vadd.f32 %v545, %v796
      %v798 = vpop.f32.mrb[0].mxu0
      %799 = vmatprep.mubr.bf16.mxu0 0
      %800 = vmatmul.mubr.bf16.gmra.mrb[0].mxu0 %v670
      %v801 = vpop.f32.mrb[0].mxu0
      %v802 = vadd.f32 %v545, %v801
      %v803 = vpop.f32.mrb[0].mxu0
      %v804 = vpop.f32.mrb[0].mxu0
      %v805 = vadd.f32 %v545, %v804
      %v806 = vpop.f32.mrb[0].mxu0
      %807 = vmatprep.mubr.bf16.mxu0 0
      %808 = vmatmul.mubr.bf16.gmra.mrb[0].mxu0 %v673
      %v809 = vpop.f32.mrb[0].mxu0
      %v810 = vadd.f32 %v545, %v809
      %v811 = vpop.f32.mrb[0].mxu0
      %v812 = vpop.f32.mrb[0].mxu0
      %v813 = vadd.f32 %v545, %v812
      %v814 = vpop.f32.mrb[0].mxu0
      %815 = vmatprep.mubr.bf16.mxu0 0
      %816 = vmatmul.mubr.bf16.gmra.mrb[0].mxu0 %v676
      %v817 = vpop.f32.mrb[0].mxu0
      %v818 = vadd.f32 %v545, %v817
      %v819 = vpop.f32.mrb[0].mxu0
      %v820 = vpop.f32.mrb[0].mxu0
      %v821 = vadd.f32 %v545, %v820
      %v822 = vpop.f32.mrb[0].mxu0
      %823 = vmatprep.mubr.bf16.mxu0 0
      %824 = vmatmul.mubr.bf16.gmra.mrb[0].mxu0 %v679
      %v825 = vpop.f32.mrb[0].mxu0
      %v826 = vadd.f32 %v545, %v825
      %v827 = vpop.f32.mrb[0].mxu0
      %v828 = vpop.f32.mrb[0].mxu0
      %v829 = vadd.f32 %v545, %v828
      %v830 = vpop.f32.mrb[0].mxu0
      %831 = vmatprep.mubr.bf16.mxu0 0
      %832 = vmatmul.mubr.bf16.gmra.mrb[0].mxu0 %v682
      %v833 = vpop.f32.mrb[0].mxu0
      %v834 = vadd.f32 %v545, %v833
      %v835 = vpop.f32.mrb[0].mxu0
      %v836 = vpop.f32.mrb[0].mxu0
      %v837 = vadd.f32 %v545, %v836
      %v838 = vpop.f32.mrb[0].mxu0
      %839 = vmatprep.mubr.bf16.mxu0 0
      %840 = vmatmul.mubr.bf16.gmra.mrb[0].mxu0 %v685
      %v841 = vpop.f32.mrb[0].mxu0
      %v842 = vadd.f32 %v545, %v841
      %v843 = vpop.f32.mrb[0].mxu0
      %v844 = vpop.f32.mrb[0].mxu0
      %v845 = vadd.f32 %v545, %v844
      %v846 = vpop.f32.mrb[0].mxu0
      %847 = vdwg.mxu0
      %v848 = vpack.c.bf16 %v725, %v722
      %v849 = vpack.c.bf16 %v733, %v730
      %v850 = vpack.c.bf16 %v741, %v738
      %v851 = vpack.c.bf16 %v749, %v746
      %v852 = vpack.c.bf16 %v757, %v754
      %v853 = vpack.c.bf16 %v765, %v762
      %v854 = vpack.c.bf16 %v773, %v770
      %v855 = vpack.c.bf16 %v781, %v778
      %v856 = vpack.c.bf16 %v789, %v786
      %v857 = vpack.c.bf16 %v797, %v794
      %v858 = vpack.c.bf16 %v805, %v802
      %v859 = vpack.c.bf16 %v813, %v810
      %v860 = vpack.c.bf16 %v821, %v818
      %v861 = vpack.c.bf16 %v829, %v826
      %v862 = vpack.c.bf16 %v837, %v834
      %v863 = vpack.c.bf16 %v845, %v842
      %v864 = vld [vmem:[%s2] sm:$0xf]
      %v865 = vld [vmem:[%s2 + $0x4] sm:$0xf]
      %v866 = vld [vmem:[%s2 + $0x8] sm:$0xf]
      %v867 = vld [vmem:[%s2 + $0xc] sm:$0xf]
      %v868 = vlaneseq
      %v869 = vshrl.u32 %v868, 7
      %v870 = vsub.s32 1, %v869
      %v871 = vrot.slane %v536, %v870
      %v876 = vunpack.c.l.b16 %v864
      %v877 = vunpack.c.l.b16 %v865
      %v878 = vunpack.c.l.b16 %v866
      %v879 = vunpack.c.l.b16 %v867
      %v880 = vpack.c.b16 %v877, %v876
      %v881 = vpack.c.b16 %v879, %v878
      %884 = vmatprep.subr.bf16.mxu0 0
      %885 = vmatpush1.bf16.msra.mxu0 %v880
      %886 = vmatprep.subr.bf16.mxu0 0
      %887 = vmatpush1.bf16.msra.mxu0 %v881
      %888 = vmatprep.subr.bf16.mxu0 0
      %889 = vmatpush1.bf16.msra.mxu0 0
      %890 = vmatprep.subr.bf16.mxu0 0
      %891 = vmatpush1.bf16.msra.mxu0 0
      %892 = vmatprep.subr.bf16.mxu0 0
      %893 = vmatpush1.bf16.msra.mxu0 0
      %894 = vmatprep.subr.bf16.mxu0 0
      %895 = vmatpush1.bf16.msra.mxu0 0
      %896 = vmatprep.subr.bf16.mxu0 0
      %897 = vmatpush1.bf16.msra.mxu0 0
      %898 = vmatprep.subr.bf16.mxu0 0
      %899 = vmatpush1.bf16.msra.mxu0 0
      %900 = vmatprep.subr.bf16.mxu0 0
      %901 = vmatpush1.bf16.msra.mxu0 0
      %902 = vmatprep.subr.bf16.mxu0 0
      %903 = vmatpush1.bf16.msra.mxu0 0
      %904 = vmatprep.subr.bf16.mxu0 0
      %905 = vmatpush1.bf16.msra.mxu0 0
      %906 = vmatprep.subr.bf16.mxu0 0
      %907 = vmatpush1.bf16.msra.mxu0 0
      %908 = vmatprep.subr.bf16.mxu0 0
      %909 = vmatpush1.bf16.msra.mxu0 0
      %910 = vmatprep.subr.bf16.mxu0 0
      %911 = vmatpush1.bf16.msra.mxu0 0
      %912 = vmatprep.subr.bf16.mxu0 0
      %913 = vmatpush1.bf16.msra.mxu0 0
      %914 = vmatprep.subr.bf16.mxu0 0
      %915 = vmatpush1.bf16.msra.mxu0 0
      %916 = vmatprep.mubr.bf16.mxu0 0
      %917 = vmatmul.mubr.bf16.gmra.mrb[0].mxu0 %v640
      %v918 = vpop.f32.mrb[0].mxu0
      %v919 = vadd.f32 %v871, %v918
      %v920 = vpop.f32.mrb[0].mxu0
      %v921 = vpop.f32.mrb[0].mxu0
      %v922 = vadd.f32 %v871, %v921
      %v923 = vpop.f32.mrb[0].mxu0
      %924 = vmatprep.mubr.bf16.mxu0 0
      %925 = vmatmul.mubr.bf16.gmra.mrb[0].mxu0 %v643
      %v926 = vpop.f32.mrb[0].mxu0
      %v927 = vadd.f32 %v871, %v926
      %v928 = vpop.f32.mrb[0].mxu0
      %v929 = vpop.f32.mrb[0].mxu0
      %v930 = vadd.f32 %v871, %v929
      %v931 = vpop.f32.mrb[0].mxu0
      %932 = vmatprep.mubr.bf16.mxu0 0
      %933 = vmatmul.mubr.bf16.gmra.mrb[0].mxu0 %v646
      %v934 = vpop.f32.mrb[0].mxu0
      %v935 = vadd.f32 %v871, %v934
      %v936 = vpop.f32.mrb[0].mxu0
      %v937 = vpop.f32.mrb[0].mxu0
      %v938 = vadd.f32 %v871, %v937
      %v939 = vpop.f32.mrb[0].mxu0
      %940 = vmatprep.mubr.bf16.mxu0 0
      %941 = vmatmul.mubr.bf16.gmra.mrb[0].mxu0 %v649
      %v942 = vpop.f32.mrb[0].mxu0
      %v943 = vadd.f32 %v871, %v942
      %v944 = vpop.f32.mrb[0].mxu0
      %v945 = vpop.f32.mrb[0].mxu0
      %v946 = vadd.f32 %v871, %v945
      %v947 = vpop.f32.mrb[0].mxu0
      %948 = vmatprep.mubr.bf16.mxu0 0
      %949 = vmatmul.mubr.bf16.gmra.mrb[0].mxu0 %v652
      %v950 = vpop.f32.mrb[0].mxu0
      %v951 = vadd.f32 %v871, %v950
      %v952 = vpop.f32.mrb[0].mxu0
      %v953 = vpop.f32.mrb[0].mxu0
      %v954 = vadd.f32 %v871, %v953
      %v955 = vpop.f32.mrb[0].mxu0
      %956 = vmatprep.mubr.bf16.mxu0 0
      %957 = vmatmul.mubr.bf16.gmra.mrb[0].mxu0 %v655
      %v958 = vpop.f32.mrb[0].mxu0
      %v959 = vadd.f32 %v871, %v958
      %v960 = vpop.f32.mrb[0].mxu0
      %v961 = vpop.f32.mrb[0].mxu0
      %v962 = vadd.f32 %v871, %v961
      %v963 = vpop.f32.mrb[0].mxu0
      %964 = vmatprep.mubr.bf16.mxu0 0
      %965 = vmatmul.mubr.bf16.gmra.mrb[0].mxu0 %v658
      %v966 = vpop.f32.mrb[0].mxu0
      %v967 = vadd.f32 %v871, %v966
      %v968 = vpop.f32.mrb[0].mxu0
      %v969 = vpop.f32.mrb[0].mxu0
      %v970 = vadd.f32 %v871, %v969
      %v971 = vpop.f32.mrb[0].mxu0
      %972 = vmatprep.mubr.bf16.mxu0 0
      %973 = vmatmul.mubr.bf16.gmra.mrb[0].mxu0 %v661
      %v974 = vpop.f32.mrb[0].mxu0
      %v975 = vadd.f32 %v871, %v974
      %v976 = vpop.f32.mrb[0].mxu0
      %v977 = vpop.f32.mrb[0].mxu0
      %v978 = vadd.f32 %v871, %v977
      %v979 = vpop.f32.mrb[0].mxu0
      %980 = vmatprep.mubr.bf16.mxu0 0
      %981 = vmatmul.mubr.bf16.gmra.mrb[0].mxu0 %v664
      %v982 = vpop.f32.mrb[0].mxu0
      %v983 = vadd.f32 %v871, %v982
      %v984 = vpop.f32.mrb[0].mxu0
      %v985 = vpop.f32.mrb[0].mxu0
      %v986 = vadd.f32 %v871, %v985
      %v987 = vpop.f32.mrb[0].mxu0
      %988 = vmatprep.mubr.bf16.mxu0 0
      %989 = vmatmul.mubr.bf16.gmra.mrb[0].mxu0 %v667
      %v990 = vpop.f32.mrb[0].mxu0
      %v991 = vadd.f32 %v871, %v990
      %v992 = vpop.f32.mrb[0].mxu0
      %v993 = vpop.f32.mrb[0].mxu0
      %v994 = vadd.f32 %v871, %v993
      %v995 = vpop.f32.mrb[0].mxu0
      %996 = vmatprep.mubr.bf16.mxu0 0
      %997 = vmatmul.mubr.bf16.gmra.mrb[0].mxu0 %v670
      %v998 = vpop.f32.mrb[0].mxu0
      %v999 = vadd.f32 %v871, %v998
      %v1000 = vpop.f32.mrb[0].mxu0
      %v1001 = vpop.f32.mrb[0].mxu0
      %v1002 = vadd.f32 %v871, %v1001
      %v1003 = vpop.f32.mrb[0].mxu0
      %1004 = vmatprep.mubr.bf16.mxu0 0
      %1005 = vmatmul.mubr.bf16.gmra.mrb[0].mxu0 %v673
      %v1006 = vpop.f32.mrb[0].mxu0
      %v1007 = vadd.f32 %v871, %v1006
      %v1008 = vpop.f32.mrb[0].mxu0
      %v1009 = vpop.f32.mrb[0].mxu0
      %v1010 = vadd.f32 %v871, %v1009
      %v1011 = vpop.f32.mrb[0].mxu0
      %1012 = vmatprep.mubr.bf16.mxu0 0
      %1013 = vmatmul.mubr.bf16.gmra.mrb[0].mxu0 %v676
      %v1014 = vpop.f32.mrb[0].mxu0
      %v1015 = vadd.f32 %v871, %v1014
      %v1016 = vpop.f32.mrb[0].mxu0
      %v1017 = vpop.f32.mrb[0].mxu0
      %v1018 = vadd.f32 %v871, %v1017
      %v1019 = vpop.f32.mrb[0].mxu0
      %1020 = vmatprep.mubr.bf16.mxu0 0
      %1021 = vmatmul.mubr.bf16.gmra.mrb[0].mxu0 %v679
      %v1022 = vpop.f32.mrb[0].mxu0
      %v1023 = vadd.f32 %v871, %v1022
      %v1024 = vpop.f32.mrb[0].mxu0
      %v1025 = vpop.f32.mrb[0].mxu0
      %v1026 = vadd.f32 %v871, %v1025
      %v1027 = vpop.f32.mrb[0].mxu0
      %1028 = vmatprep.mubr.bf16.mxu0 0
      %1029 = vmatmul.mubr.bf16.gmra.mrb[0].mxu0 %v682
      %v1030 = vpop.f32.mrb[0].mxu0
      %v1031 = vadd.f32 %v871, %v1030
      %v1032 = vpop.f32.mrb[0].mxu0
      %v1033 = vpop.f32.mrb[0].mxu0
      %v1034 = vadd.f32 %v871, %v1033
      %v1035 = vpop.f32.mrb[0].mxu0
      %1036 = vmatprep.mubr.bf16.mxu0 0
      %1037 = vmatmul.mubr.bf16.gmra.mrb[0].mxu0 %v685
      %v1038 = vpop.f32.mrb[0].mxu0
      %v1039 = vadd.f32 %v871, %v1038
      %v1040 = vpop.f32.mrb[0].mxu0
      %v1041 = vpop.f32.mrb[0].mxu0
      %v1042 = vadd.f32 %v871, %v1041
      %v1043 = vpop.f32.mrb[0].mxu0
      %1044 = vdwg.mxu0
      %v1045 = vpack.c.bf16 %v922, %v919
      %v1046 = vpack.c.bf16 %v930, %v927
      %v1047 = vpack.c.bf16 %v938, %v935
      %v1048 = vpack.c.bf16 %v946, %v943
      %v1049 = vpack.c.bf16 %v954, %v951
      %v1050 = vpack.c.bf16 %v962, %v959
      %v1051 = vpack.c.bf16 %v970, %v967
      %v1052 = vpack.c.bf16 %v978, %v975
      %v1053 = vpack.c.bf16 %v986, %v983
      %v1054 = vpack.c.bf16 %v994, %v991
      %v1055 = vpack.c.bf16 %v1002, %v999
      %v1056 = vpack.c.bf16 %v1010, %v1007
      %v1057 = vpack.c.bf16 %v1018, %v1015
      %v1058 = vpack.c.bf16 %v1026, %v1023
      %v1059 = vpack.c.bf16 %v1034, %v1031
      %v1060 = vpack.c.bf16 %v1042, %v1039
      %v1061 = vld [vmem:[%s3] sm:$0xf]
      %v1062 = vld [vmem:[%s3 + $0x4] sm:$0xf]
      %v1063 = vld [vmem:[%s3 + $0x8] sm:$0xf]
      %v1064 = vld [vmem:[%s3 + $0xc] sm:$0xf]
      %v1065 = vlaneseq
      %v1066 = vshrl.u32 %v1065, 7
      %v1067 = vsub.s32 2, %v1066
      %v1068 = vrot.slane %v536, %v1067
      %v1073 = vunpack.c.l.b16 %v1061
      %v1074 = vunpack.c.l.b16 %v1062
      %v1075 = vunpack.c.l.b16 %v1063
      %v1076 = vunpack.c.l.b16 %v1064
      %v1077 = vpack.c.b16 %v1074, %v1073
      %v1078 = vpack.c.b16 %v1076, %v1075
      %1081 = vmatprep.subr.bf16.mxu0 0
      %1082 = vmatpush1.bf16.msra.mxu0 %v1077
      %1083 = vmatprep.subr.bf16.mxu0 0
      %1084 = vmatpush1.bf16.msra.mxu0 %v1078
      %1085 = vmatprep.subr.bf16.mxu0 0
      %1086 = vmatpush1.bf16.msra.mxu0 0
      %1087 = vmatprep.subr.bf16.mxu0 0
      %1088 = vmatpush1.bf16.msra.mxu0 0
      %1089 = vmatprep.subr.bf16.mxu0 0
      %1090 = vmatpush1.bf16.msra.mxu0 0
      %1091 = vmatprep.subr.bf16.mxu0 0
      %1092 = vmatpush1.bf16.msra.mxu0 0
      %1093 = vmatprep.subr.bf16.mxu0 0
      %1094 = vmatpush1.bf16.msra.mxu0 0
      %1095 = vmatprep.subr.bf16.mxu0 0
      %1096 = vmatpush1.bf16.msra.mxu0 0
      %1097 = vmatprep.subr.bf16.mxu0 0
      %1098 = vmatpush1.bf16.msra.mxu0 0
      %1099 = vmatprep.subr.bf16.mxu0 0
      %1100 = vmatpush1.bf16.msra.mxu0 0
      %1101 = vmatprep.subr.bf16.mxu0 0
      %1102 = vmatpush1.bf16.msra.mxu0 0
      %1103 = vmatprep.subr.bf16.mxu0 0
      %1104 = vmatpush1.bf16.msra.mxu0 0
      %1105 = vmatprep.subr.bf16.mxu0 0
      %1106 = vmatpush1.bf16.msra.mxu0 0
      %1107 = vmatprep.subr.bf16.mxu0 0
      %1108 = vmatpush1.bf16.msra.mxu0 0
      %1109 = vmatprep.subr.bf16.mxu0 0
      %1110 = vmatpush1.bf16.msra.mxu0 0
      %1111 = vmatprep.subr.bf16.mxu0 0
      %1112 = vmatpush1.bf16.msra.mxu0 0
      %1113 = vmatprep.mubr.bf16.mxu0 0
      %1114 = vmatmul.mubr.bf16.gmra.mrb[0].mxu0 %v640
      %v1115 = vpop.f32.mrb[0].mxu0
      %v1116 = vadd.f32 %v1068, %v1115
      %v1117 = vpop.f32.mrb[0].mxu0
      %v1118 = vpop.f32.mrb[0].mxu0
      %v1119 = vadd.f32 %v1068, %v1118
      %v1120 = vpop.f32.mrb[0].mxu0
      %1121 = vmatprep.mubr.bf16.mxu0 0
      %1122 = vmatmul.mubr.bf16.gmra.mrb[0].mxu0 %v643
      %v1123 = vpop.f32.mrb[0].mxu0
      %v1124 = vadd.f32 %v1068, %v1123
      %v1125 = vpop.f32.mrb[0].mxu0
      %v1126 = vpop.f32.mrb[0].mxu0
      %v1127 = vadd.f32 %v1068, %v1126
      %v1128 = vpop.f32.mrb[0].mxu0
      %1129 = vmatprep.mubr.bf16.mxu0 0
      %1130 = vmatmul.mubr.bf16.gmra.mrb[0].mxu0 %v646
      %v1131 = vpop.f32.mrb[0].mxu0
      %v1132 = vadd.f32 %v1068, %v1131
      %v1133 = vpop.f32.mrb[0].mxu0
      %v1134 = vpop.f32.mrb[0].mxu0
      %v1135 = vadd.f32 %v1068, %v1134
      %v1136 = vpop.f32.mrb[0].mxu0
      %1137 = vmatprep.mubr.bf16.mxu0 0
      %1138 = vmatmul.mubr.bf16.gmra.mrb[0].mxu0 %v649
      %v1139 = vpop.f32.mrb[0].mxu0
      %v1140 = vadd.f32 %v1068, %v1139
      %v1141 = vpop.f32.mrb[0].mxu0
      %v1142 = vpop.f32.mrb[0].mxu0
      %v1143 = vadd.f32 %v1068, %v1142
      %v1144 = vpop.f32.mrb[0].mxu0
      %1145 = vmatprep.mubr.bf16.mxu0 0
      %1146 = vmatmul.mubr.bf16.gmra.mrb[0].mxu0 %v652
      %v1147 = vpop.f32.mrb[0].mxu0
      %v1148 = vadd.f32 %v1068, %v1147
      %v1149 = vpop.f32.mrb[0].mxu0
      %v1150 = vpop.f32.mrb[0].mxu0
      %v1151 = vadd.f32 %v1068, %v1150
      %v1152 = vpop.f32.mrb[0].mxu0
      %1153 = vmatprep.mubr.bf16.mxu0 0
      %1154 = vmatmul.mubr.bf16.gmra.mrb[0].mxu0 %v655
      %v1155 = vpop.f32.mrb[0].mxu0
      %v1156 = vadd.f32 %v1068, %v1155
      %v1157 = vpop.f32.mrb[0].mxu0
      %v1158 = vpop.f32.mrb[0].mxu0
      %v1159 = vadd.f32 %v1068, %v1158
      %v1160 = vpop.f32.mrb[0].mxu0
      %1161 = vmatprep.mubr.bf16.mxu0 0
      %1162 = vmatmul.mubr.bf16.gmra.mrb[0].mxu0 %v658
      %v1163 = vpop.f32.mrb[0].mxu0
      %v1164 = vadd.f32 %v1068, %v1163
      %v1165 = vpop.f32.mrb[0].mxu0
      %v1166 = vpop.f32.mrb[0].mxu0
      %v1167 = vadd.f32 %v1068, %v1166
      %v1168 = vpop.f32.mrb[0].mxu0
      %1169 = vmatprep.mubr.bf16.mxu0 0
      %1170 = vmatmul.mubr.bf16.gmra.mrb[0].mxu0 %v661
      %v1171 = vpop.f32.mrb[0].mxu0
      %v1172 = vadd.f32 %v1068, %v1171
      %v1173 = vpop.f32.mrb[0].mxu0
      %v1174 = vpop.f32.mrb[0].mxu0
      %v1175 = vadd.f32 %v1068, %v1174
      %v1176 = vpop.f32.mrb[0].mxu0
      %1177 = vmatprep.mubr.bf16.mxu0 0
      %1178 = vmatmul.mubr.bf16.gmra.mrb[0].mxu0 %v664
      %v1179 = vpop.f32.mrb[0].mxu0
      %v1180 = vadd.f32 %v1068, %v1179
      %v1181 = vpop.f32.mrb[0].mxu0
      %v1182 = vpop.f32.mrb[0].mxu0
      %v1183 = vadd.f32 %v1068, %v1182
      %v1184 = vpop.f32.mrb[0].mxu0
      %1185 = vmatprep.mubr.bf16.mxu0 0
      %1186 = vmatmul.mubr.bf16.gmra.mrb[0].mxu0 %v667
      %v1187 = vpop.f32.mrb[0].mxu0
      %v1188 = vadd.f32 %v1068, %v1187
      %v1189 = vpop.f32.mrb[0].mxu0
      %v1190 = vpop.f32.mrb[0].mxu0
      %v1191 = vadd.f32 %v1068, %v1190
      %v1192 = vpop.f32.mrb[0].mxu0
      %1193 = vmatprep.mubr.bf16.mxu0 0
      %1194 = vmatmul.mubr.bf16.gmra.mrb[0].mxu0 %v670
      %v1195 = vpop.f32.mrb[0].mxu0
      %v1196 = vadd.f32 %v1068, %v1195
      %v1197 = vpop.f32.mrb[0].mxu0
      %v1198 = vpop.f32.mrb[0].mxu0
      %v1199 = vadd.f32 %v1068, %v1198
      %v1200 = vpop.f32.mrb[0].mxu0
      %1201 = vmatprep.mubr.bf16.mxu0 0
      %1202 = vmatmul.mubr.bf16.gmra.mrb[0].mxu0 %v673
      %v1203 = vpop.f32.mrb[0].mxu0
      %v1204 = vadd.f32 %v1068, %v1203
      %v1205 = vpop.f32.mrb[0].mxu0
      %v1206 = vpop.f32.mrb[0].mxu0
      %v1207 = vadd.f32 %v1068, %v1206
      %v1208 = vpop.f32.mrb[0].mxu0
      %1209 = vmatprep.mubr.bf16.mxu0 0
      %1210 = vmatmul.mubr.bf16.gmra.mrb[0].mxu0 %v676
      %v1211 = vpop.f32.mrb[0].mxu0
      %v1212 = vadd.f32 %v1068, %v1211
      %v1213 = vpop.f32.mrb[0].mxu0
      %v1214 = vpop.f32.mrb[0].mxu0
      %v1215 = vadd.f32 %v1068, %v1214
      %v1216 = vpop.f32.mrb[0].mxu0
      %1217 = vmatprep.mubr.bf16.mxu0 0
      %1218 = vmatmul.mubr.bf16.gmra.mrb[0].mxu0 %v679
      %v1219 = vpop.f32.mrb[0].mxu0
      %v1220 = vadd.f32 %v1068, %v1219
      %v1221 = vpop.f32.mrb[0].mxu0
      %v1222 = vpop.f32.mrb[0].mxu0
      %v1223 = vadd.f32 %v1068, %v1222
      %v1224 = vpop.f32.mrb[0].mxu0
      %1225 = vmatprep.mubr.bf16.mxu0 0
      %1226 = vmatmul.mubr.bf16.gmra.mrb[0].mxu0 %v682
      %v1227 = vpop.f32.mrb[0].mxu0
      %v1228 = vadd.f32 %v1068, %v1227
      %v1229 = vpop.f32.mrb[0].mxu0
      %v1230 = vpop.f32.mrb[0].mxu0
      %v1231 = vadd.f32 %v1068, %v1230
      %v1232 = vpop.f32.mrb[0].mxu0
      %1233 = vmatprep.mubr.bf16.mxu0 0
      %1234 = vmatmul.mubr.bf16.gmra.mrb[0].mxu0 %v685
      %v1235 = vpop.f32.mrb[0].mxu0
      %v1236 = vadd.f32 %v1068, %v1235
      %v1237 = vpop.f32.mrb[0].mxu0
      %v1238 = vpop.f32.mrb[0].mxu0
      %v1239 = vadd.f32 %v1068, %v1238
      %v1240 = vpop.f32.mrb[0].mxu0
      %1241 = vdwg.mxu0
      %v1242 = vpack.c.bf16 %v1119, %v1116
      %v1243 = vpack.c.bf16 %v1127, %v1124
      %v1244 = vpack.c.bf16 %v1135, %v1132
      %v1245 = vpack.c.bf16 %v1143, %v1140
      %v1246 = vpack.c.bf16 %v1151, %v1148
      %v1247 = vpack.c.bf16 %v1159, %v1156
      %v1248 = vpack.c.bf16 %v1167, %v1164
      %v1249 = vpack.c.bf16 %v1175, %v1172
      %v1250 = vpack.c.bf16 %v1183, %v1180
      %v1251 = vpack.c.bf16 %v1191, %v1188
      %v1252 = vpack.c.bf16 %v1199, %v1196
      %v1253 = vpack.c.bf16 %v1207, %v1204
      %v1254 = vpack.c.bf16 %v1215, %v1212
      %v1255 = vpack.c.bf16 %v1223, %v1220
      %v1256 = vpack.c.bf16 %v1231, %v1228
      %v1257 = vpack.c.bf16 %v1239, %v1236
      %v1258 = vld [vmem:[%s9] sm:$0xff]
      %v1259 = vld [vmem:[%s9 + $0x8] sm:$0xff]
      %v1260 = vld [vmem:[%s9 + $0x10] sm:$0xff]
      %v1261 = vld [vmem:[%s9 + $0x18] sm:$0xff]
      %v1262 = vld [vmem:[%s9 + $0x20] sm:$0xff]
      %v1263 = vld [vmem:[%s9 + $0x28] sm:$0xff]
      %v1264 = vld [vmem:[%s9 + $0x30] sm:$0xff]
      %v1265 = vld [vmem:[%s9 + $0x38] sm:$0xff]
      %v1266 = vld [vmem:[%s9 + $0x40] sm:$0xff]
      %v1267 = vld [vmem:[%s9 + $0x48] sm:$0xff]
      %v1268 = vld [vmem:[%s9 + $0x50] sm:$0xff]
      %v1269 = vld [vmem:[%s9 + $0x58] sm:$0xff]
      %v1270 = vld [vmem:[%s9 + $0x60] sm:$0xff]
      %v1271 = vld [vmem:[%s9 + $0x68] sm:$0xff]
      %v1272 = vld [vmem:[%s9 + $0x70] sm:$0xff]
      %v1273 = vld [vmem:[%s9 + $0x78] sm:$0xff]
      %v1274 = vld [vmem:[%s9 + $0x80] sm:$0xff]
      %v1275 = vld [vmem:[%s9 + $0x88] sm:$0xff]
      %v1276 = vld [vmem:[%s9 + $0x90] sm:$0xff]
      %v1277 = vld [vmem:[%s9 + $0x98] sm:$0xff]
      %v1278 = vld [vmem:[%s9 + $0xa0] sm:$0xff]
      %v1279 = vld [vmem:[%s9 + $0xa8] sm:$0xff]
      %v1280 = vld [vmem:[%s9 + $0xb0] sm:$0xff]
      %v1281 = vld [vmem:[%s9 + $0xb8] sm:$0xff]
      %v1282 = vld [vmem:[%s9 + $0xc0] sm:$0xff]
      %v1283 = vld [vmem:[%s9 + $0xc8] sm:$0xff]
      %v1284 = vld [vmem:[%s9 + $0xd0] sm:$0xff]
      %v1285 = vld [vmem:[%s9 + $0xd8] sm:$0xff]
      %v1286 = vld [vmem:[%s9 + $0xe0] sm:$0xff]
      %v1287 = vld [vmem:[%s9 + $0xe8] sm:$0xff]
      %v1288 = vld [vmem:[%s9 + $0xf0] sm:$0xff]
      %v1289 = vld [vmem:[%s9 + $0xf8] sm:$0xff]
      %v1290 = vld [vmem:[%s9 + $0x100] sm:$0xff]
      %v1291 = vld [vmem:[%s9 + $0x108] sm:$0xff]
      %v1292 = vld [vmem:[%s9 + $0x110] sm:$0xff]
      %v1293 = vld [vmem:[%s9 + $0x118] sm:$0xff]
      %v1294 = vld [vmem:[%s9 + $0x120] sm:$0xff]
      %v1295 = vld [vmem:[%s9 + $0x128] sm:$0xff]
      %v1296 = vld [vmem:[%s9 + $0x130] sm:$0xff]
      %v1297 = vld [vmem:[%s9 + $0x138] sm:$0xff]
      %v1298 = vld [vmem:[%s9 + $0x140] sm:$0xff]
      %v1299 = vld [vmem:[%s9 + $0x148] sm:$0xff]
      %v1300 = vld [vmem:[%s9 + $0x150] sm:$0xff]
      %v1301 = vld [vmem:[%s9 + $0x158] sm:$0xff]
      %v1302 = vld [vmem:[%s9 + $0x160] sm:$0xff]
      %v1303 = vld [vmem:[%s9 + $0x168] sm:$0xff]
      %v1304 = vld [vmem:[%s9 + $0x170] sm:$0xff]
      %v1305 = vld [vmem:[%s9 + $0x178] sm:$0xff]
      %v1306 = vld [vmem:[%s9 + $0x180] sm:$0xff]
      %v1307 = vld [vmem:[%s9 + $0x188] sm:$0xff]
      %v1308 = vld [vmem:[%s9 + $0x190] sm:$0xff]
      %v1309 = vld [vmem:[%s9 + $0x198] sm:$0xff]
      %v1310 = vld [vmem:[%s9 + $0x1a0] sm:$0xff]
      %v1311 = vld [vmem:[%s9 + $0x1a8] sm:$0xff]
      %v1312 = vld [vmem:[%s9 + $0x1b0] sm:$0xff]
      %v1313 = vld [vmem:[%s9 + $0x1b8] sm:$0xff]
      %v1314 = vld [vmem:[%s9 + $0x1c0] sm:$0xff]
      %v1315 = vld [vmem:[%s9 + $0x1c8] sm:$0xff]
      %v1316 = vld [vmem:[%s9 + $0x1d0] sm:$0xff]
      %v1317 = vld [vmem:[%s9 + $0x1d8] sm:$0xff]
      %v1318 = vld [vmem:[%s9 + $0x1e0] sm:$0xff]
      %v1319 = vld [vmem:[%s9 + $0x1e8] sm:$0xff]
      %v1320 = vld [vmem:[%s9 + $0x1f0] sm:$0xff]
      %v1321 = vld [vmem:[%s9 + $0x1f8] sm:$0xff]
      %v1323 = vsel %vm638, %v848, 0
      %v1326 = vsel %vm638, %v849, 0
      %v1329 = vsel %vm638, %v850, 0
      %v1332 = vsel %vm638, %v851, 0
      %v1335 = vsel %vm638, %v852, 0
      %v1338 = vsel %vm638, %v853, 0
      %v1341 = vsel %vm638, %v854, 0
      %v1344 = vsel %vm638, %v855, 0
      %v1347 = vsel %vm638, %v856, 0
      %v1350 = vsel %vm638, %v857, 0
      %v1353 = vsel %vm638, %v858, 0
      %v1356 = vsel %vm638, %v859, 0
      %v1359 = vsel %vm638, %v860, 0
      %v1362 = vsel %vm638, %v861, 0
      %v1365 = vsel %vm638, %v862, 0
      %v1368 = vsel %vm638, %v863, 0
      %v1371 = vsel %vm638, %v1045, 0
      %v1374 = vsel %vm638, %v1046, 0
      %v1377 = vsel %vm638, %v1047, 0
      %v1380 = vsel %vm638, %v1048, 0
      %v1383 = vsel %vm638, %v1049, 0
      %v1386 = vsel %vm638, %v1050, 0
      %v1389 = vsel %vm638, %v1051, 0
      %v1392 = vsel %vm638, %v1052, 0
      %v1395 = vsel %vm638, %v1053, 0
      %v1398 = vsel %vm638, %v1054, 0
      %v1401 = vsel %vm638, %v1055, 0
      %v1404 = vsel %vm638, %v1056, 0
      %v1407 = vsel %vm638, %v1057, 0
      %v1410 = vsel %vm638, %v1058, 0
      %v1413 = vsel %vm638, %v1059, 0
      %v1416 = vsel %vm638, %v1060, 0
      %1418 = vmatprep.subr.bf16.mxu0 0
      %1419 = vmatpush1.bf16.xpose.msra.mxu0 %v1371
      %1420 = vmatprep.subr.bf16.mxu0 0
      %1421 = vmatpush1.bf16.xpose.msra.mxu0 %v1374
      %1422 = vmatprep.subr.bf16.mxu0 0
      %1423 = vmatpush1.bf16.xpose.msra.mxu0 %v1377
      %1424 = vmatprep.subr.bf16.mxu0 0
      %1425 = vmatpush1.bf16.xpose.msra.mxu0 %v1380
      %1426 = vmatprep.subr.bf16.mxu0 0
      %1427 = vmatpush1.bf16.xpose.msra.mxu0 %v1383
      %1428 = vmatprep.subr.bf16.mxu0 0
      %1429 = vmatpush1.bf16.xpose.msra.mxu0 %v1386
      %1430 = vmatprep.subr.bf16.mxu0 0
      %1431 = vmatpush1.bf16.xpose.msra.mxu0 %v1389
      %1432 = vmatprep.subr.bf16.mxu0 0
      %1433 = vmatpush1.bf16.xpose.msra.mxu0 %v1392
      %1434 = vmatprep.subr.bf16.mxu0 0
      %1435 = vmatpush1.bf16.xpose.msra.mxu0 %v1395
      %1436 = vmatprep.subr.bf16.mxu0 0
      %1437 = vmatpush1.bf16.xpose.msra.mxu0 %v1398
      %1438 = vmatprep.subr.bf16.mxu0 0
      %1439 = vmatpush1.bf16.xpose.msra.mxu0 %v1401
      %1440 = vmatprep.subr.bf16.mxu0 0
      %1441 = vmatpush1.bf16.xpose.msra.mxu0 %v1404
      %1442 = vmatprep.subr.bf16.mxu0 0
      %1443 = vmatpush1.bf16.xpose.msra.mxu0 %v1407
      %1444 = vmatprep.subr.bf16.mxu0 0
      %1445 = vmatpush1.bf16.xpose.msra.mxu0 %v1410
      %1446 = vmatprep.subr.bf16.mxu0 0
      %1447 = vmatpush1.bf16.xpose.msra.mxu0 %v1413
      %1448 = vmatprep.subr.bf16.mxu0 0
      %1449 = vmatpush1.bf16.xpose.msra.mxu0 %v1416
      %1450 = vmatprep.mubr.bf16.mxu0 0
      %1451 = vmatmul.mubr.bf16.gmra.mrb[0].mxu0 %v1323
      %v1452 = vpop.f32.mrb[0].mxu0
      %v1453 = vadd.f32 %v1258, %v1452
      %v1454 = vpop.f32.mrb[0].mxu0
      %v1455 = vadd.f32 %v1259, %v1454
      %v1456 = vpop.f32.mrb[0].mxu0
      %v1457 = vadd.f32 %v1260, %v1456
      %v1458 = vpop.f32.mrb[0].mxu0
      %v1459 = vadd.f32 %v1261, %v1458
      %1460 = vmatprep.mubr.bf16.mxu0 0
      %1461 = vmatmul.mubr.bf16.gmra.mrb[0].mxu0 %v1326
      %v1462 = vpop.f32.mrb[0].mxu0
      %v1463 = vadd.f32 %v1262, %v1462
      %v1464 = vpop.f32.mrb[0].mxu0
      %v1465 = vadd.f32 %v1263, %v1464
      %v1466 = vpop.f32.mrb[0].mxu0
      %v1467 = vadd.f32 %v1264, %v1466
      %v1468 = vpop.f32.mrb[0].mxu0
      %v1469 = vadd.f32 %v1265, %v1468
      %1470 = vmatprep.mubr.bf16.mxu0 0
      %1471 = vmatmul.mubr.bf16.gmra.mrb[0].mxu0 %v1329
      %v1472 = vpop.f32.mrb[0].mxu0
      %v1473 = vadd.f32 %v1266, %v1472
      %v1474 = vpop.f32.mrb[0].mxu0
      %v1475 = vadd.f32 %v1267, %v1474
      %v1476 = vpop.f32.mrb[0].mxu0
      %v1477 = vadd.f32 %v1268, %v1476
      %v1478 = vpop.f32.mrb[0].mxu0
      %v1479 = vadd.f32 %v1269, %v1478
      %1480 = vmatprep.mubr.bf16.mxu0 0
      %1481 = vmatmul.mubr.bf16.gmra.mrb[0].mxu0 %v1332
      %v1482 = vpop.f32.mrb[0].mxu0
      %v1483 = vadd.f32 %v1270, %v1482
      %v1484 = vpop.f32.mrb[0].mxu0
      %v1485 = vadd.f32 %v1271, %v1484
      %v1486 = vpop.f32.mrb[0].mxu0
      %v1487 = vadd.f32 %v1272, %v1486
      %v1488 = vpop.f32.mrb[0].mxu0
      %v1489 = vadd.f32 %v1273, %v1488
      %1490 = vmatprep.mubr.bf16.mxu0 0
      %1491 = vmatmul.mubr.bf16.gmra.mrb[0].mxu0 %v1335
      %v1492 = vpop.f32.mrb[0].mxu0
      %v1493 = vadd.f32 %v1274, %v1492
      %v1494 = vpop.f32.mrb[0].mxu0
      %v1495 = vadd.f32 %v1275, %v1494
      %v1496 = vpop.f32.mrb[0].mxu0
      %v1497 = vadd.f32 %v1276, %v1496
      %v1498 = vpop.f32.mrb[0].mxu0
      %v1499 = vadd.f32 %v1277, %v1498
      %1500 = vmatprep.mubr.bf16.mxu0 0
      %1501 = vmatmul.mubr.bf16.gmra.mrb[0].mxu0 %v1338
      %v1502 = vpop.f32.mrb[0].mxu0
      %v1503 = vadd.f32 %v1278, %v1502
      %v1504 = vpop.f32.mrb[0].mxu0
      %v1505 = vadd.f32 %v1279, %v1504
      %v1506 = vpop.f32.mrb[0].mxu0
      %v1507 = vadd.f32 %v1280, %v1506
      %v1508 = vpop.f32.mrb[0].mxu0
      %v1509 = vadd.f32 %v1281, %v1508
      %1510 = vmatprep.mubr.bf16.mxu0 0
      %1511 = vmatmul.mubr.bf16.gmra.mrb[0].mxu0 %v1341
      %v1512 = vpop.f32.mrb[0].mxu0
      %v1513 = vadd.f32 %v1282, %v1512
      %v1514 = vpop.f32.mrb[0].mxu0
      %v1515 = vadd.f32 %v1283, %v1514
      %v1516 = vpop.f32.mrb[0].mxu0
      %v1517 = vadd.f32 %v1284, %v1516
      %v1518 = vpop.f32.mrb[0].mxu0
      %v1519 = vadd.f32 %v1285, %v1518
      %1520 = vmatprep.mubr.bf16.mxu0 0
      %1521 = vmatmul.mubr.bf16.gmra.mrb[0].mxu0 %v1344
      %v1522 = vpop.f32.mrb[0].mxu0
      %v1523 = vadd.f32 %v1286, %v1522
      %v1524 = vpop.f32.mrb[0].mxu0
      %v1525 = vadd.f32 %v1287, %v1524
      %v1526 = vpop.f32.mrb[0].mxu0
      %v1527 = vadd.f32 %v1288, %v1526
      %v1528 = vpop.f32.mrb[0].mxu0
      %v1529 = vadd.f32 %v1289, %v1528
      %1530 = vmatprep.mubr.bf16.mxu0 0
      %1531 = vmatmul.mubr.bf16.gmra.mrb[0].mxu0 %v1347
      %v1532 = vpop.f32.mrb[0].mxu0
      %v1533 = vadd.f32 %v1290, %v1532
      %v1534 = vpop.f32.mrb[0].mxu0
      %v1535 = vadd.f32 %v1291, %v1534
      %v1536 = vpop.f32.mrb[0].mxu0
      %v1537 = vadd.f32 %v1292, %v1536
      %v1538 = vpop.f32.mrb[0].mxu0
      %v1539 = vadd.f32 %v1293, %v1538
      %1540 = vmatprep.mubr.bf16.mxu0 0
      %1541 = vmatmul.mubr.bf16.gmra.mrb[0].mxu0 %v1350
      %v1542 = vpop.f32.mrb[0].mxu0
      %v1543 = vadd.f32 %v1294, %v1542
      %v1544 = vpop.f32.mrb[0].mxu0
      %v1545 = vadd.f32 %v1295, %v1544
      %v1546 = vpop.f32.mrb[0].mxu0
      %v1547 = vadd.f32 %v1296, %v1546
      %v1548 = vpop.f32.mrb[0].mxu0
      %v1549 = vadd.f32 %v1297, %v1548
      %1550 = vmatprep.mubr.bf16.mxu0 0
      %1551 = vmatmul.mubr.bf16.gmra.mrb[0].mxu0 %v1353
      %v1552 = vpop.f32.mrb[0].mxu0
      %v1553 = vadd.f32 %v1298, %v1552
      %v1554 = vpop.f32.mrb[0].mxu0
      %v1555 = vadd.f32 %v1299, %v1554
      %v1556 = vpop.f32.mrb[0].mxu0
      %v1557 = vadd.f32 %v1300, %v1556
      %v1558 = vpop.f32.mrb[0].mxu0
      %v1559 = vadd.f32 %v1301, %v1558
      %1560 = vmatprep.mubr.bf16.mxu0 0
      %1561 = vmatmul.mubr.bf16.gmra.mrb[0].mxu0 %v1356
      %v1562 = vpop.f32.mrb[0].mxu0
      %v1563 = vadd.f32 %v1302, %v1562
      %v1564 = vpop.f32.mrb[0].mxu0
      %v1565 = vadd.f32 %v1303, %v1564
      %v1566 = vpop.f32.mrb[0].mxu0
      %v1567 = vadd.f32 %v1304, %v1566
      %v1568 = vpop.f32.mrb[0].mxu0
      %v1569 = vadd.f32 %v1305, %v1568
      %1570 = vmatprep.mubr.bf16.mxu0 0
      %1571 = vmatmul.mubr.bf16.gmra.mrb[0].mxu0 %v1359
      %v1572 = vpop.f32.mrb[0].mxu0
      %v1573 = vadd.f32 %v1306, %v1572
      %v1574 = vpop.f32.mrb[0].mxu0
      %v1575 = vadd.f32 %v1307, %v1574
      %v1576 = vpop.f32.mrb[0].mxu0
      %v1577 = vadd.f32 %v1308, %v1576
      %v1578 = vpop.f32.mrb[0].mxu0
      %v1579 = vadd.f32 %v1309, %v1578
      %1580 = vmatprep.mubr.bf16.mxu0 0
      %1581 = vmatmul.mubr.bf16.gmra.mrb[0].mxu0 %v1362
      %v1582 = vpop.f32.mrb[0].mxu0
      %v1583 = vadd.f32 %v1310, %v1582
      %v1584 = vpop.f32.mrb[0].mxu0
      %v1585 = vadd.f32 %v1311, %v1584
      %v1586 = vpop.f32.mrb[0].mxu0
      %v1587 = vadd.f32 %v1312, %v1586
      %v1588 = vpop.f32.mrb[0].mxu0
      %v1589 = vadd.f32 %v1313, %v1588
      %1590 = vmatprep.mubr.bf16.mxu0 0
      %1591 = vmatmul.mubr.bf16.gmra.mrb[0].mxu0 %v1365
      %v1592 = vpop.f32.mrb[0].mxu0
      %v1593 = vadd.f32 %v1314, %v1592
      %v1594 = vpop.f32.mrb[0].mxu0
      %v1595 = vadd.f32 %v1315, %v1594
      %v1596 = vpop.f32.mrb[0].mxu0
      %v1597 = vadd.f32 %v1316, %v1596
      %v1598 = vpop.f32.mrb[0].mxu0
      %v1599 = vadd.f32 %v1317, %v1598
      %1600 = vmatprep.mubr.bf16.mxu0 0
      %1601 = vmatmul.mubr.bf16.gmra.mrb[0].mxu0 %v1368
      %v1602 = vpop.f32.mrb[0].mxu0
      %v1603 = vadd.f32 %v1318, %v1602
      %v1604 = vpop.f32.mrb[0].mxu0
      %v1605 = vadd.f32 %v1319, %v1604
      %v1606 = vpop.f32.mrb[0].mxu0
      %v1607 = vadd.f32 %v1320, %v1606
      %v1608 = vpop.f32.mrb[0].mxu0
      %v1609 = vadd.f32 %v1321, %v1608
      %1610 = vdwg.mxu0
      %v1611 = vmax.f32 %v1453, %v1455
      %1612 = vmax.xlane.f32.xlu0 %v1611
      %v1613 = vpop.xlane.xlu0 %1612
      %v1614 = vmax.f32 %v1457, %v1459
      %1615 = vmax.xlane.f32.xlu0 %v1614
      %v1616 = vpop.xlane.xlu0 %1615
      %v1617 = vmax.f32 %v1463, %v1465
      %1618 = vmax.xlane.f32.xlu0 %v1617
      %v1619 = vpop.xlane.xlu0 %1618
      %v1620 = vmax.f32 %v1467, %v1469
      %1621 = vmax.xlane.f32.xlu0 %v1620
      %v1622 = vpop.xlane.xlu0 %1621
      %v1623 = vmax.f32 %v1473, %v1475
      %1624 = vmax.xlane.f32.xlu0 %v1623
      %v1625 = vpop.xlane.xlu0 %1624
      %v1626 = vmax.f32 %v1477, %v1479
      %1627 = vmax.xlane.f32.xlu0 %v1626
      %v1628 = vpop.xlane.xlu0 %1627
      %v1629 = vmax.f32 %v1483, %v1485
      %1630 = vmax.xlane.f32.xlu0 %v1629
      %v1631 = vpop.xlane.xlu0 %1630
      %v1632 = vmax.f32 %v1487, %v1489
      %1633 = vmax.xlane.f32.xlu0 %v1632
      %v1634 = vpop.xlane.xlu0 %1633
      %v1635 = vmax.f32 %v1493, %v1495
      %1636 = vmax.xlane.f32.xlu0 %v1635
      %v1637 = vpop.xlane.xlu0 %1636
      %v1638 = vmax.f32 %v1497, %v1499
      %1639 = vmax.xlane.f32.xlu0 %v1638
      %v1640 = vpop.xlane.xlu0 %1639
      %v1641 = vmax.f32 %v1503, %v1505
      %1642 = vmax.xlane.f32.xlu0 %v1641
      %v1643 = vpop.xlane.xlu0 %1642
      %v1644 = vmax.f32 %v1507, %v1509
      %1645 = vmax.xlane.f32.xlu0 %v1644
      %v1646 = vpop.xlane.xlu0 %1645
      %v1647 = vmax.f32 %v1513, %v1515
      %1648 = vmax.xlane.f32.xlu0 %v1647
      %v1649 = vpop.xlane.xlu0 %1648
      %v1650 = vmax.f32 %v1517, %v1519
      %1651 = vmax.xlane.f32.xlu0 %v1650
      %v1652 = vpop.xlane.xlu0 %1651
      %v1653 = vmax.f32 %v1523, %v1525
      %1654 = vmax.xlane.f32.xlu0 %v1653
      %v1655 = vpop.xlane.xlu0 %1654
      %v1656 = vmax.f32 %v1527, %v1529
      %1657 = vmax.xlane.f32.xlu0 %v1656
      %v1658 = vpop.xlane.xlu0 %1657
      %v1659 = vmax.f32 %v1533, %v1535
      %1660 = vmax.xlane.f32.xlu0 %v1659
      %v1661 = vpop.xlane.xlu0 %1660
      %v1662 = vmax.f32 %v1537, %v1539
      %1663 = vmax.xlane.f32.xlu0 %v1662
      %v1664 = vpop.xlane.xlu0 %1663
      %v1665 = vmax.f32 %v1543, %v1545
      %1666 = vmax.xlane.f32.xlu0 %v1665
      %v1667 = vpop.xlane.xlu0 %1666
      %v1668 = vmax.f32 %v1547, %v1549
      %1669 = vmax.xlane.f32.xlu0 %v1668
      %v1670 = vpop.xlane.xlu0 %1669
      %v1671 = vmax.f32 %v1553, %v1555
      %1672 = vmax.xlane.f32.xlu0 %v1671
      %v1673 = vpop.xlane.xlu0 %1672
      %v1674 = vmax.f32 %v1557, %v1559
      %1675 = vmax.xlane.f32.xlu0 %v1674
      %v1676 = vpop.xlane.xlu0 %1675
      %v1677 = vmax.f32 %v1563, %v1565
      %1678 = vmax.xlane.f32.xlu0 %v1677
      %v1679 = vpop.xlane.xlu0 %1678
      %v1680 = vmax.f32 %v1567, %v1569
      %1681 = vmax.xlane.f32.xlu0 %v1680
      %v1682 = vpop.xlane.xlu0 %1681
      %v1683 = vmax.f32 %v1573, %v1575
      %1684 = vmax.xlane.f32.xlu0 %v1683
      %v1685 = vpop.xlane.xlu0 %1684
      %v1686 = vmax.f32 %v1577, %v1579
      %1687 = vmax.xlane.f32.xlu0 %v1686
      %v1688 = vpop.xlane.xlu0 %1687
      %v1689 = vmax.f32 %v1583, %v1585
      %1690 = vmax.xlane.f32.xlu0 %v1689
      %v1691 = vpop.xlane.xlu0 %1690
      %v1692 = vmax.f32 %v1587, %v1589
      %1693 = vmax.xlane.f32.xlu0 %v1692
      %v1694 = vpop.xlane.xlu0 %1693
      %v1695 = vmax.f32 %v1593, %v1595
      %1696 = vmax.xlane.f32.xlu0 %v1695
      %v1697 = vpop.xlane.xlu0 %1696
      %v1698 = vmax.f32 %v1597, %v1599
      %1699 = vmax.xlane.f32.xlu0 %v1698
      %v1700 = vpop.xlane.xlu0 %1699
      %v1701 = vmax.f32 %v1603, %v1605
      %1702 = vmax.xlane.f32.xlu0 %v1701
      %v1703 = vpop.xlane.xlu0 %1702
      %v1704 = vmax.f32 %v1607, %v1609
      %1705 = vmax.xlane.f32.xlu0 %v1704
      %v1706 = vpop.xlane.xlu0 %1705
      %v1707 = vsub.f32 %v1453, %v1613
      %v1708 = vsub.f32 %v1455, %v1613
      %v1709 = vsub.f32 %v1457, %v1616
      %v1710 = vsub.f32 %v1459, %v1616
      %v1711 = vsub.f32 %v1463, %v1619
      %v1712 = vsub.f32 %v1465, %v1619
      %v1713 = vsub.f32 %v1467, %v1622
      %v1714 = vsub.f32 %v1469, %v1622
      %v1715 = vsub.f32 %v1473, %v1625
      %v1716 = vsub.f32 %v1475, %v1625
      %v1717 = vsub.f32 %v1477, %v1628
      %v1718 = vsub.f32 %v1479, %v1628
      %v1719 = vsub.f32 %v1483, %v1631
      %v1720 = vsub.f32 %v1485, %v1631
      %v1721 = vsub.f32 %v1487, %v1634
      %v1722 = vsub.f32 %v1489, %v1634
      %v1723 = vsub.f32 %v1493, %v1637
      %v1724 = vsub.f32 %v1495, %v1637
      %v1725 = vsub.f32 %v1497, %v1640
      %v1726 = vsub.f32 %v1499, %v1640
      %v1727 = vsub.f32 %v1503, %v1643
      %v1728 = vsub.f32 %v1505, %v1643
      %v1729 = vsub.f32 %v1507, %v1646
      %v1730 = vsub.f32 %v1509, %v1646
      %v1731 = vsub.f32 %v1513, %v1649
      %v1732 = vsub.f32 %v1515, %v1649
      %v1733 = vsub.f32 %v1517, %v1652
      %v1734 = vsub.f32 %v1519, %v1652
      %v1735 = vsub.f32 %v1523, %v1655
      %v1736 = vsub.f32 %v1525, %v1655
      %v1737 = vsub.f32 %v1527, %v1658
      %v1738 = vsub.f32 %v1529, %v1658
      %v1739 = vsub.f32 %v1533, %v1661
      %v1740 = vsub.f32 %v1535, %v1661
      %v1741 = vsub.f32 %v1537, %v1664
      %v1742 = vsub.f32 %v1539, %v1664
      %v1743 = vsub.f32 %v1543, %v1667
      %v1744 = vsub.f32 %v1545, %v1667
      %v1745 = vsub.f32 %v1547, %v1670
      %v1746 = vsub.f32 %v1549, %v1670
      %v1747 = vsub.f32 %v1553, %v1673
      %v1748 = vsub.f32 %v1555, %v1673
      %v1749 = vsub.f32 %v1557, %v1676
      %v1750 = vsub.f32 %v1559, %v1676
      %v1751 = vsub.f32 %v1563, %v1679
      %v1752 = vsub.f32 %v1565, %v1679
      %v1753 = vsub.f32 %v1567, %v1682
      %v1754 = vsub.f32 %v1569, %v1682
      %v1755 = vsub.f32 %v1573, %v1685
      %v1756 = vsub.f32 %v1575, %v1685
      %v1757 = vsub.f32 %v1577, %v1688
      %v1758 = vsub.f32 %v1579, %v1688
      %v1759 = vsub.f32 %v1583, %v1691
      %v1760 = vsub.f32 %v1585, %v1691
      %v1761 = vsub.f32 %v1587, %v1694
      %v1762 = vsub.f32 %v1589, %v1694
      %v1763 = vsub.f32 %v1593, %v1697
      %v1764 = vsub.f32 %v1595, %v1697
      %v1765 = vsub.f32 %v1597, %v1700
      %v1766 = vsub.f32 %v1599, %v1700
      %v1767 = vsub.f32 %v1603, %v1703
      %v1768 = vsub.f32 %v1605, %v1703
      %v1769 = vsub.f32 %v1607, %v1706
      %v1770 = vsub.f32 %v1609, %v1706
      %v1771 = vpack.c.bf16 %v1709, %v1707
      %v1772 = vpack.c.bf16 %v1710, %v1708
      %v1773 = vpack.c.bf16 %v1713, %v1711
      %v1774 = vpack.c.bf16 %v1714, %v1712
      %v1775 = vpack.c.bf16 %v1717, %v1715
      %v1776 = vpack.c.bf16 %v1718, %v1716
      %v1777 = vpack.c.bf16 %v1721, %v1719
      %v1778 = vpack.c.bf16 %v1722, %v1720
      %v1779 = vpack.c.bf16 %v1725, %v1723
      %v1780 = vpack.c.bf16 %v1726, %v1724
      %v1781 = vpack.c.bf16 %v1729, %v1727
      %v1782 = vpack.c.bf16 %v1730, %v1728
      %v1783 = vpack.c.bf16 %v1733, %v1731
      %v1784 = vpack.c.bf16 %v1734, %v1732
      %v1785 = vpack.c.bf16 %v1737, %v1735
      %v1786 = vpack.c.bf16 %v1738, %v1736
      %v1787 = vpack.c.bf16 %v1741, %v1739
      %v1788 = vpack.c.bf16 %v1742, %v1740
      %v1789 = vpack.c.bf16 %v1745, %v1743
      %v1790 = vpack.c.bf16 %v1746, %v1744
      %v1791 = vpack.c.bf16 %v1749, %v1747
      %v1792 = vpack.c.bf16 %v1750, %v1748
      %v1793 = vpack.c.bf16 %v1753, %v1751
      %v1794 = vpack.c.bf16 %v1754, %v1752
      %v1795 = vpack.c.bf16 %v1757, %v1755
      %v1796 = vpack.c.bf16 %v1758, %v1756
      %v1797 = vpack.c.bf16 %v1761, %v1759
      %v1798 = vpack.c.bf16 %v1762, %v1760
      %v1799 = vpack.c.bf16 %v1765, %v1763
      %v1800 = vpack.c.bf16 %v1766, %v1764
      %v1801 = vpack.c.bf16 %v1769, %v1767
      %v1802 = vpack.c.bf16 %v1770, %v1768
      %v1804 = vmul.bf16 %v1771, 1069105081
      %v1805 = vpow.bf16.pop %v1804
      %v1807 = vmul.bf16 %v1772, 1069105081
      %v1808 = vpow.bf16.pop %v1807
      %v1810 = vmul.bf16 %v1773, 1069105081
      %v1811 = vpow.bf16.pop %v1810
      %v1813 = vmul.bf16 %v1774, 1069105081
      %v1814 = vpow.bf16.pop %v1813
      %v1816 = vmul.bf16 %v1775, 1069105081
      %v1817 = vpow.bf16.pop %v1816
      %v1819 = vmul.bf16 %v1776, 1069105081
      %v1820 = vpow.bf16.pop %v1819
      %v1822 = vmul.bf16 %v1777, 1069105081
      %v1823 = vpow.bf16.pop %v1822
      %v1825 = vmul.bf16 %v1778, 1069105081
      %v1826 = vpow.bf16.pop %v1825
      %v1828 = vmul.bf16 %v1779, 1069105081
      %v1829 = vpow.bf16.pop %v1828
      %v1831 = vmul.bf16 %v1780, 1069105081
      %v1832 = vpow.bf16.pop %v1831
      %v1834 = vmul.bf16 %v1781, 1069105081
      %v1835 = vpow.bf16.pop %v1834
      %v1837 = vmul.bf16 %v1782, 1069105081
      %v1838 = vpow.bf16.pop %v1837
      %v1840 = vmul.bf16 %v1783, 1069105081
      %v1841 = vpow.bf16.pop %v1840
      %v1843 = vmul.bf16 %v1784, 1069105081
      %v1844 = vpow.bf16.pop %v1843
      %v1846 = vmul.bf16 %v1785, 1069105081
      %v1847 = vpow.bf16.pop %v1846
      %v1849 = vmul.bf16 %v1786, 1069105081
      %v1850 = vpow.bf16.pop %v1849
      %v1852 = vmul.bf16 %v1787, 1069105081
      %v1853 = vpow.bf16.pop %v1852
      %v1855 = vmul.bf16 %v1788, 1069105081
      %v1856 = vpow.bf16.pop %v1855
      %v1858 = vmul.bf16 %v1789, 1069105081
      %v1859 = vpow.bf16.pop %v1858
      %v1861 = vmul.bf16 %v1790, 1069105081
      %v1862 = vpow.bf16.pop %v1861
      %v1864 = vmul.bf16 %v1791, 1069105081
      %v1865 = vpow.bf16.pop %v1864
      %v1867 = vmul.bf16 %v1792, 1069105081
      %v1868 = vpow.bf16.pop %v1867
      %v1870 = vmul.bf16 %v1793, 1069105081
      %v1871 = vpow.bf16.pop %v1870
      %v1873 = vmul.bf16 %v1794, 1069105081
      %v1874 = vpow.bf16.pop %v1873
      %v1876 = vmul.bf16 %v1795, 1069105081
      %v1877 = vpow.bf16.pop %v1876
      %v1879 = vmul.bf16 %v1796, 1069105081
      %v1880 = vpow.bf16.pop %v1879
      %v1882 = vmul.bf16 %v1797, 1069105081
      %v1883 = vpow.bf16.pop %v1882
      %v1885 = vmul.bf16 %v1798, 1069105081
      %v1886 = vpow.bf16.pop %v1885
      %v1888 = vmul.bf16 %v1799, 1069105081
      %v1889 = vpow.bf16.pop %v1888
      %v1891 = vmul.bf16 %v1800, 1069105081
      %v1892 = vpow.bf16.pop %v1891
      %v1894 = vmul.bf16 %v1801, 1069105081
      %v1895 = vpow.bf16.pop %v1894
      %v1897 = vmul.bf16 %v1802, 1069105081
      %v1898 = vpow.bf16.pop %v1897
      %v1899 = vunpack.c.l.bf16 %v1805
      %v1900 = vunpack.c.l.bf16 %v1808
      %v1901 = vunpack.c.h.bf16 %v1805
      %v1902 = vunpack.c.h.bf16 %v1808
      %v1903 = vunpack.c.l.bf16 %v1811
      %v1904 = vunpack.c.l.bf16 %v1814
      %v1905 = vunpack.c.h.bf16 %v1811
      %v1906 = vunpack.c.h.bf16 %v1814
      %v1907 = vunpack.c.l.bf16 %v1817
      %v1908 = vunpack.c.l.bf16 %v1820
      %v1909 = vunpack.c.h.bf16 %v1817
      %v1910 = vunpack.c.h.bf16 %v1820
      %v1911 = vunpack.c.l.bf16 %v1823
      %v1912 = vunpack.c.l.bf16 %v1826
      %v1913 = vunpack.c.h.bf16 %v1823
      %v1914 = vunpack.c.h.bf16 %v1826
      %v1915 = vunpack.c.l.bf16 %v1829
      %v1916 = vunpack.c.l.bf16 %v1832
      %v1917 = vunpack.c.h.bf16 %v1829
      %v1918 = vunpack.c.h.bf16 %v1832
      %v1919 = vunpack.c.l.bf16 %v1835
      %v1920 = vunpack.c.l.bf16 %v1838
      %v1921 = vunpack.c.h.bf16 %v1835
      %v1922 = vunpack.c.h.bf16 %v1838
      %v1923 = vunpack.c.l.bf16 %v1841
      %v1924 = vunpack.c.l.bf16 %v1844
      %v1925 = vunpack.c.h.bf16 %v1841
      %v1926 = vunpack.c.h.bf16 %v1844
      %v1927 = vunpack.c.l.bf16 %v1847
      %v1928 = vunpack.c.l.bf16 %v1850
      %v1929 = vunpack.c.h.bf16 %v1847
      %v1930 = vunpack.c.h.bf16 %v1850
      %v1931 = vunpack.c.l.bf16 %v1853
      %v1932 = vunpack.c.l.bf16 %v1856
      %v1933 = vunpack.c.h.bf16 %v1853
      %v1934 = vunpack.c.h.bf16 %v1856
      %v1935 = vunpack.c.l.bf16 %v1859
      %v1936 = vunpack.c.l.bf16 %v1862
      %v1937 = vunpack.c.h.bf16 %v1859
      %v1938 = vunpack.c.h.bf16 %v1862
      %v1939 = vunpack.c.l.bf16 %v1865
      %v1940 = vunpack.c.l.bf16 %v1868
      %v1941 = vunpack.c.h.bf16 %v1865
      %v1942 = vunpack.c.h.bf16 %v1868
      %v1943 = vunpack.c.l.bf16 %v1871
      %v1944 = vunpack.c.l.bf16 %v1874
      %v1945 = vunpack.c.h.bf16 %v1871
      %v1946 = vunpack.c.h.bf16 %v1874
      %v1947 = vunpack.c.l.bf16 %v1877
      %v1948 = vunpack.c.l.bf16 %v1880
      %v1949 = vunpack.c.h.bf16 %v1877
      %v1950 = vunpack.c.h.bf16 %v1880
      %v1951 = vunpack.c.l.bf16 %v1883
      %v1952 = vunpack.c.l.bf16 %v1886
      %v1953 = vunpack.c.h.bf16 %v1883
      %v1954 = vunpack.c.h.bf16 %v1886
      %v1955 = vunpack.c.l.bf16 %v1889
      %v1956 = vunpack.c.l.bf16 %v1892
      %v1957 = vunpack.c.h.bf16 %v1889
      %v1958 = vunpack.c.h.bf16 %v1892
      %v1959 = vunpack.c.l.bf16 %v1895
      %v1960 = vunpack.c.l.bf16 %v1898
      %v1961 = vunpack.c.h.bf16 %v1895
      %v1962 = vunpack.c.h.bf16 %v1898
      %v1963 = vadd.f32 %v1899, %v1900
      %1964 = vadd.xlane.f32.xlu0 %v1963
      %v1965 = vpop.xlane.xlu0 %1964
      %v1966 = vadd.f32 %v1901, %v1902
      %1967 = vadd.xlane.f32.xlu0 %v1966
      %v1968 = vpop.xlane.xlu0 %1967
      %v1969 = vadd.f32 %v1903, %v1904
      %1970 = vadd.xlane.f32.xlu0 %v1969
      %v1971 = vpop.xlane.xlu0 %1970
      %v1972 = vadd.f32 %v1905, %v1906
      %1973 = vadd.xlane.f32.xlu0 %v1972
      %v1974 = vpop.xlane.xlu0 %1973
      %v1975 = vadd.f32 %v1907, %v1908
      %1976 = vadd.xlane.f32.xlu0 %v1975
      %v1977 = vpop.xlane.xlu0 %1976
      %v1978 = vadd.f32 %v1909, %v1910
      %1979 = vadd.xlane.f32.xlu0 %v1978
      %v1980 = vpop.xlane.xlu0 %1979
      %v1981 = vadd.f32 %v1911, %v1912
      %1982 = vadd.xlane.f32.xlu0 %v1981
      %v1983 = vpop.xlane.xlu0 %1982
      %v1984 = vadd.f32 %v1913, %v1914
      %1985 = vadd.xlane.f32.xlu0 %v1984
      %v1986 = vpop.xlane.xlu0 %1985
      %v1987 = vadd.f32 %v1915, %v1916
      %1988 = vadd.xlane.f32.xlu0 %v1987
      %v1989 = vpop.xlane.xlu0 %1988
      %v1990 = vadd.f32 %v1917, %v1918
      %1991 = vadd.xlane.f32.xlu0 %v1990
      %v1992 = vpop.xlane.xlu0 %1991
      %v1993 = vadd.f32 %v1919, %v1920
      %1994 = vadd.xlane.f32.xlu0 %v1993
      %v1995 = vpop.xlane.xlu0 %1994
      %v1996 = vadd.f32 %v1921, %v1922
      %1997 = vadd.xlane.f32.xlu0 %v1996
      %v1998 = vpop.xlane.xlu0 %1997
      %v1999 = vadd.f32 %v1923, %v1924
      %2000 = vadd.xlane.f32.xlu0 %v1999
      %v2001 = vpop.xlane.xlu0 %2000
      %v2002 = vadd.f32 %v1925, %v1926
      %2003 = vadd.xlane.f32.xlu0 %v2002
      %v2004 = vpop.xlane.xlu0 %2003
      %v2005 = vadd.f32 %v1927, %v1928
      %2006 = vadd.xlane.f32.xlu0 %v2005
      %v2007 = vpop.xlane.xlu0 %2006
      %v2008 = vadd.f32 %v1929, %v1930
      %2009 = vadd.xlane.f32.xlu0 %v2008
      %v2010 = vpop.xlane.xlu0 %2009
      %v2011 = vadd.f32 %v1931, %v1932
      %2012 = vadd.xlane.f32.xlu0 %v2011
      %v2013 = vpop.xlane.xlu0 %2012
      %v2014 = vadd.f32 %v1933, %v1934
      %2015 = vadd.xlane.f32.xlu0 %v2014
      %v2016 = vpop.xlane.xlu0 %2015
      %v2017 = vadd.f32 %v1935, %v1936
      %2018 = vadd.xlane.f32.xlu0 %v2017
      %v2019 = vpop.xlane.xlu0 %2018
      %v2020 = vadd.f32 %v1937, %v1938
      %2021 = vadd.xlane.f32.xlu0 %v2020
      %v2022 = vpop.xlane.xlu0 %2021
      %v2023 = vadd.f32 %v1939, %v1940
      %2024 = vadd.xlane.f32.xlu0 %v2023
      %v2025 = vpop.xlane.xlu0 %2024
      %v2026 = vadd.f32 %v1941, %v1942
      %2027 = vadd.xlane.f32.xlu0 %v2026
      %v2028 = vpop.xlane.xlu0 %2027
      %v2029 = vadd.f32 %v1943, %v1944
      %2030 = vadd.xlane.f32.xlu0 %v2029
      %v2031 = vpop.xlane.xlu0 %2030
      %v2032 = vadd.f32 %v1945, %v1946
      %2033 = vadd.xlane.f32.xlu0 %v2032
      %v2034 = vpop.xlane.xlu0 %2033
      %v2035 = vadd.f32 %v1947, %v1948
      %2036 = vadd.xlane.f32.xlu0 %v2035
      %v2037 = vpop.xlane.xlu0 %2036
      %v2038 = vadd.f32 %v1949, %v1950
      %2039 = vadd.xlane.f32.xlu0 %v2038
      %v2040 = vpop.xlane.xlu0 %2039
      %v2041 = vadd.f32 %v1951, %v1952
      %2042 = vadd.xlane.f32.xlu0 %v2041
      %v2043 = vpop.xlane.xlu0 %2042
      %v2044 = vadd.f32 %v1953, %v1954
      %2045 = vadd.xlane.f32.xlu0 %v2044
      %v2046 = vpop.xlane.xlu0 %2045
      %v2047 = vadd.f32 %v1955, %v1956
      %2048 = vadd.xlane.f32.xlu0 %v2047
      %v2049 = vpop.xlane.xlu0 %2048
      %v2050 = vadd.f32 %v1957, %v1958
      %2051 = vadd.xlane.f32.xlu0 %v2050
      %v2052 = vpop.xlane.xlu0 %2051
      %v2053 = vadd.f32 %v1959, %v1960
      %2054 = vadd.xlane.f32.xlu0 %v2053
      %v2055 = vpop.xlane.xlu0 %2054
      %v2056 = vadd.f32 %v1961, %v1962
      %2057 = vadd.xlane.f32.xlu0 %v2056
      %v2058 = vpop.xlane.xlu0 %2057
      %2059 = vmatprep.subr.bf16.mxu0 0
      %2060 = vmatpush1.bf16.msra.mxu0 %v1242
      %2061 = vmatprep.subr.bf16.mxu0 0
      %2062 = vmatpush1.bf16.msra.mxu0 %v1243
      %2063 = vmatprep.subr.bf16.mxu0 0
      %2064 = vmatpush1.bf16.msra.mxu0 %v1244
      %2065 = vmatprep.subr.bf16.mxu0 0
      %2066 = vmatpush1.bf16.msra.mxu0 %v1245
      %2067 = vmatprep.subr.bf16.mxu0 0
      %2068 = vmatpush1.bf16.msra.mxu0 %v1246
      %2069 = vmatprep.subr.bf16.mxu0 0
      %2070 = vmatpush1.bf16.msra.mxu0 %v1247
      %2071 = vmatprep.subr.bf16.mxu0 0
      %2072 = vmatpush1.bf16.msra.mxu0 %v1248
      %2073 = vmatprep.subr.bf16.mxu0 0
      %2074 = vmatpush1.bf16.msra.mxu0 %v1249
      %2075 = vmatprep.subr.bf16.mxu0 0
      %2076 = vmatpush1.bf16.msra.mxu0 %v1250
      %2077 = vmatprep.subr.bf16.mxu0 0
      %2078 = vmatpush1.bf16.msra.mxu0 %v1251
      %2079 = vmatprep.subr.bf16.mxu0 0
      %2080 = vmatpush1.bf16.msra.mxu0 %v1252
      %2081 = vmatprep.subr.bf16.mxu0 0
      %2082 = vmatpush1.bf16.msra.mxu0 %v1253
      %2083 = vmatprep.subr.bf16.mxu0 0
      %2084 = vmatpush1.bf16.msra.mxu0 %v1254
      %2085 = vmatprep.subr.bf16.mxu0 0
      %2086 = vmatpush1.bf16.msra.mxu0 %v1255
      %2087 = vmatprep.subr.bf16.mxu0 0
      %2088 = vmatpush1.bf16.msra.mxu0 %v1256
      %2089 = vmatprep.subr.bf16.mxu0 0
      %2090 = vmatpush1.bf16.msra.mxu0 %v1257
      %2091 = vmatprep.mubr.bf16.mxu0 %v1808
      %2092 = vmatmul.mubr.bf16.gmra.mrb[0].mxu0 %v1805
      %v2093 = vpop.f32.mrb[0].mxu0
      %v2094 = vadd.f32 0.0, %v2093
      %v2095 = vpop.f32.mrb[0].mxu0
      %v2096 = vpop.f32.mrb[0].mxu0
      %v2097 = vadd.f32 0.0, %v2096
      %v2098 = vpop.f32.mrb[0].mxu0
      %2099 = vmatprep.mubr.bf16.mxu0 %v1814
      %2100 = vmatmul.mubr.bf16.gmra.mrb[0].mxu0 %v1811
      %v2101 = vpop.f32.mrb[0].mxu0
      %v2102 = vadd.f32 0.0, %v2101
      %v2103 = vpop.f32.mrb[0].mxu0
      %v2104 = vpop.f32.mrb[0].mxu0
      %v2105 = vadd.f32 0.0, %v2104
      %v2106 = vpop.f32.mrb[0].mxu0
      %2107 = vmatprep.mubr.bf16.mxu0 %v1820
      %2108 = vmatmul.mubr.bf16.gmra.mrb[0].mxu0 %v1817
      %v2109 = vpop.f32.mrb[0].mxu0
      %v2110 = vadd.f32 0.0, %v2109
      %v2111 = vpop.f32.mrb[0].mxu0
      %v2112 = vpop.f32.mrb[0].mxu0
      %v2113 = vadd.f32 0.0, %v2112
      %v2114 = vpop.f32.mrb[0].mxu0
      %2115 = vmatprep.mubr.bf16.mxu0 %v1826
      %2116 = vmatmul.mubr.bf16.gmra.mrb[0].mxu0 %v1823
      %v2117 = vpop.f32.mrb[0].mxu0
      %v2118 = vadd.f32 0.0, %v2117
      %v2119 = vpop.f32.mrb[0].mxu0
      %v2120 = vpop.f32.mrb[0].mxu0
      %v2121 = vadd.f32 0.0, %v2120
      %v2122 = vpop.f32.mrb[0].mxu0
      %2123 = vmatprep.mubr.bf16.mxu0 %v1832
      %2124 = vmatmul.mubr.bf16.gmra.mrb[0].mxu0 %v1829
      %v2125 = vpop.f32.mrb[0].mxu0
      %v2126 = vadd.f32 0.0, %v2125
      %v2127 = vpop.f32.mrb[0].mxu0
      %v2128 = vpop.f32.mrb[0].mxu0
      %v2129 = vadd.f32 0.0, %v2128
      %v2130 = vpop.f32.mrb[0].mxu0
      %2131 = vmatprep.mubr.bf16.mxu0 %v1838
      %2132 = vmatmul.mubr.bf16.gmra.mrb[0].mxu0 %v1835
      %v2133 = vpop.f32.mrb[0].mxu0
      %v2134 = vadd.f32 0.0, %v2133
      %v2135 = vpop.f32.mrb[0].mxu0
      %v2136 = vpop.f32.mrb[0].mxu0
      %v2137 = vadd.f32 0.0, %v2136
      %v2138 = vpop.f32.mrb[0].mxu0
      %2139 = vmatprep.mubr.bf16.mxu0 %v1844
      %2140 = vmatmul.mubr.bf16.gmra.mrb[0].mxu0 %v1841
      %v2141 = vpop.f32.mrb[0].mxu0
      %v2142 = vadd.f32 0.0, %v2141
      %v2143 = vpop.f32.mrb[0].mxu0
      %v2144 = vpop.f32.mrb[0].mxu0
      %v2145 = vadd.f32 0.0, %v2144
      %v2146 = vpop.f32.mrb[0].mxu0
      %2147 = vmatprep.mubr.bf16.mxu0 %v1850
      %2148 = vmatmul.mubr.bf16.gmra.mrb[0].mxu0 %v1847
      %v2149 = vpop.f32.mrb[0].mxu0
      %v2150 = vadd.f32 0.0, %v2149
      %v2151 = vpop.f32.mrb[0].mxu0
      %v2152 = vpop.f32.mrb[0].mxu0
      %v2153 = vadd.f32 0.0, %v2152
      %v2154 = vpop.f32.mrb[0].mxu0
      %2155 = vmatprep.mubr.bf16.mxu0 %v1856
      %2156 = vmatmul.mubr.bf16.gmra.mrb[0].mxu0 %v1853
      %v2157 = vpop.f32.mrb[0].mxu0
      %v2158 = vadd.f32 0.0, %v2157
      %v2159 = vpop.f32.mrb[0].mxu0
      %v2160 = vpop.f32.mrb[0].mxu0
      %v2161 = vadd.f32 0.0, %v2160
      %v2162 = vpop.f32.mrb[0].mxu0
      %2163 = vmatprep.mubr.bf16.mxu0 %v1862
      %2164 = vmatmul.mubr.bf16.gmra.mrb[0].mxu0 %v1859
      %v2165 = vpop.f32.mrb[0].mxu0
      %v2166 = vadd.f32 0.0, %v2165
      %v2167 = vpop.f32.mrb[0].mxu0
      %v2168 = vpop.f32.mrb[0].mxu0
      %v2169 = vadd.f32 0.0, %v2168
      %v2170 = vpop.f32.mrb[0].mxu0
      %2171 = vmatprep.mubr.bf16.mxu0 %v1868
      %2172 = vmatmul.mubr.bf16.gmra.mrb[0].mxu0 %v1865
      %v2173 = vpop.f32.mrb[0].mxu0
      %v2174 = vadd.f32 0.0, %v2173
      %v2175 = vpop.f32.mrb[0].mxu0
      %v2176 = vpop.f32.mrb[0].mxu0
      %v2177 = vadd.f32 0.0, %v2176
      %v2178 = vpop.f32.mrb[0].mxu0
      %2179 = vmatprep.mubr.bf16.mxu0 %v1874
      %2180 = vmatmul.mubr.bf16.gmra.mrb[0].mxu0 %v1871
      %v2181 = vpop.f32.mrb[0].mxu0
      %v2182 = vadd.f32 0.0, %v2181
      %v2183 = vpop.f32.mrb[0].mxu0
      %v2184 = vpop.f32.mrb[0].mxu0
      %v2185 = vadd.f32 0.0, %v2184
      %v2186 = vpop.f32.mrb[0].mxu0
      %2187 = vmatprep.mubr.bf16.mxu0 %v1880
      %2188 = vmatmul.mubr.bf16.gmra.mrb[0].mxu0 %v1877
      %v2189 = vpop.f32.mrb[0].mxu0
      %v2190 = vadd.f32 0.0, %v2189
      %v2191 = vpop.f32.mrb[0].mxu0
      %v2192 = vpop.f32.mrb[0].mxu0
      %v2193 = vadd.f32 0.0, %v2192
      %v2194 = vpop.f32.mrb[0].mxu0
      %2195 = vmatprep.mubr.bf16.mxu0 %v1886
      %2196 = vmatmul.mubr.bf16.gmra.mrb[0].mxu0 %v1883
      %v2197 = vpop.f32.mrb[0].mxu0
      %v2198 = vadd.f32 0.0, %v2197
      %v2199 = vpop.f32.mrb[0].mxu0
      %v2200 = vpop.f32.mrb[0].mxu0
      %v2201 = vadd.f32 0.0, %v2200
      %v2202 = vpop.f32.mrb[0].mxu0
      %2203 = vmatprep.mubr.bf16.mxu0 %v1892
      %2204 = vmatmul.mubr.bf16.gmra.mrb[0].mxu0 %v1889
      %v2205 = vpop.f32.mrb[0].mxu0
      %v2206 = vadd.f32 0.0, %v2205
      %v2207 = vpop.f32.mrb[0].mxu0
      %v2208 = vpop.f32.mrb[0].mxu0
      %v2209 = vadd.f32 0.0, %v2208
      %v2210 = vpop.f32.mrb[0].mxu0
      %2211 = vmatprep.mubr.bf16.mxu0 %v1898
      %2212 = vmatmul.mubr.bf16.gmra.mrb[0].mxu0 %v1895
      %v2213 = vpop.f32.mrb[0].mxu0
      %v2214 = vadd.f32 0.0, %v2213
      %v2215 = vpop.f32.mrb[0].mxu0
      %v2216 = vpop.f32.mrb[0].mxu0
      %v2217 = vadd.f32 0.0, %v2216
      %v2218 = vpop.f32.mrb[0].mxu0
      %2219 = vdwg.mxu0
      %v2220 = vrcp.pop %v1965
      %v2221 = vrcp.pop %v1968
      %v2222 = vrcp.pop %v1971
      %v2223 = vrcp.pop %v1974
      %v2224 = vrcp.pop %v1977
      %v2225 = vrcp.pop %v1980
      %v2226 = vrcp.pop %v1983
      %v2227 = vrcp.pop %v1986
      %v2228 = vrcp.pop %v1989
      %v2229 = vrcp.pop %v1992
      %v2230 = vrcp.pop %v1995
      %v2231 = vrcp.pop %v1998
      %v2232 = vrcp.pop %v2001
      %v2233 = vrcp.pop %v2004
      %v2234 = vrcp.pop %v2007
      %v2235 = vrcp.pop %v2010
      %v2236 = vrcp.pop %v2013
      %v2237 = vrcp.pop %v2016
      %v2238 = vrcp.pop %v2019
      %v2239 = vrcp.pop %v2022
      %v2240 = vrcp.pop %v2025
      %v2241 = vrcp.pop %v2028
      %v2242 = vrcp.pop %v2031
      %v2243 = vrcp.pop %v2034
      %v2244 = vrcp.pop %v2037
      %v2245 = vrcp.pop %v2040
      %v2246 = vrcp.pop %v2043
      %v2247 = vrcp.pop %v2046
      %v2248 = vrcp.pop %v2049
      %v2249 = vrcp.pop %v2052
      %v2250 = vrcp.pop %v2055
      %v2251 = vrcp.pop %v2058
      %v2252 = vmul.f32 %v2094, %v2220
      %v2253 = vmul.f32 %v2097, %v2221
      %v2254 = vmul.f32 %v2102, %v2222
      %v2255 = vmul.f32 %v2105, %v2223
      %v2256 = vmul.f32 %v2110, %v2224
      %v2257 = vmul.f32 %v2113, %v2225
      %v2258 = vmul.f32 %v2118, %v2226
      %v2259 = vmul.f32 %v2121, %v2227
      %v2260 = vmul.f32 %v2126, %v2228
      %v2261 = vmul.f32 %v2129, %v2229
      %v2262 = vmul.f32 %v2134, %v2230
      %v2263 = vmul.f32 %v2137, %v2231
      %v2264 = vmul.f32 %v2142, %v2232
      %v2265 = vmul.f32 %v2145, %v2233
      %v2266 = vmul.f32 %v2150, %v2234
      %v2267 = vmul.f32 %v2153, %v2235
      %v2268 = vmul.f32 %v2158, %v2236
      %v2269 = vmul.f32 %v2161, %v2237
      %v2270 = vmul.f32 %v2166, %v2238
      %v2271 = vmul.f32 %v2169, %v2239
      %v2272 = vmul.f32 %v2174, %v2240
      %v2273 = vmul.f32 %v2177, %v2241
      %v2274 = vmul.f32 %v2182, %v2242
      %v2275 = vmul.f32 %v2185, %v2243
      %v2276 = vmul.f32 %v2190, %v2244
      %v2277 = vmul.f32 %v2193, %v2245
      %v2278 = vmul.f32 %v2198, %v2246
      %v2279 = vmul.f32 %v2201, %v2247
      %v2280 = vmul.f32 %v2206, %v2248
      %v2281 = vmul.f32 %v2209, %v2249
      %v2282 = vmul.f32 %v2214, %v2250
      %v2283 = vmul.f32 %v2217, %v2251
      %v2284 = vpack.c.bf16 %v2253, %v2252
      %v2285 = vpack.c.bf16 %v2255, %v2254
      %v2286 = vpack.c.bf16 %v2257, %v2256
      %v2287 = vpack.c.bf16 %v2259, %v2258
      %v2288 = vpack.c.bf16 %v2261, %v2260
      %v2289 = vpack.c.bf16 %v2263, %v2262
      %v2290 = vpack.c.bf16 %v2265, %v2264
      %v2291 = vpack.c.bf16 %v2267, %v2266
      %v2292 = vpack.c.bf16 %v2269, %v2268
      %v2293 = vpack.c.bf16 %v2271, %v2270
      %v2294 = vpack.c.bf16 %v2273, %v2272
      %v2295 = vpack.c.bf16 %v2275, %v2274
      %v2296 = vpack.c.bf16 %v2277, %v2276
      %v2297 = vpack.c.bf16 %v2279, %v2278
      %v2298 = vpack.c.bf16 %v2281, %v2280
      %v2299 = vpack.c.bf16 %v2283, %v2282
      %v2300 = vld [vmem:[%s4] sm:$0xf]
      %v2301 = vld [vmem:[%s4 + $0x4] sm:$0xf]
      %v2302 = vld [vmem:[%s4 + $0x8] sm:$0xf]
      %v2303 = vld [vmem:[%s4 + $0xc] sm:$0xf]
      %v2304 = vlaneseq
      %v2305 = vshrl.u32 %v2304, 7
      %v2306 = vsub.s32 3, %v2305
      %v2307 = vrot.slane %v536, %v2306
      %v2312 = vunpack.c.l.b16 %v2300
      %v2313 = vunpack.c.l.b16 %v2301
      %v2314 = vunpack.c.l.b16 %v2302
      %v2315 = vunpack.c.l.b16 %v2303
      %v2316 = vpack.c.b16 %v2313, %v2312
      %v2317 = vpack.c.b16 %v2315, %v2314
      %v2321 = vsel %vm638, %v2284, 0
      %v2324 = vsel %vm638, %v2285, 0
      %v2327 = vsel %vm638, %v2286, 0
      %v2330 = vsel %vm638, %v2287, 0
      %v2333 = vsel %vm638, %v2288, 0
      %v2336 = vsel %vm638, %v2289, 0
      %v2339 = vsel %vm638, %v2290, 0
      %v2342 = vsel %vm638, %v2291, 0
      %v2345 = vsel %vm638, %v2292, 0
      %v2348 = vsel %vm638, %v2293, 0
      %v2351 = vsel %vm638, %v2294, 0
      %v2354 = vsel %vm638, %v2295, 0
      %v2357 = vsel %vm638, %v2296, 0
      %v2360 = vsel %vm638, %v2297, 0
      %v2363 = vsel %vm638, %v2298, 0
      %v2366 = vsel %vm638, %v2299, 0
      %2368 = vmatprep.subr.bf16.mxu0 0
      %2369 = vmatpush1.bf16.msra.mxu0 %v2316
      %2370 = vmatprep.subr.bf16.mxu0 0
      %2371 = vmatpush1.bf16.msra.mxu0 %v2317
      %2372 = vmatprep.subr.bf16.mxu0 0
      %2373 = vmatpush1.bf16.msra.mxu0 0
      %2374 = vmatprep.subr.bf16.mxu0 0
      %2375 = vmatpush1.bf16.msra.mxu0 0
      %2376 = vmatprep.subr.bf16.mxu0 0
      %2377 = vmatpush1.bf16.msra.mxu0 0
      %2378 = vmatprep.subr.bf16.mxu0 0
      %2379 = vmatpush1.bf16.msra.mxu0 0
      %2380 = vmatprep.subr.bf16.mxu0 0
      %2381 = vmatpush1.bf16.msra.mxu0 0
      %2382 = vmatprep.subr.bf16.mxu0 0
      %2383 = vmatpush1.bf16.msra.mxu0 0
      %2384 = vmatprep.subr.bf16.mxu0 0
      %2385 = vmatpush1.bf16.msra.mxu0 0
      %2386 = vmatprep.subr.bf16.mxu0 0
      %2387 = vmatpush1.bf16.msra.mxu0 0
      %2388 = vmatprep.subr.bf16.mxu0 0
      %2389 = vmatpush1.bf16.msra.mxu0 0
      %2390 = vmatprep.subr.bf16.mxu0 0
      %2391 = vmatpush1.bf16.msra.mxu0 0
      %2392 = vmatprep.subr.bf16.mxu0 0
      %2393 = vmatpush1.bf16.msra.mxu0 0
      %2394 = vmatprep.subr.bf16.mxu0 0
      %2395 = vmatpush1.bf16.msra.mxu0 0
      %2396 = vmatprep.subr.bf16.mxu0 0
      %2397 = vmatpush1.bf16.msra.mxu0 0
      %2398 = vmatprep.subr.bf16.mxu0 0
      %2399 = vmatpush1.bf16.msra.mxu0 0
      %2400 = vmatprep.mubr.bf16.mxu0 0
      %2401 = vmatmul.mubr.bf16.gmra.mrb[0].mxu0 %v2321
      %v2402 = vpop.f32.mrb[0].mxu0
      %v2403 = vadd.f32 %v2307, %v2402
      %v2404 = vpop.f32.mrb[0].mxu0
      %v2405 = vpop.f32.mrb[0].mxu0
      %v2406 = vadd.f32 %v2307, %v2405
      %v2407 = vpop.f32.mrb[0].mxu0
      %2408 = vmatprep.mubr.bf16.mxu0 0
      %2409 = vmatmul.mubr.bf16.gmra.mrb[0].mxu0 %v2324
      %v2410 = vpop.f32.mrb[0].mxu0
      %v2411 = vadd.f32 %v2307, %v2410
      %v2412 = vpop.f32.mrb[0].mxu0
      %v2413 = vpop.f32.mrb[0].mxu0
      %v2414 = vadd.f32 %v2307, %v2413
      %v2415 = vpop.f32.mrb[0].mxu0
      %2416 = vmatprep.mubr.bf16.mxu0 0
      %2417 = vmatmul.mubr.bf16.gmra.mrb[0].mxu0 %v2327
      %v2418 = vpop.f32.mrb[0].mxu0
      %v2419 = vadd.f32 %v2307, %v2418
      %v2420 = vpop.f32.mrb[0].mxu0
      %v2421 = vpop.f32.mrb[0].mxu0
      %v2422 = vadd.f32 %v2307, %v2421
      %v2423 = vpop.f32.mrb[0].mxu0
      %2424 = vmatprep.mubr.bf16.mxu0 0
      %2425 = vmatmul.mubr.bf16.gmra.mrb[0].mxu0 %v2330
      %v2426 = vpop.f32.mrb[0].mxu0
      %v2427 = vadd.f32 %v2307, %v2426
      %v2428 = vpop.f32.mrb[0].mxu0
      %v2429 = vpop.f32.mrb[0].mxu0
      %v2430 = vadd.f32 %v2307, %v2429
      %v2431 = vpop.f32.mrb[0].mxu0
      %2432 = vmatprep.mubr.bf16.mxu0 0
      %2433 = vmatmul.mubr.bf16.gmra.mrb[0].mxu0 %v2333
      %v2434 = vpop.f32.mrb[0].mxu0
      %v2435 = vadd.f32 %v2307, %v2434
      %v2436 = vpop.f32.mrb[0].mxu0
      %v2437 = vpop.f32.mrb[0].mxu0
      %v2438 = vadd.f32 %v2307, %v2437
      %v2439 = vpop.f32.mrb[0].mxu0
      %2440 = vmatprep.mubr.bf16.mxu0 0
      %2441 = vmatmul.mubr.bf16.gmra.mrb[0].mxu0 %v2336
      %v2442 = vpop.f32.mrb[0].mxu0
      %v2443 = vadd.f32 %v2307, %v2442
      %v2444 = vpop.f32.mrb[0].mxu0
      %v2445 = vpop.f32.mrb[0].mxu0
      %v2446 = vadd.f32 %v2307, %v2445
      %v2447 = vpop.f32.mrb[0].mxu0
      %2448 = vmatprep.mubr.bf16.mxu0 0
      %2449 = vmatmul.mubr.bf16.gmra.mrb[0].mxu0 %v2339
      %v2450 = vpop.f32.mrb[0].mxu0
      %v2451 = vadd.f32 %v2307, %v2450
      %v2452 = vpop.f32.mrb[0].mxu0
      %v2453 = vpop.f32.mrb[0].mxu0
      %v2454 = vadd.f32 %v2307, %v2453
      %v2455 = vpop.f32.mrb[0].mxu0
      %2456 = vmatprep.mubr.bf16.mxu0 0
      %2457 = vmatmul.mubr.bf16.gmra.mrb[0].mxu0 %v2342
      %v2458 = vpop.f32.mrb[0].mxu0
      %v2459 = vadd.f32 %v2307, %v2458
      %v2460 = vpop.f32.mrb[0].mxu0
      %v2461 = vpop.f32.mrb[0].mxu0
      %v2462 = vadd.f32 %v2307, %v2461
      %v2463 = vpop.f32.mrb[0].mxu0
      %2464 = vmatprep.mubr.bf16.mxu0 0
      %2465 = vmatmul.mubr.bf16.gmra.mrb[0].mxu0 %v2345
      %v2466 = vpop.f32.mrb[0].mxu0
      %v2467 = vadd.f32 %v2307, %v2466
      %v2468 = vpop.f32.mrb[0].mxu0
      %v2469 = vpop.f32.mrb[0].mxu0
      %v2470 = vadd.f32 %v2307, %v2469
      %v2471 = vpop.f32.mrb[0].mxu0
      %2472 = vmatprep.mubr.bf16.mxu0 0
      %2473 = vmatmul.mubr.bf16.gmra.mrb[0].mxu0 %v2348
      %v2474 = vpop.f32.mrb[0].mxu0
      %v2475 = vadd.f32 %v2307, %v2474
      %v2476 = vpop.f32.mrb[0].mxu0
      %v2477 = vpop.f32.mrb[0].mxu0
      %v2478 = vadd.f32 %v2307, %v2477
      %v2479 = vpop.f32.mrb[0].mxu0
      %2480 = vmatprep.mubr.bf16.mxu0 0
      %2481 = vmatmul.mubr.bf16.gmra.mrb[0].mxu0 %v2351
      %v2482 = vpop.f32.mrb[0].mxu0
      %v2483 = vadd.f32 %v2307, %v2482
      %v2484 = vpop.f32.mrb[0].mxu0
      %v2485 = vpop.f32.mrb[0].mxu0
      %v2486 = vadd.f32 %v2307, %v2485
      %v2487 = vpop.f32.mrb[0].mxu0
      %2488 = vmatprep.mubr.bf16.mxu0 0
      %2489 = vmatmul.mubr.bf16.gmra.mrb[0].mxu0 %v2354
      %v2490 = vpop.f32.mrb[0].mxu0
      %v2491 = vadd.f32 %v2307, %v2490
      %v2492 = vpop.f32.mrb[0].mxu0
      %v2493 = vpop.f32.mrb[0].mxu0
      %v2494 = vadd.f32 %v2307, %v2493
      %v2495 = vpop.f32.mrb[0].mxu0
      %2496 = vmatprep.mubr.bf16.mxu0 0
      %2497 = vmatmul.mubr.bf16.gmra.mrb[0].mxu0 %v2357
      %v2498 = vpop.f32.mrb[0].mxu0
      %v2499 = vadd.f32 %v2307, %v2498
      %v2500 = vpop.f32.mrb[0].mxu0
      %v2501 = vpop.f32.mrb[0].mxu0
      %v2502 = vadd.f32 %v2307, %v2501
      %v2503 = vpop.f32.mrb[0].mxu0
      %2504 = vmatprep.mubr.bf16.mxu0 0
      %2505 = vmatmul.mubr.bf16.gmra.mrb[0].mxu0 %v2360
      %v2506 = vpop.f32.mrb[0].mxu0
      %v2507 = vadd.f32 %v2307, %v2506
      %v2508 = vpop.f32.mrb[0].mxu0
      %v2509 = vpop.f32.mrb[0].mxu0
      %v2510 = vadd.f32 %v2307, %v2509
      %v2511 = vpop.f32.mrb[0].mxu0
      %2512 = vmatprep.mubr.bf16.mxu0 0
      %2513 = vmatmul.mubr.bf16.gmra.mrb[0].mxu0 %v2363
      %v2514 = vpop.f32.mrb[0].mxu0
      %v2515 = vadd.f32 %v2307, %v2514
      %v2516 = vpop.f32.mrb[0].mxu0
      %v2517 = vpop.f32.mrb[0].mxu0
      %v2518 = vadd.f32 %v2307, %v2517
      %v2519 = vpop.f32.mrb[0].mxu0
      %2520 = vmatprep.mubr.bf16.mxu0 0
      %2521 = vmatmul.mubr.bf16.gmra.mrb[0].mxu0 %v2366
      %v2522 = vpop.f32.mrb[0].mxu0
      %v2523 = vadd.f32 %v2307, %v2522
      %v2524 = vpop.f32.mrb[0].mxu0
      %v2525 = vpop.f32.mrb[0].mxu0
      %v2526 = vadd.f32 %v2307, %v2525
      %v2527 = vpop.f32.mrb[0].mxu0
      %2528 = vdwg.mxu0
      %v2529 = vadd.f32 %v504, %v2403
      %v2530 = vadd.f32 %v505, %v2406
      %v2531 = vadd.f32 %v506, %v2411
      %v2532 = vadd.f32 %v507, %v2414
      %v2533 = vadd.f32 %v508, %v2419
      %v2534 = vadd.f32 %v509, %v2422
      %v2535 = vadd.f32 %v510, %v2427
      %v2536 = vadd.f32 %v511, %v2430
      %v2537 = vadd.f32 %v512, %v2435
      %v2538 = vadd.f32 %v513, %v2438
      %v2539 = vadd.f32 %v514, %v2443
      %v2540 = vadd.f32 %v515, %v2446
      %v2541 = vadd.f32 %v516, %v2451
      %v2542 = vadd.f32 %v517, %v2454
      %v2543 = vadd.f32 %v518, %v2459
      %v2544 = vadd.f32 %v519, %v2462
      %v2545 = vadd.f32 %v520, %v2467
      %v2546 = vadd.f32 %v521, %v2470
      %v2547 = vadd.f32 %v522, %v2475
      %v2548 = vadd.f32 %v523, %v2478
      %v2549 = vadd.f32 %v524, %v2483
      %v2550 = vadd.f32 %v525, %v2486
      %v2551 = vadd.f32 %v526, %v2491
      %v2552 = vadd.f32 %v527, %v2494
      %v2553 = vadd.f32 %v528, %v2499
      %v2554 = vadd.f32 %v529, %v2502
      %v2555 = vadd.f32 %v530, %v2507
      %v2556 = vadd.f32 %v531, %v2510
      %v2557 = vadd.f32 %v532, %v2515
      %v2558 = vadd.f32 %v533, %v2518
      %v2559 = vadd.f32 %v534, %v2523
      %v2560 = vadd.f32 %v535, %v2526
      %v2561 = vsel %vm638, %v2529, 0.0
      %2562 = vadd.xlane.f32.xlu0 %v2561
      %v2563 = vpop.xlane.xlu0 %2562
      %v2564 = vsel %vm638, %v2530, 0.0
      %2565 = vadd.xlane.f32.xlu0 %v2564
      %v2566 = vpop.xlane.xlu0 %2565
      %v2567 = vsel %vm638, %v2531, 0.0
      %2568 = vadd.xlane.f32.xlu0 %v2567
      %v2569 = vpop.xlane.xlu0 %2568
      %v2570 = vsel %vm638, %v2532, 0.0
      %2571 = vadd.xlane.f32.xlu0 %v2570
      %v2572 = vpop.xlane.xlu0 %2571
      %v2573 = vsel %vm638, %v2533, 0.0
      %2574 = vadd.xlane.f32.xlu0 %v2573
      %v2575 = vpop.xlane.xlu0 %2574
      %v2576 = vsel %vm638, %v2534, 0.0
      %2577 = vadd.xlane.f32.xlu0 %v2576
      %v2578 = vpop.xlane.xlu0 %2577
      %v2579 = vsel %vm638, %v2535, 0.0
      %2580 = vadd.xlane.f32.xlu0 %v2579
      %v2581 = vpop.xlane.xlu0 %2580
      %v2582 = vsel %vm638, %v2536, 0.0
      %2583 = vadd.xlane.f32.xlu0 %v2582
      %v2584 = vpop.xlane.xlu0 %2583
      %v2585 = vsel %vm638, %v2537, 0.0
      %2586 = vadd.xlane.f32.xlu0 %v2585
      %v2587 = vpop.xlane.xlu0 %2586
      %v2588 = vsel %vm638, %v2538, 0.0
      %2589 = vadd.xlane.f32.xlu0 %v2588
      %v2590 = vpop.xlane.xlu0 %2589
      %v2591 = vsel %vm638, %v2539, 0.0
      %2592 = vadd.xlane.f32.xlu0 %v2591
      %v2593 = vpop.xlane.xlu0 %2592
      %v2594 = vsel %vm638, %v2540, 0.0
      %2595 = vadd.xlane.f32.xlu0 %v2594
      %v2596 = vpop.xlane.xlu0 %2595
      %v2597 = vsel %vm638, %v2541, 0.0
      %2598 = vadd.xlane.f32.xlu0 %v2597
      %v2599 = vpop.xlane.xlu0 %2598
      %v2600 = vsel %vm638, %v2542, 0.0
      %2601 = vadd.xlane.f32.xlu0 %v2600
      %v2602 = vpop.xlane.xlu0 %2601
      %v2603 = vsel %vm638, %v2543, 0.0
      %2604 = vadd.xlane.f32.xlu0 %v2603
      %v2605 = vpop.xlane.xlu0 %2604
      %v2606 = vsel %vm638, %v2544, 0.0
      %2607 = vadd.xlane.f32.xlu0 %v2606
      %v2608 = vpop.xlane.xlu0 %2607
      %v2609 = vsel %vm638, %v2545, 0.0
      %2610 = vadd.xlane.f32.xlu0 %v2609
      %v2611 = vpop.xlane.xlu0 %2610
      %v2612 = vsel %vm638, %v2546, 0.0
      %2613 = vadd.xlane.f32.xlu0 %v2612
      %v2614 = vpop.xlane.xlu0 %2613
      %v2615 = vsel %vm638, %v2547, 0.0
      %2616 = vadd.xlane.f32.xlu0 %v2615
      %v2617 = vpop.xlane.xlu0 %2616
      %v2618 = vsel %vm638, %v2548, 0.0
      %2619 = vadd.xlane.f32.xlu0 %v2618
      %v2620 = vpop.xlane.xlu0 %2619
      %v2621 = vsel %vm638, %v2549, 0.0
      %2622 = vadd.xlane.f32.xlu0 %v2621
      %v2623 = vpop.xlane.xlu0 %2622
      %v2624 = vsel %vm638, %v2550, 0.0
      %2625 = vadd.xlane.f32.xlu0 %v2624
      %v2626 = vpop.xlane.xlu0 %2625
      %v2627 = vsel %vm638, %v2551, 0.0
      %2628 = vadd.xlane.f32.xlu0 %v2627
      %v2629 = vpop.xlane.xlu0 %2628
      %v2630 = vsel %vm638, %v2552, 0.0
      %2631 = vadd.xlane.f32.xlu0 %v2630
      %v2632 = vpop.xlane.xlu0 %2631
      %v2633 = vsel %vm638, %v2553, 0.0
      %2634 = vadd.xlane.f32.xlu0 %v2633
      %v2635 = vpop.xlane.xlu0 %2634
      %v2636 = vsel %vm638, %v2554, 0.0
      %2637 = vadd.xlane.f32.xlu0 %v2636
      %v2638 = vpop.xlane.xlu0 %2637
      %v2639 = vsel %vm638, %v2555, 0.0
      %2640 = vadd.xlane.f32.xlu0 %v2639
      %v2641 = vpop.xlane.xlu0 %2640
      %v2642 = vsel %vm638, %v2556, 0.0
      %2643 = vadd.xlane.f32.xlu0 %v2642
      %v2644 = vpop.xlane.xlu0 %2643
      %v2645 = vsel %vm638, %v2557, 0.0
      %2646 = vadd.xlane.f32.xlu0 %v2645
      %v2647 = vpop.xlane.xlu0 %2646
      %v2648 = vsel %vm638, %v2558, 0.0
      %2649 = vadd.xlane.f32.xlu0 %v2648
      %v2650 = vpop.xlane.xlu0 %2649
      %v2651 = vsel %vm638, %v2559, 0.0
      %2652 = vadd.xlane.f32.xlu0 %v2651
      %v2653 = vpop.xlane.xlu0 %2652
      %v2654 = vsel %vm638, %v2560, 0.0
      %2655 = vadd.xlane.f32.xlu0 %v2654
      %v2656 = vpop.xlane.xlu0 %2655
      %v2657 = vrcp.pop 32.0
      %v2658 = vmul.f32 %v2563, %v2657
      %v2659 = vmul.f32 %v2566, %v2657
      %v2660 = vmul.f32 %v2569, %v2657
      %v2661 = vmul.f32 %v2572, %v2657
      %v2662 = vmul.f32 %v2575, %v2657
      %v2663 = vmul.f32 %v2578, %v2657
      %v2664 = vmul.f32 %v2581, %v2657
      %v2665 = vmul.f32 %v2584, %v2657
      %v2666 = vmul.f32 %v2587, %v2657
      %v2667 = vmul.f32 %v2590, %v2657
      %v2668 = vmul.f32 %v2593, %v2657
      %v2669 = vmul.f32 %v2596, %v2657
      %v2670 = vmul.f32 %v2599, %v2657
      %v2671 = vmul.f32 %v2602, %v2657
      %v2672 = vmul.f32 %v2605, %v2657
      %v2673 = vmul.f32 %v2608, %v2657
      %v2674 = vmul.f32 %v2611, %v2657
      %v2675 = vmul.f32 %v2614, %v2657
      %v2676 = vmul.f32 %v2617, %v2657
      %v2677 = vmul.f32 %v2620, %v2657
      %v2678 = vmul.f32 %v2623, %v2657
      %v2679 = vmul.f32 %v2626, %v2657
      %v2680 = vmul.f32 %v2629, %v2657
      %v2681 = vmul.f32 %v2632, %v2657
      %v2682 = vmul.f32 %v2635, %v2657
      %v2683 = vmul.f32 %v2638, %v2657
      %v2684 = vmul.f32 %v2641, %v2657
      %v2685 = vmul.f32 %v2644, %v2657
      %v2686 = vmul.f32 %v2647, %v2657
      %v2687 = vmul.f32 %v2650, %v2657
      %v2688 = vmul.f32 %v2653, %v2657
      %v2689 = vmul.f32 %v2656, %v2657
      %v2690 = vsub.f32 %v2529, %v2658
      %v2691 = vsub.f32 %v2530, %v2659
      %v2692 = vsub.f32 %v2531, %v2660
      %v2693 = vsub.f32 %v2532, %v2661
      %v2694 = vsub.f32 %v2533, %v2662
      %v2695 = vsub.f32 %v2534, %v2663
      %v2696 = vsub.f32 %v2535, %v2664
      %v2697 = vsub.f32 %v2536, %v2665
      %v2698 = vsub.f32 %v2537, %v2666
      %v2699 = vsub.f32 %v2538, %v2667
      %v2700 = vsub.f32 %v2539, %v2668
      %v2701 = vsub.f32 %v2540, %v2669
      %v2702 = vsub.f32 %v2541, %v2670
      %v2703 = vsub.f32 %v2542, %v2671
      %v2704 = vsub.f32 %v2543, %v2672
      %v2705 = vsub.f32 %v2544, %v2673
      %v2706 = vsub.f32 %v2545, %v2674
      %v2707 = vsub.f32 %v2546, %v2675
      %v2708 = vsub.f32 %v2547, %v2676
      %v2709 = vsub.f32 %v2548, %v2677
      %v2710 = vsub.f32 %v2549, %v2678
      %v2711 = vsub.f32 %v2550, %v2679
      %v2712 = vsub.f32 %v2551, %v2680
      %v2713 = vsub.f32 %v2552, %v2681
      %v2714 = vsub.f32 %v2553, %v2682
      %v2715 = vsub.f32 %v2554, %v2683
      %v2716 = vsub.f32 %v2555, %v2684
      %v2717 = vsub.f32 %v2556, %v2685
      %v2718 = vsub.f32 %v2557, %v2686
      %v2719 = vsub.f32 %v2558, %v2687
      %v2720 = vsub.f32 %v2559, %v2688
      %v2721 = vsub.f32 %v2560, %v2689
      %v2722 = vmul.f32 %v2690, %v2690
      %v2723 = vmul.f32 %v2691, %v2691
      %v2724 = vmul.f32 %v2692, %v2692
      %v2725 = vmul.f32 %v2693, %v2693
      %v2726 = vmul.f32 %v2694, %v2694
      %v2727 = vmul.f32 %v2695, %v2695
      %v2728 = vmul.f32 %v2696, %v2696
      %v2729 = vmul.f32 %v2697, %v2697
      %v2730 = vmul.f32 %v2698, %v2698
      %v2731 = vmul.f32 %v2699, %v2699
      %v2732 = vmul.f32 %v2700, %v2700
      %v2733 = vmul.f32 %v2701, %v2701
      %v2734 = vmul.f32 %v2702, %v2702
      %v2735 = vmul.f32 %v2703, %v2703
      %v2736 = vmul.f32 %v2704, %v2704
      %v2737 = vmul.f32 %v2705, %v2705
      %v2738 = vmul.f32 %v2706, %v2706
      %v2739 = vmul.f32 %v2707, %v2707
      %v2740 = vmul.f32 %v2708, %v2708
      %v2741 = vmul.f32 %v2709, %v2709
      %v2742 = vmul.f32 %v2710, %v2710
      %v2743 = vmul.f32 %v2711, %v2711
      %v2744 = vmul.f32 %v2712, %v2712
      %v2745 = vmul.f32 %v2713, %v2713
      %v2746 = vmul.f32 %v2714, %v2714
      %v2747 = vmul.f32 %v2715, %v2715
      %v2748 = vmul.f32 %v2716, %v2716
      %v2749 = vmul.f32 %v2717, %v2717
      %v2750 = vmul.f32 %v2718, %v2718
      %v2751 = vmul.f32 %v2719, %v2719
      %v2752 = vmul.f32 %v2720, %v2720
      %v2753 = vmul.f32 %v2721, %v2721
      %v2754 = vsel %vm638, %v2722, 0.0
      %2755 = vadd.xlane.f32.xlu0 %v2754
      %v2756 = vpop.xlane.xlu0 %2755
      %v2757 = vsel %vm638, %v2723, 0.0
      %2758 = vadd.xlane.f32.xlu0 %v2757
      %v2759 = vpop.xlane.xlu0 %2758
      %v2760 = vsel %vm638, %v2724, 0.0
      %2761 = vadd.xlane.f32.xlu0 %v2760
      %v2762 = vpop.xlane.xlu0 %2761
      %v2763 = vsel %vm638, %v2725, 0.0
      %2764 = vadd.xlane.f32.xlu0 %v2763
      %v2765 = vpop.xlane.xlu0 %2764
      %v2766 = vsel %vm638, %v2726, 0.0
      %2767 = vadd.xlane.f32.xlu0 %v2766
      %v2768 = vpop.xlane.xlu0 %2767
      %v2769 = vsel %vm638, %v2727, 0.0
      %2770 = vadd.xlane.f32.xlu0 %v2769
      %v2771 = vpop.xlane.xlu0 %2770
      %v2772 = vsel %vm638, %v2728, 0.0
      %2773 = vadd.xlane.f32.xlu0 %v2772
      %v2774 = vpop.xlane.xlu0 %2773
      %v2775 = vsel %vm638, %v2729, 0.0
      %2776 = vadd.xlane.f32.xlu0 %v2775
      %v2777 = vpop.xlane.xlu0 %2776
      %v2778 = vsel %vm638, %v2730, 0.0
      %2779 = vadd.xlane.f32.xlu0 %v2778
      %v2780 = vpop.xlane.xlu0 %2779
      %v2781 = vsel %vm638, %v2731, 0.0
      %2782 = vadd.xlane.f32.xlu0 %v2781
      %v2783 = vpop.xlane.xlu0 %2782
      %v2784 = vsel %vm638, %v2732, 0.0
      %2785 = vadd.xlane.f32.xlu0 %v2784
      %v2786 = vpop.xlane.xlu0 %2785
      %v2787 = vsel %vm638, %v2733, 0.0
      %2788 = vadd.xlane.f32.xlu0 %v2787
      %v2789 = vpop.xlane.xlu0 %2788
      %v2790 = vsel %vm638, %v2734, 0.0
      %2791 = vadd.xlane.f32.xlu0 %v2790
      %v2792 = vpop.xlane.xlu0 %2791
      %v2793 = vsel %vm638, %v2735, 0.0
      %2794 = vadd.xlane.f32.xlu0 %v2793
      %v2795 = vpop.xlane.xlu0 %2794
      %v2796 = vsel %vm638, %v2736, 0.0
      %2797 = vadd.xlane.f32.xlu0 %v2796
      %v2798 = vpop.xlane.xlu0 %2797
      %v2799 = vsel %vm638, %v2737, 0.0
      %2800 = vadd.xlane.f32.xlu0 %v2799
      %v2801 = vpop.xlane.xlu0 %2800
      %v2802 = vsel %vm638, %v2738, 0.0
      %2803 = vadd.xlane.f32.xlu0 %v2802
      %v2804 = vpop.xlane.xlu0 %2803
      %v2805 = vsel %vm638, %v2739, 0.0
      %2806 = vadd.xlane.f32.xlu0 %v2805
      %v2807 = vpop.xlane.xlu0 %2806
      %v2808 = vsel %vm638, %v2740, 0.0
      %2809 = vadd.xlane.f32.xlu0 %v2808
      %v2810 = vpop.xlane.xlu0 %2809
      %v2811 = vsel %vm638, %v2741, 0.0
      %2812 = vadd.xlane.f32.xlu0 %v2811
      %v2813 = vpop.xlane.xlu0 %2812
      %v2814 = vsel %vm638, %v2742, 0.0
      %2815 = vadd.xlane.f32.xlu0 %v2814
      %v2816 = vpop.xlane.xlu0 %2815
      %v2817 = vsel %vm638, %v2743, 0.0
      %2818 = vadd.xlane.f32.xlu0 %v2817
      %v2819 = vpop.xlane.xlu0 %2818
      %v2820 = vsel %vm638, %v2744, 0.0
      %2821 = vadd.xlane.f32.xlu0 %v2820
      %v2822 = vpop.xlane.xlu0 %2821
      %v2823 = vsel %vm638, %v2745, 0.0
      %2824 = vadd.xlane.f32.xlu0 %v2823
      %v2825 = vpop.xlane.xlu0 %2824
      %v2826 = vsel %vm638, %v2746, 0.0
      %2827 = vadd.xlane.f32.xlu0 %v2826
      %v2828 = vpop.xlane.xlu0 %2827
      %v2829 = vsel %vm638, %v2747, 0.0
      %2830 = vadd.xlane.f32.xlu0 %v2829
      %v2831 = vpop.xlane.xlu0 %2830
      %v2832 = vsel %vm638, %v2748, 0.0
      %2833 = vadd.xlane.f32.xlu0 %v2832
      %v2834 = vpop.xlane.xlu0 %2833
      %v2835 = vsel %vm638, %v2749, 0.0
      %2836 = vadd.xlane.f32.xlu0 %v2835
      %v2837 = vpop.xlane.xlu0 %2836
      %v2838 = vsel %vm638, %v2750, 0.0
      %2839 = vadd.xlane.f32.xlu0 %v2838
      %v2840 = vpop.xlane.xlu0 %2839
      %v2841 = vsel %vm638, %v2751, 0.0
      %2842 = vadd.xlane.f32.xlu0 %v2841
      %v2843 = vpop.xlane.xlu0 %2842
      %v2844 = vsel %vm638, %v2752, 0.0
      %2845 = vadd.xlane.f32.xlu0 %v2844
      %v2846 = vpop.xlane.xlu0 %2845
      %v2847 = vsel %vm638, %v2753, 0.0
      %2848 = vadd.xlane.f32.xlu0 %v2847
      %v2849 = vpop.xlane.xlu0 %2848
      %v2850 = vmul.f32 %v2756, %v2657
      %v2851 = vmul.f32 %v2759, %v2657
      %v2852 = vmul.f32 %v2762, %v2657
      %v2853 = vmul.f32 %v2765, %v2657
      %v2854 = vmul.f32 %v2768, %v2657
      %v2855 = vmul.f32 %v2771, %v2657
      %v2856 = vmul.f32 %v2774, %v2657
      %v2857 = vmul.f32 %v2777, %v2657
      %v2858 = vmul.f32 %v2780, %v2657
      %v2859 = vmul.f32 %v2783, %v2657
      %v2860 = vmul.f32 %v2786, %v2657
      %v2861 = vmul.f32 %v2789, %v2657
      %v2862 = vmul.f32 %v2792, %v2657
      %v2863 = vmul.f32 %v2795, %v2657
      %v2864 = vmul.f32 %v2798, %v2657
      %v2865 = vmul.f32 %v2801, %v2657
      %v2866 = vmul.f32 %v2804, %v2657
      %v2867 = vmul.f32 %v2807, %v2657
      %v2868 = vmul.f32 %v2810, %v2657
      %v2869 = vmul.f32 %v2813, %v2657
      %v2870 = vmul.f32 %v2816, %v2657
      %v2871 = vmul.f32 %v2819, %v2657
      %v2872 = vmul.f32 %v2822, %v2657
      %v2873 = vmul.f32 %v2825, %v2657
      %v2874 = vmul.f32 %v2828, %v2657
      %v2875 = vmul.f32 %v2831, %v2657
      %v2876 = vmul.f32 %v2834, %v2657
      %v2877 = vmul.f32 %v2837, %v2657
      %v2878 = vmul.f32 %v2840, %v2657
      %v2879 = vmul.f32 %v2843, %v2657
      %v2880 = vmul.f32 %v2846, %v2657
      %v2881 = vmul.f32 %v2849, %v2657
      %v2882 = vadd.f32 %v2850, 1e-05
      %v2883 = vadd.f32 %v2851, 1e-05
      %v2884 = vadd.f32 %v2852, 1e-05
      %v2885 = vadd.f32 %v2853, 1e-05
      %v2886 = vadd.f32 %v2854, 1e-05
      %v2887 = vadd.f32 %v2855, 1e-05
      %v2888 = vadd.f32 %v2856, 1e-05
      %v2889 = vadd.f32 %v2857, 1e-05
      %v2890 = vadd.f32 %v2858, 1e-05
      %v2891 = vadd.f32 %v2859, 1e-05
      %v2892 = vadd.f32 %v2860, 1e-05
      %v2893 = vadd.f32 %v2861, 1e-05
      %v2894 = vadd.f32 %v2862, 1e-05
      %v2895 = vadd.f32 %v2863, 1e-05
      %v2896 = vadd.f32 %v2864, 1e-05
      %v2897 = vadd.f32 %v2865, 1e-05
      %v2898 = vadd.f32 %v2866, 1e-05
      %v2899 = vadd.f32 %v2867, 1e-05
      %v2900 = vadd.f32 %v2868, 1e-05
      %v2901 = vadd.f32 %v2869, 1e-05
      %v2902 = vadd.f32 %v2870, 1e-05
      %v2903 = vadd.f32 %v2871, 1e-05
      %v2904 = vadd.f32 %v2872, 1e-05
      %v2905 = vadd.f32 %v2873, 1e-05
      %v2906 = vadd.f32 %v2874, 1e-05
      %v2907 = vadd.f32 %v2875, 1e-05
      %v2908 = vadd.f32 %v2876, 1e-05
      %v2909 = vadd.f32 %v2877, 1e-05
      %v2910 = vadd.f32 %v2878, 1e-05
      %v2911 = vadd.f32 %v2879, 1e-05
      %v2912 = vadd.f32 %v2880, 1e-05
      %v2913 = vadd.f32 %v2881, 1e-05
      %v2914 = vrsqrt.pop %v2882
      %v2915 = vrsqrt.pop %v2883
      %v2916 = vrsqrt.pop %v2884
      %v2917 = vrsqrt.pop %v2885
      %v2918 = vrsqrt.pop %v2886
      %v2919 = vrsqrt.pop %v2887
      %v2920 = vrsqrt.pop %v2888
      %v2921 = vrsqrt.pop %v2889
      %v2922 = vrsqrt.pop %v2890
      %v2923 = vrsqrt.pop %v2891
      %v2924 = vrsqrt.pop %v2892
      %v2925 = vrsqrt.pop %v2893
      %v2926 = vrsqrt.pop %v2894
      %v2927 = vrsqrt.pop %v2895
      %v2928 = vrsqrt.pop %v2896
      %v2929 = vrsqrt.pop %v2897
      %v2930 = vrsqrt.pop %v2898
      %v2931 = vrsqrt.pop %v2899
      %v2932 = vrsqrt.pop %v2900
      %v2933 = vrsqrt.pop %v2901
      %v2934 = vrsqrt.pop %v2902
      %v2935 = vrsqrt.pop %v2903
      %v2936 = vrsqrt.pop %v2904
      %v2937 = vrsqrt.pop %v2905
      %v2938 = vrsqrt.pop %v2906
      %v2939 = vrsqrt.pop %v2907
      %v2940 = vrsqrt.pop %v2908
      %v2941 = vrsqrt.pop %v2909
      %v2942 = vrsqrt.pop %v2910
      %v2943 = vrsqrt.pop %v2911
      %v2944 = vrsqrt.pop %v2912
      %v2945 = vrsqrt.pop %v2913
      %v2946 = vmul.f32 %v2690, %v2914
      %v2947 = vmul.f32 %v2691, %v2915
      %v2948 = vmul.f32 %v2692, %v2916
      %v2949 = vmul.f32 %v2693, %v2917
      %v2950 = vmul.f32 %v2694, %v2918
      %v2951 = vmul.f32 %v2695, %v2919
      %v2952 = vmul.f32 %v2696, %v2920
      %v2953 = vmul.f32 %v2697, %v2921
      %v2954 = vmul.f32 %v2698, %v2922
      %v2955 = vmul.f32 %v2699, %v2923
      %v2956 = vmul.f32 %v2700, %v2924
      %v2957 = vmul.f32 %v2701, %v2925
      %v2958 = vmul.f32 %v2702, %v2926
      %v2959 = vmul.f32 %v2703, %v2927
      %v2960 = vmul.f32 %v2704, %v2928
      %v2961 = vmul.f32 %v2705, %v2929
      %v2962 = vmul.f32 %v2706, %v2930
      %v2963 = vmul.f32 %v2707, %v2931
      %v2964 = vmul.f32 %v2708, %v2932
      %v2965 = vmul.f32 %v2709, %v2933
      %v2966 = vmul.f32 %v2710, %v2934
      %v2967 = vmul.f32 %v2711, %v2935
      %v2968 = vmul.f32 %v2712, %v2936
      %v2969 = vmul.f32 %v2713, %v2937
      %v2970 = vmul.f32 %v2714, %v2938
      %v2971 = vmul.f32 %v2715, %v2939
      %v2972 = vmul.f32 %v2716, %v2940
      %v2973 = vmul.f32 %v2717, %v2941
      %v2974 = vmul.f32 %v2718, %v2942
      %v2975 = vmul.f32 %v2719, %v2943
      %v2976 = vmul.f32 %v2720, %v2944
      %v2977 = vmul.f32 %v2721, %v2945
      %v2978 = vlaneseq
      %v2979 = vshrl.u32 %v2978, 7
      %v2980 = vsub.s32 4, %v2979
      %v2981 = vrot.slane %v536, %v2980
      %v2982 = vmul.f32 %v2946, %v2981
      %v2983 = vmul.f32 %v2947, %v2981
      %v2984 = vmul.f32 %v2948, %v2981
      %v2985 = vmul.f32 %v2949, %v2981
      %v2986 = vmul.f32 %v2950, %v2981
      %v2987 = vmul.f32 %v2951, %v2981
      %v2988 = vmul.f32 %v2952, %v2981
      %v2989 = vmul.f32 %v2953, %v2981
      %v2990 = vmul.f32 %v2954, %v2981
      %v2991 = vmul.f32 %v2955, %v2981
      %v2992 = vmul.f32 %v2956, %v2981
      %v2993 = vmul.f32 %v2957, %v2981
      %v2994 = vmul.f32 %v2958, %v2981
      %v2995 = vmul.f32 %v2959, %v2981
      %v2996 = vmul.f32 %v2960, %v2981
      %v2997 = vmul.f32 %v2961, %v2981
      %v2998 = vmul.f32 %v2962, %v2981
      %v2999 = vmul.f32 %v2963, %v2981
      %v3000 = vmul.f32 %v2964, %v2981
      %v3001 = vmul.f32 %v2965, %v2981
      %v3002 = vmul.f32 %v2966, %v2981
      %v3003 = vmul.f32 %v2967, %v2981
      %v3004 = vmul.f32 %v2968, %v2981
      %v3005 = vmul.f32 %v2969, %v2981
      %v3006 = vmul.f32 %v2970, %v2981
      %v3007 = vmul.f32 %v2971, %v2981
      %v3008 = vmul.f32 %v2972, %v2981
      %v3009 = vmul.f32 %v2973, %v2981
      %v3010 = vmul.f32 %v2974, %v2981
      %v3011 = vmul.f32 %v2975, %v2981
      %v3012 = vmul.f32 %v2976, %v2981
      %v3013 = vmul.f32 %v2977, %v2981
      %v3014 = vlaneseq
      %v3015 = vshrl.u32 %v3014, 7
      %v3016 = vsub.s32 5, %v3015
      %v3017 = vrot.slane %v536, %v3016
      %v3018 = vadd.f32 %v2982, %v3017
      %v3019 = vadd.f32 %v2983, %v3017
      %v3020 = vadd.f32 %v2984, %v3017
      %v3021 = vadd.f32 %v2985, %v3017
      %v3022 = vadd.f32 %v2986, %v3017
      %v3023 = vadd.f32 %v2987, %v3017
      %v3024 = vadd.f32 %v2988, %v3017
      %v3025 = vadd.f32 %v2989, %v3017
      %v3026 = vadd.f32 %v2990, %v3017
      %v3027 = vadd.f32 %v2991, %v3017
      %v3028 = vadd.f32 %v2992, %v3017
      %v3029 = vadd.f32 %v2993, %v3017
      %v3030 = vadd.f32 %v2994, %v3017
      %v3031 = vadd.f32 %v2995, %v3017
      %v3032 = vadd.f32 %v2996, %v3017
      %v3033 = vadd.f32 %v2997, %v3017
      %v3034 = vadd.f32 %v2998, %v3017
      %v3035 = vadd.f32 %v2999, %v3017
      %v3036 = vadd.f32 %v3000, %v3017
      %v3037 = vadd.f32 %v3001, %v3017
      %v3038 = vadd.f32 %v3002, %v3017
      %v3039 = vadd.f32 %v3003, %v3017
      %v3040 = vadd.f32 %v3004, %v3017
      %v3041 = vadd.f32 %v3005, %v3017
      %v3042 = vadd.f32 %v3006, %v3017
      %v3043 = vadd.f32 %v3007, %v3017
      %v3044 = vadd.f32 %v3008, %v3017
      %v3045 = vadd.f32 %v3009, %v3017
      %v3046 = vadd.f32 %v3010, %v3017
      %v3047 = vadd.f32 %v3011, %v3017
      %v3048 = vadd.f32 %v3012, %v3017
      %v3049 = vadd.f32 %v3013, %v3017
      %v3050 = vpack.c.bf16 %v3019, %v3018
      %v3051 = vpack.c.bf16 %v3021, %v3020
      %v3052 = vpack.c.bf16 %v3023, %v3022
      %v3053 = vpack.c.bf16 %v3025, %v3024
      %v3054 = vpack.c.bf16 %v3027, %v3026
      %v3055 = vpack.c.bf16 %v3029, %v3028
      %v3056 = vpack.c.bf16 %v3031, %v3030
      %v3057 = vpack.c.bf16 %v3033, %v3032
      %v3058 = vpack.c.bf16 %v3035, %v3034
      %v3059 = vpack.c.bf16 %v3037, %v3036
      %v3060 = vpack.c.bf16 %v3039, %v3038
      %v3061 = vpack.c.bf16 %v3041, %v3040
      %v3062 = vpack.c.bf16 %v3043, %v3042
      %v3063 = vpack.c.bf16 %v3045, %v3044
      %v3064 = vpack.c.bf16 %v3047, %v3046
      %v3065 = vpack.c.bf16 %v3049, %v3048
      %v3066 = vld [vmem:[%s5] sm:$0xf]
      %v3067 = vld [vmem:[%s5 + $0x4] sm:$0xf]
      %v3068 = vld [vmem:[%s5 + $0x8] sm:$0xf]
      %v3069 = vld [vmem:[%s5 + $0xc] sm:$0xf]
      %v3070 = vlaneseq
      %v3071 = vshrl.u32 %v3070, 7
      %v3072 = vsub.s32 6, %v3071
      %v3073 = vrot.slane %v536, %v3072
      %v3078 = vunpack.c.l.b16 %v3066
      %v3079 = vunpack.c.l.b16 %v3067
      %v3080 = vunpack.c.l.b16 %v3068
      %v3081 = vunpack.c.l.b16 %v3069
      %v3082 = vpack.c.b16 %v3079, %v3078
      %v3083 = vpack.c.b16 %v3081, %v3080
      %v3087 = vsel %vm638, %v3050, 0
      %v3090 = vsel %vm638, %v3051, 0
      %v3093 = vsel %vm638, %v3052, 0
      %v3096 = vsel %vm638, %v3053, 0
      %v3099 = vsel %vm638, %v3054, 0
      %v3102 = vsel %vm638, %v3055, 0
      %v3105 = vsel %vm638, %v3056, 0
      %v3108 = vsel %vm638, %v3057, 0
      %v3111 = vsel %vm638, %v3058, 0
      %v3114 = vsel %vm638, %v3059, 0
      %v3117 = vsel %vm638, %v3060, 0
      %v3120 = vsel %vm638, %v3061, 0
      %v3123 = vsel %vm638, %v3062, 0
      %v3126 = vsel %vm638, %v3063, 0
      %v3129 = vsel %vm638, %v3064, 0
      %v3132 = vsel %vm638, %v3065, 0
      %3134 = vmatprep.subr.bf16.mxu0 0
      %3135 = vmatpush1.bf16.msra.mxu0 %v3082
      %3136 = vmatprep.subr.bf16.mxu0 0
      %3137 = vmatpush1.bf16.msra.mxu0 %v3083
      %3138 = vmatprep.subr.bf16.mxu0 0
      %3139 = vmatpush1.bf16.msra.mxu0 0
      %3140 = vmatprep.subr.bf16.mxu0 0
      %3141 = vmatpush1.bf16.msra.mxu0 0
      %3142 = vmatprep.subr.bf16.mxu0 0
      %3143 = vmatpush1.bf16.msra.mxu0 0
      %3144 = vmatprep.subr.bf16.mxu0 0
      %3145 = vmatpush1.bf16.msra.mxu0 0
      %3146 = vmatprep.subr.bf16.mxu0 0
      %3147 = vmatpush1.bf16.msra.mxu0 0
      %3148 = vmatprep.subr.bf16.mxu0 0
      %3149 = vmatpush1.bf16.msra.mxu0 0
      %3150 = vmatprep.subr.bf16.mxu0 0
      %3151 = vmatpush1.bf16.msra.mxu0 0
      %3152 = vmatprep.subr.bf16.mxu0 0
      %3153 = vmatpush1.bf16.msra.mxu0 0
      %3154 = vmatprep.subr.bf16.mxu0 0
      %3155 = vmatpush1.bf16.msra.mxu0 0
      %3156 = vmatprep.subr.bf16.mxu0 0
      %3157 = vmatpush1.bf16.msra.mxu0 0
      %3158 = vmatprep.subr.bf16.mxu0 0
      %3159 = vmatpush1.bf16.msra.mxu0 0
      %3160 = vmatprep.subr.bf16.mxu0 0
      %3161 = vmatpush1.bf16.msra.mxu0 0
      %3162 = vmatprep.subr.bf16.mxu0 0
      %3163 = vmatpush1.bf16.msra.mxu0 0
      %3164 = vmatprep.subr.bf16.mxu0 0
      %3165 = vmatpush1.bf16.msra.mxu0 0
      %3166 = vmatprep.mubr.bf16.mxu0 0
      %3167 = vmatmul.mubr.bf16.gmra.mrb[0].mxu0 %v3087
      %v3168 = vpop.f32.mrb[0].mxu0
      %v3169 = vadd.f32 %v3073, %v3168
      %v3170 = vpop.f32.mrb[0].mxu0
      %v3171 = vpop.f32.mrb[0].mxu0
      %v3172 = vadd.f32 %v3073, %v3171
      %v3173 = vpop.f32.mrb[0].mxu0
      %3174 = vmatprep.mubr.bf16.mxu0 0
      %3175 = vmatmul.mubr.bf16.gmra.mrb[0].mxu0 %v3090
      %v3176 = vpop.f32.mrb[0].mxu0
      %v3177 = vadd.f32 %v3073, %v3176
      %v3178 = vpop.f32.mrb[0].mxu0
      %v3179 = vpop.f32.mrb[0].mxu0
      %v3180 = vadd.f32 %v3073, %v3179
      %v3181 = vpop.f32.mrb[0].mxu0
      %3182 = vmatprep.mubr.bf16.mxu0 0
      %3183 = vmatmul.mubr.bf16.gmra.mrb[0].mxu0 %v3093
      %v3184 = vpop.f32.mrb[0].mxu0
      %v3185 = vadd.f32 %v3073, %v3184
      %v3186 = vpop.f32.mrb[0].mxu0
      %v3187 = vpop.f32.mrb[0].mxu0
      %v3188 = vadd.f32 %v3073, %v3187
      %v3189 = vpop.f32.mrb[0].mxu0
      %3190 = vmatprep.mubr.bf16.mxu0 0
      %3191 = vmatmul.mubr.bf16.gmra.mrb[0].mxu0 %v3096
      %v3192 = vpop.f32.mrb[0].mxu0
      %v3193 = vadd.f32 %v3073, %v3192
      %v3194 = vpop.f32.mrb[0].mxu0
      %v3195 = vpop.f32.mrb[0].mxu0
      %v3196 = vadd.f32 %v3073, %v3195
      %v3197 = vpop.f32.mrb[0].mxu0
      %3198 = vmatprep.mubr.bf16.mxu0 0
      %3199 = vmatmul.mubr.bf16.gmra.mrb[0].mxu0 %v3099
      %v3200 = vpop.f32.mrb[0].mxu0
      %v3201 = vadd.f32 %v3073, %v3200
      %v3202 = vpop.f32.mrb[0].mxu0
      %v3203 = vpop.f32.mrb[0].mxu0
      %v3204 = vadd.f32 %v3073, %v3203
      %v3205 = vpop.f32.mrb[0].mxu0
      %3206 = vmatprep.mubr.bf16.mxu0 0
      %3207 = vmatmul.mubr.bf16.gmra.mrb[0].mxu0 %v3102
      %v3208 = vpop.f32.mrb[0].mxu0
      %v3209 = vadd.f32 %v3073, %v3208
      %v3210 = vpop.f32.mrb[0].mxu0
      %v3211 = vpop.f32.mrb[0].mxu0
      %v3212 = vadd.f32 %v3073, %v3211
      %v3213 = vpop.f32.mrb[0].mxu0
      %3214 = vmatprep.mubr.bf16.mxu0 0
      %3215 = vmatmul.mubr.bf16.gmra.mrb[0].mxu0 %v3105
      %v3216 = vpop.f32.mrb[0].mxu0
      %v3217 = vadd.f32 %v3073, %v3216
      %v3218 = vpop.f32.mrb[0].mxu0
      %v3219 = vpop.f32.mrb[0].mxu0
      %v3220 = vadd.f32 %v3073, %v3219
      %v3221 = vpop.f32.mrb[0].mxu0
      %3222 = vmatprep.mubr.bf16.mxu0 0
      %3223 = vmatmul.mubr.bf16.gmra.mrb[0].mxu0 %v3108
      %v3224 = vpop.f32.mrb[0].mxu0
      %v3225 = vadd.f32 %v3073, %v3224
      %v3226 = vpop.f32.mrb[0].mxu0
      %v3227 = vpop.f32.mrb[0].mxu0
      %v3228 = vadd.f32 %v3073, %v3227
      %v3229 = vpop.f32.mrb[0].mxu0
      %3230 = vmatprep.mubr.bf16.mxu0 0
      %3231 = vmatmul.mubr.bf16.gmra.mrb[0].mxu0 %v3111
      %v3232 = vpop.f32.mrb[0].mxu0
      %v3233 = vadd.f32 %v3073, %v3232
      %v3234 = vpop.f32.mrb[0].mxu0
      %v3235 = vpop.f32.mrb[0].mxu0
      %v3236 = vadd.f32 %v3073, %v3235
      %v3237 = vpop.f32.mrb[0].mxu0
      %3238 = vmatprep.mubr.bf16.mxu0 0
      %3239 = vmatmul.mubr.bf16.gmra.mrb[0].mxu0 %v3114
      %v3240 = vpop.f32.mrb[0].mxu0
      %v3241 = vadd.f32 %v3073, %v3240
      %v3242 = vpop.f32.mrb[0].mxu0
      %v3243 = vpop.f32.mrb[0].mxu0
      %v3244 = vadd.f32 %v3073, %v3243
      %v3245 = vpop.f32.mrb[0].mxu0
      %3246 = vmatprep.mubr.bf16.mxu0 0
      %3247 = vmatmul.mubr.bf16.gmra.mrb[0].mxu0 %v3117
      %v3248 = vpop.f32.mrb[0].mxu0
      %v3249 = vadd.f32 %v3073, %v3248
      %v3250 = vpop.f32.mrb[0].mxu0
      %v3251 = vpop.f32.mrb[0].mxu0
      %v3252 = vadd.f32 %v3073, %v3251
      %v3253 = vpop.f32.mrb[0].mxu0
      %3254 = vmatprep.mubr.bf16.mxu0 0
      %3255 = vmatmul.mubr.bf16.gmra.mrb[0].mxu0 %v3120
      %v3256 = vpop.f32.mrb[0].mxu0
      %v3257 = vadd.f32 %v3073, %v3256
      %v3258 = vpop.f32.mrb[0].mxu0
      %v3259 = vpop.f32.mrb[0].mxu0
      %v3260 = vadd.f32 %v3073, %v3259
      %v3261 = vpop.f32.mrb[0].mxu0
      %3262 = vmatprep.mubr.bf16.mxu0 0
      %3263 = vmatmul.mubr.bf16.gmra.mrb[0].mxu0 %v3123
      %v3264 = vpop.f32.mrb[0].mxu0
      %v3265 = vadd.f32 %v3073, %v3264
      %v3266 = vpop.f32.mrb[0].mxu0
      %v3267 = vpop.f32.mrb[0].mxu0
      %v3268 = vadd.f32 %v3073, %v3267
      %v3269 = vpop.f32.mrb[0].mxu0
      %3270 = vmatprep.mubr.bf16.mxu0 0
      %3271 = vmatmul.mubr.bf16.gmra.mrb[0].mxu0 %v3126
      %v3272 = vpop.f32.mrb[0].mxu0
      %v3273 = vadd.f32 %v3073, %v3272
      %v3274 = vpop.f32.mrb[0].mxu0
      %v3275 = vpop.f32.mrb[0].mxu0
      %v3276 = vadd.f32 %v3073, %v3275
      %v3277 = vpop.f32.mrb[0].mxu0
      %3278 = vmatprep.mubr.bf16.mxu0 0
      %3279 = vmatmul.mubr.bf16.gmra.mrb[0].mxu0 %v3129
      %v3280 = vpop.f32.mrb[0].mxu0
      %v3281 = vadd.f32 %v3073, %v3280
      %v3282 = vpop.f32.mrb[0].mxu0
      %v3283 = vpop.f32.mrb[0].mxu0
      %v3284 = vadd.f32 %v3073, %v3283
      %v3285 = vpop.f32.mrb[0].mxu0
      %3286 = vmatprep.mubr.bf16.mxu0 0
      %3287 = vmatmul.mubr.bf16.gmra.mrb[0].mxu0 %v3132
      %v3288 = vpop.f32.mrb[0].mxu0
      %v3289 = vadd.f32 %v3073, %v3288
      %v3290 = vpop.f32.mrb[0].mxu0
      %v3291 = vpop.f32.mrb[0].mxu0
      %v3292 = vadd.f32 %v3073, %v3291
      %v3293 = vpop.f32.mrb[0].mxu0
      %3294 = vdwg.mxu0
      %v3295 = vmax.f32 %v3169, 0.0
      %v3296 = vmax.f32 %v3172, 0.0
      %v3297 = vmax.f32 %v3177, 0.0
      %v3298 = vmax.f32 %v3180, 0.0
      %v3299 = vmax.f32 %v3185, 0.0
      %v3300 = vmax.f32 %v3188, 0.0
      %v3301 = vmax.f32 %v3193, 0.0
      %v3302 = vmax.f32 %v3196, 0.0
      %v3303 = vmax.f32 %v3201, 0.0
      %v3304 = vmax.f32 %v3204, 0.0
      %v3305 = vmax.f32 %v3209, 0.0
      %v3306 = vmax.f32 %v3212, 0.0
      %v3307 = vmax.f32 %v3217, 0.0
      %v3308 = vmax.f32 %v3220, 0.0
      %v3309 = vmax.f32 %v3225, 0.0
      %v3310 = vmax.f32 %v3228, 0.0
      %v3311 = vmax.f32 %v3233, 0.0
      %v3312 = vmax.f32 %v3236, 0.0
      %v3313 = vmax.f32 %v3241, 0.0
      %v3314 = vmax.f32 %v3244, 0.0
      %v3315 = vmax.f32 %v3249, 0.0
      %v3316 = vmax.f32 %v3252, 0.0
      %v3317 = vmax.f32 %v3257, 0.0
      %v3318 = vmax.f32 %v3260, 0.0
      %v3319 = vmax.f32 %v3265, 0.0
      %v3320 = vmax.f32 %v3268, 0.0
      %v3321 = vmax.f32 %v3273, 0.0
      %v3322 = vmax.f32 %v3276, 0.0
      %v3323 = vmax.f32 %v3281, 0.0
      %v3324 = vmax.f32 %v3284, 0.0
      %v3325 = vmax.f32 %v3289, 0.0
      %v3326 = vmax.f32 %v3292, 0.0
      %v3327 = vpack.c.bf16 %v3296, %v3295
      %v3328 = vpack.c.bf16 %v3298, %v3297
      %v3329 = vpack.c.bf16 %v3300, %v3299
      %v3330 = vpack.c.bf16 %v3302, %v3301
      %v3331 = vpack.c.bf16 %v3304, %v3303
      %v3332 = vpack.c.bf16 %v3306, %v3305
      %v3333 = vpack.c.bf16 %v3308, %v3307
      %v3334 = vpack.c.bf16 %v3310, %v3309
      %v3335 = vpack.c.bf16 %v3312, %v3311
      %v3336 = vpack.c.bf16 %v3314, %v3313
      %v3337 = vpack.c.bf16 %v3316, %v3315
      %v3338 = vpack.c.bf16 %v3318, %v3317
      %v3339 = vpack.c.bf16 %v3320, %v3319
      %v3340 = vpack.c.bf16 %v3322, %v3321
      %v3341 = vpack.c.bf16 %v3324, %v3323
      %v3342 = vpack.c.bf16 %v3326, %v3325
      %v3343 = vld [vmem:[%s6] sm:$0xf]
      %v3344 = vld [vmem:[%s6 + $0x4] sm:$0xf]
      %v3345 = vld [vmem:[%s6 + $0x8] sm:$0xf]
      %v3346 = vld [vmem:[%s6 + $0xc] sm:$0xf]
      %v3347 = vld [vmem:[%s6 + $0x10] sm:$0xf]
      %v3348 = vld [vmem:[%s6 + $0x14] sm:$0xf]
      %v3349 = vld [vmem:[%s6 + $0x18] sm:$0xf]
      %v3350 = vld [vmem:[%s6 + $0x1c] sm:$0xf]
      %v3351 = vlaneseq
      %v3352 = vshrl.u32 %v3351, 7
      %v3353 = vsub.s32 7, %v3352
      %v3354 = vrot.slane %v536, %v3353
      %v3363 = vunpack.c.l.b16 %v3343
      %v3364 = vunpack.c.l.b16 %v3344
      %v3365 = vunpack.c.l.b16 %v3345
      %v3366 = vunpack.c.l.b16 %v3346
      %v3367 = vunpack.c.l.b16 %v3347
      %v3368 = vunpack.c.l.b16 %v3348
      %v3369 = vunpack.c.l.b16 %v3349
      %v3370 = vunpack.c.l.b16 %v3350
      %v3371 = vpack.c.b16 %v3364, %v3363
      %v3372 = vpack.c.b16 %v3366, %v3365
      %v3373 = vpack.c.b16 %v3368, %v3367
      %v3374 = vpack.c.b16 %v3370, %v3369
      %vm3379 = vcmask 523264
      %v3381 = vsel %vm3379, %v3327, 0
      %v3384 = vsel %vm3379, %v3328, 0
      %v3387 = vsel %vm3379, %v3329, 0
      %v3390 = vsel %vm3379, %v3330, 0
      %v3393 = vsel %vm3379, %v3331, 0
      %v3396 = vsel %vm3379, %v3332, 0
      %v3399 = vsel %vm3379, %v3333, 0
      %v3402 = vsel %vm3379, %v3334, 0
      %v3405 = vsel %vm3379, %v3335, 0
      %v3408 = vsel %vm3379, %v3336, 0
      %v3411 = vsel %vm3379, %v3337, 0
      %v3414 = vsel %vm3379, %v3338, 0
      %v3417 = vsel %vm3379, %v3339, 0
      %v3420 = vsel %vm3379, %v3340, 0
      %v3423 = vsel %vm3379, %v3341, 0
      %v3426 = vsel %vm3379, %v3342, 0
      %3428 = vmatprep.subr.bf16.mxu0 0
      %3429 = vmatpush1.bf16.msra.mxu0 %v3371
      %3430 = vmatprep.subr.bf16.mxu0 0
      %3431 = vmatpush1.bf16.msra.mxu0 %v3372
      %3432 = vmatprep.subr.bf16.mxu0 0
      %3433 = vmatpush1.bf16.msra.mxu0 %v3373
      %3434 = vmatprep.subr.bf16.mxu0 0
      %3435 = vmatpush1.bf16.msra.mxu0 %v3374
      %3436 = vmatprep.subr.bf16.mxu0 0
      %3437 = vmatpush1.bf16.msra.mxu0 0
      %3438 = vmatprep.subr.bf16.mxu0 0
      %3439 = vmatpush1.bf16.msra.mxu0 0
      %3440 = vmatprep.subr.bf16.mxu0 0
      %3441 = vmatpush1.bf16.msra.mxu0 0
      %3442 = vmatprep.subr.bf16.mxu0 0
      %3443 = vmatpush1.bf16.msra.mxu0 0
      %3444 = vmatprep.subr.bf16.mxu0 0
      %3445 = vmatpush1.bf16.msra.mxu0 0
      %3446 = vmatprep.subr.bf16.mxu0 0
      %3447 = vmatpush1.bf16.msra.mxu0 0
      %3448 = vmatprep.subr.bf16.mxu0 0
      %3449 = vmatpush1.bf16.msra.mxu0 0
      %3450 = vmatprep.subr.bf16.mxu0 0
      %3451 = vmatpush1.bf16.msra.mxu0 0
      %3452 = vmatprep.subr.bf16.mxu0 0
      %3453 = vmatpush1.bf16.msra.mxu0 0
      %3454 = vmatprep.subr.bf16.mxu0 0
      %3455 = vmatpush1.bf16.msra.mxu0 0
      %3456 = vmatprep.subr.bf16.mxu0 0
      %3457 = vmatpush1.bf16.msra.mxu0 0
      %3458 = vmatprep.subr.bf16.mxu0 0
      %3459 = vmatpush1.bf16.msra.mxu0 0
      %3460 = vmatprep.mubr.bf16.mxu0 0
      %3461 = vmatmul.mubr.bf16.gmra.mrb[0].mxu0 %v3381
      %v3462 = vpop.f32.mrb[0].mxu0
      %v3463 = vadd.f32 %v3354, %v3462
      %v3464 = vpop.f32.mrb[0].mxu0
      %v3465 = vpop.f32.mrb[0].mxu0
      %v3466 = vadd.f32 %v3354, %v3465
      %v3467 = vpop.f32.mrb[0].mxu0
      %3468 = vmatprep.mubr.bf16.mxu0 0
      %3469 = vmatmul.mubr.bf16.gmra.mrb[0].mxu0 %v3384
      %v3470 = vpop.f32.mrb[0].mxu0
      %v3471 = vadd.f32 %v3354, %v3470
      %v3472 = vpop.f32.mrb[0].mxu0
      %v3473 = vpop.f32.mrb[0].mxu0
      %v3474 = vadd.f32 %v3354, %v3473
      %v3475 = vpop.f32.mrb[0].mxu0
      %3476 = vmatprep.mubr.bf16.mxu0 0
      %3477 = vmatmul.mubr.bf16.gmra.mrb[0].mxu0 %v3387
      %v3478 = vpop.f32.mrb[0].mxu0
      %v3479 = vadd.f32 %v3354, %v3478
      %v3480 = vpop.f32.mrb[0].mxu0
      %v3481 = vpop.f32.mrb[0].mxu0
      %v3482 = vadd.f32 %v3354, %v3481
      %v3483 = vpop.f32.mrb[0].mxu0
      %3484 = vmatprep.mubr.bf16.mxu0 0
      %3485 = vmatmul.mubr.bf16.gmra.mrb[0].mxu0 %v3390
      %v3486 = vpop.f32.mrb[0].mxu0
      %v3487 = vadd.f32 %v3354, %v3486
      %v3488 = vpop.f32.mrb[0].mxu0
      %v3489 = vpop.f32.mrb[0].mxu0
      %v3490 = vadd.f32 %v3354, %v3489
      %v3491 = vpop.f32.mrb[0].mxu0
      %3492 = vmatprep.mubr.bf16.mxu0 0
      %3493 = vmatmul.mubr.bf16.gmra.mrb[0].mxu0 %v3393
      %v3494 = vpop.f32.mrb[0].mxu0
      %v3495 = vadd.f32 %v3354, %v3494
      %v3496 = vpop.f32.mrb[0].mxu0
      %v3497 = vpop.f32.mrb[0].mxu0
      %v3498 = vadd.f32 %v3354, %v3497
      %v3499 = vpop.f32.mrb[0].mxu0
      %3500 = vmatprep.mubr.bf16.mxu0 0
      %3501 = vmatmul.mubr.bf16.gmra.mrb[0].mxu0 %v3396
      %v3502 = vpop.f32.mrb[0].mxu0
      %v3503 = vadd.f32 %v3354, %v3502
      %v3504 = vpop.f32.mrb[0].mxu0
      %v3505 = vpop.f32.mrb[0].mxu0
      %v3506 = vadd.f32 %v3354, %v3505
      %v3507 = vpop.f32.mrb[0].mxu0
      %3508 = vmatprep.mubr.bf16.mxu0 0
      %3509 = vmatmul.mubr.bf16.gmra.mrb[0].mxu0 %v3399
      %v3510 = vpop.f32.mrb[0].mxu0
      %v3511 = vadd.f32 %v3354, %v3510
      %v3512 = vpop.f32.mrb[0].mxu0
      %v3513 = vpop.f32.mrb[0].mxu0
      %v3514 = vadd.f32 %v3354, %v3513
      %v3515 = vpop.f32.mrb[0].mxu0
      %3516 = vmatprep.mubr.bf16.mxu0 0
      %3517 = vmatmul.mubr.bf16.gmra.mrb[0].mxu0 %v3402
      %v3518 = vpop.f32.mrb[0].mxu0
      %v3519 = vadd.f32 %v3354, %v3518
      %v3520 = vpop.f32.mrb[0].mxu0
      %v3521 = vpop.f32.mrb[0].mxu0
      %v3522 = vadd.f32 %v3354, %v3521
      %v3523 = vpop.f32.mrb[0].mxu0
      %3524 = vmatprep.mubr.bf16.mxu0 0
      %3525 = vmatmul.mubr.bf16.gmra.mrb[0].mxu0 %v3405
      %v3526 = vpop.f32.mrb[0].mxu0
      %v3527 = vadd.f32 %v3354, %v3526
      %v3528 = vpop.f32.mrb[0].mxu0
      %v3529 = vpop.f32.mrb[0].mxu0
      %v3530 = vadd.f32 %v3354, %v3529
      %v3531 = vpop.f32.mrb[0].mxu0
      %3532 = vmatprep.mubr.bf16.mxu0 0
      %3533 = vmatmul.mubr.bf16.gmra.mrb[0].mxu0 %v3408
      %v3534 = vpop.f32.mrb[0].mxu0
      %v3535 = vadd.f32 %v3354, %v3534
      %v3536 = vpop.f32.mrb[0].mxu0
      %v3537 = vpop.f32.mrb[0].mxu0
      %v3538 = vadd.f32 %v3354, %v3537
      %v3539 = vpop.f32.mrb[0].mxu0
      %3540 = vmatprep.mubr.bf16.mxu0 0
      %3541 = vmatmul.mubr.bf16.gmra.mrb[0].mxu0 %v3411
      %v3542 = vpop.f32.mrb[0].mxu0
      %v3543 = vadd.f32 %v3354, %v3542
      %v3544 = vpop.f32.mrb[0].mxu0
      %v3545 = vpop.f32.mrb[0].mxu0
      %v3546 = vadd.f32 %v3354, %v3545
      %v3547 = vpop.f32.mrb[0].mxu0
      %3548 = vmatprep.mubr.bf16.mxu0 0
      %3549 = vmatmul.mubr.bf16.gmra.mrb[0].mxu0 %v3414
      %v3550 = vpop.f32.mrb[0].mxu0
      %v3551 = vadd.f32 %v3354, %v3550
      %v3552 = vpop.f32.mrb[0].mxu0
      %v3553 = vpop.f32.mrb[0].mxu0
      %v3554 = vadd.f32 %v3354, %v3553
      %v3555 = vpop.f32.mrb[0].mxu0
      %3556 = vmatprep.mubr.bf16.mxu0 0
      %3557 = vmatmul.mubr.bf16.gmra.mrb[0].mxu0 %v3417
      %v3558 = vpop.f32.mrb[0].mxu0
      %v3559 = vadd.f32 %v3354, %v3558
      %v3560 = vpop.f32.mrb[0].mxu0
      %v3561 = vpop.f32.mrb[0].mxu0
      %v3562 = vadd.f32 %v3354, %v3561
      %v3563 = vpop.f32.mrb[0].mxu0
      %3564 = vmatprep.mubr.bf16.mxu0 0
      %3565 = vmatmul.mubr.bf16.gmra.mrb[0].mxu0 %v3420
      %v3566 = vpop.f32.mrb[0].mxu0
      %v3567 = vadd.f32 %v3354, %v3566
      %v3568 = vpop.f32.mrb[0].mxu0
      %v3569 = vpop.f32.mrb[0].mxu0
      %v3570 = vadd.f32 %v3354, %v3569
      %v3571 = vpop.f32.mrb[0].mxu0
      %3572 = vmatprep.mubr.bf16.mxu0 0
      %3573 = vmatmul.mubr.bf16.gmra.mrb[0].mxu0 %v3423
      %v3574 = vpop.f32.mrb[0].mxu0
      %v3575 = vadd.f32 %v3354, %v3574
      %v3576 = vpop.f32.mrb[0].mxu0
      %v3577 = vpop.f32.mrb[0].mxu0
      %v3578 = vadd.f32 %v3354, %v3577
      %v3579 = vpop.f32.mrb[0].mxu0
      %3580 = vmatprep.mubr.bf16.mxu0 0
      %3581 = vmatmul.mubr.bf16.gmra.mrb[0].mxu0 %v3426
      %v3582 = vpop.f32.mrb[0].mxu0
      %v3583 = vadd.f32 %v3354, %v3582
      %v3584 = vpop.f32.mrb[0].mxu0
      %v3585 = vpop.f32.mrb[0].mxu0
      %v3586 = vadd.f32 %v3354, %v3585
      %v3587 = vpop.f32.mrb[0].mxu0
      %3588 = vdwg.mxu0
      %v3589 = vadd.f32 %v3018, %v3463
      %v3590 = vadd.f32 %v3019, %v3466
      %v3591 = vadd.f32 %v3020, %v3471
      %v3592 = vadd.f32 %v3021, %v3474
      %v3593 = vadd.f32 %v3022, %v3479
      %v3594 = vadd.f32 %v3023, %v3482
      %v3595 = vadd.f32 %v3024, %v3487
      %v3596 = vadd.f32 %v3025, %v3490
      %v3597 = vadd.f32 %v3026, %v3495
      %v3598 = vadd.f32 %v3027, %v3498
      %v3599 = vadd.f32 %v3028, %v3503
      %v3600 = vadd.f32 %v3029, %v3506
      %v3601 = vadd.f32 %v3030, %v3511
      %v3602 = vadd.f32 %v3031, %v3514
      %v3603 = vadd.f32 %v3032, %v3519
      %v3604 = vadd.f32 %v3033, %v3522
      %v3605 = vadd.f32 %v3034, %v3527
      %v3606 = vadd.f32 %v3035, %v3530
      %v3607 = vadd.f32 %v3036, %v3535
      %v3608 = vadd.f32 %v3037, %v3538
      %v3609 = vadd.f32 %v3038, %v3543
      %v3610 = vadd.f32 %v3039, %v3546
      %v3611 = vadd.f32 %v3040, %v3551
      %v3612 = vadd.f32 %v3041, %v3554
      %v3613 = vadd.f32 %v3042, %v3559
      %v3614 = vadd.f32 %v3043, %v3562
      %v3615 = vadd.f32 %v3044, %v3567
      %v3616 = vadd.f32 %v3045, %v3570
      %v3617 = vadd.f32 %v3046, %v3575
      %v3618 = vadd.f32 %v3047, %v3578
      %v3619 = vadd.f32 %v3048, %v3583
      %v3620 = vadd.f32 %v3049, %v3586
      %v3621 = vsel %vm638, %v3589, 0.0
      %3622 = vadd.xlane.f32.xlu0 %v3621
      %v3623 = vpop.xlane.xlu0 %3622
      %v3624 = vsel %vm638, %v3590, 0.0
      %3625 = vadd.xlane.f32.xlu0 %v3624
      %v3626 = vpop.xlane.xlu0 %3625
      %v3627 = vsel %vm638, %v3591, 0.0
      %3628 = vadd.xlane.f32.xlu0 %v3627
      %v3629 = vpop.xlane.xlu0 %3628
      %v3630 = vsel %vm638, %v3592, 0.0
      %3631 = vadd.xlane.f32.xlu0 %v3630
      %v3632 = vpop.xlane.xlu0 %3631
      %v3633 = vsel %vm638, %v3593, 0.0
      %3634 = vadd.xlane.f32.xlu0 %v3633
      %v3635 = vpop.xlane.xlu0 %3634
      %v3636 = vsel %vm638, %v3594, 0.0
      %3637 = vadd.xlane.f32.xlu0 %v3636
      %v3638 = vpop.xlane.xlu0 %3637
      %v3639 = vsel %vm638, %v3595, 0.0
      %3640 = vadd.xlane.f32.xlu0 %v3639
      %v3641 = vpop.xlane.xlu0 %3640
      %v3642 = vsel %vm638, %v3596, 0.0
      %3643 = vadd.xlane.f32.xlu0 %v3642
      %v3644 = vpop.xlane.xlu0 %3643
      %v3645 = vsel %vm638, %v3597, 0.0
      %3646 = vadd.xlane.f32.xlu0 %v3645
      %v3647 = vpop.xlane.xlu0 %3646
      %v3648 = vsel %vm638, %v3598, 0.0
      %3649 = vadd.xlane.f32.xlu0 %v3648
      %v3650 = vpop.xlane.xlu0 %3649
      %v3651 = vsel %vm638, %v3599, 0.0
      %3652 = vadd.xlane.f32.xlu0 %v3651
      %v3653 = vpop.xlane.xlu0 %3652
      %v3654 = vsel %vm638, %v3600, 0.0
      %3655 = vadd.xlane.f32.xlu0 %v3654
      %v3656 = vpop.xlane.xlu0 %3655
      %v3657 = vsel %vm638, %v3601, 0.0
      %3658 = vadd.xlane.f32.xlu0 %v3657
      %v3659 = vpop.xlane.xlu0 %3658
      %v3660 = vsel %vm638, %v3602, 0.0
      %3661 = vadd.xlane.f32.xlu0 %v3660
      %v3662 = vpop.xlane.xlu0 %3661
      %v3663 = vsel %vm638, %v3603, 0.0
      %3664 = vadd.xlane.f32.xlu0 %v3663
      %v3665 = vpop.xlane.xlu0 %3664
      %v3666 = vsel %vm638, %v3604, 0.0
      %3667 = vadd.xlane.f32.xlu0 %v3666
      %v3668 = vpop.xlane.xlu0 %3667
      %v3669 = vsel %vm638, %v3605, 0.0
      %3670 = vadd.xlane.f32.xlu0 %v3669
      %v3671 = vpop.xlane.xlu0 %3670
      %v3672 = vsel %vm638, %v3606, 0.0
      %3673 = vadd.xlane.f32.xlu0 %v3672
      %v3674 = vpop.xlane.xlu0 %3673
      %v3675 = vsel %vm638, %v3607, 0.0
      %3676 = vadd.xlane.f32.xlu0 %v3675
      %v3677 = vpop.xlane.xlu0 %3676
      %v3678 = vsel %vm638, %v3608, 0.0
      %3679 = vadd.xlane.f32.xlu0 %v3678
      %v3680 = vpop.xlane.xlu0 %3679
      %v3681 = vsel %vm638, %v3609, 0.0
      %3682 = vadd.xlane.f32.xlu0 %v3681
      %v3683 = vpop.xlane.xlu0 %3682
      %v3684 = vsel %vm638, %v3610, 0.0
      %3685 = vadd.xlane.f32.xlu0 %v3684
      %v3686 = vpop.xlane.xlu0 %3685
      %v3687 = vsel %vm638, %v3611, 0.0
      %3688 = vadd.xlane.f32.xlu0 %v3687
      %v3689 = vpop.xlane.xlu0 %3688
      %v3690 = vsel %vm638, %v3612, 0.0
      %3691 = vadd.xlane.f32.xlu0 %v3690
      %v3692 = vpop.xlane.xlu0 %3691
      %v3693 = vsel %vm638, %v3613, 0.0
      %3694 = vadd.xlane.f32.xlu0 %v3693
      %v3695 = vpop.xlane.xlu0 %3694
      %v3696 = vsel %vm638, %v3614, 0.0
      %3697 = vadd.xlane.f32.xlu0 %v3696
      %v3698 = vpop.xlane.xlu0 %3697
      %v3699 = vsel %vm638, %v3615, 0.0
      %3700 = vadd.xlane.f32.xlu0 %v3699
      %v3701 = vpop.xlane.xlu0 %3700
      %v3702 = vsel %vm638, %v3616, 0.0
      %3703 = vadd.xlane.f32.xlu0 %v3702
      %v3704 = vpop.xlane.xlu0 %3703
      %v3705 = vsel %vm638, %v3617, 0.0
      %3706 = vadd.xlane.f32.xlu0 %v3705
      %v3707 = vpop.xlane.xlu0 %3706
      %v3708 = vsel %vm638, %v3618, 0.0
      %3709 = vadd.xlane.f32.xlu0 %v3708
      %v3710 = vpop.xlane.xlu0 %3709
      %v3711 = vsel %vm638, %v3619, 0.0
      %3712 = vadd.xlane.f32.xlu0 %v3711
      %v3713 = vpop.xlane.xlu0 %3712
      %v3714 = vsel %vm638, %v3620, 0.0
      %3715 = vadd.xlane.f32.xlu0 %v3714
      %v3716 = vpop.xlane.xlu0 %3715
      %v3717 = vmul.f32 %v3623, %v2657
      %v3718 = vmul.f32 %v3626, %v2657
      %v3719 = vmul.f32 %v3629, %v2657
      %v3720 = vmul.f32 %v3632, %v2657
      %v3721 = vmul.f32 %v3635, %v2657
      %v3722 = vmul.f32 %v3638, %v2657
      %v3723 = vmul.f32 %v3641, %v2657
      %v3724 = vmul.f32 %v3644, %v2657
      %v3725 = vmul.f32 %v3647, %v2657
      %v3726 = vmul.f32 %v3650, %v2657
      %v3727 = vmul.f32 %v3653, %v2657
      %v3728 = vmul.f32 %v3656, %v2657
      %v3729 = vmul.f32 %v3659, %v2657
      %v3730 = vmul.f32 %v3662, %v2657
      %v3731 = vmul.f32 %v3665, %v2657
      %v3732 = vmul.f32 %v3668, %v2657
      %v3733 = vmul.f32 %v3671, %v2657
      %v3734 = vmul.f32 %v3674, %v2657
      %v3735 = vmul.f32 %v3677, %v2657
      %v3736 = vmul.f32 %v3680, %v2657
      %v3737 = vmul.f32 %v3683, %v2657
      %v3738 = vmul.f32 %v3686, %v2657
      %v3739 = vmul.f32 %v3689, %v2657
      %v3740 = vmul.f32 %v3692, %v2657
      %v3741 = vmul.f32 %v3695, %v2657
      %v3742 = vmul.f32 %v3698, %v2657
      %v3743 = vmul.f32 %v3701, %v2657
      %v3744 = vmul.f32 %v3704, %v2657
      %v3745 = vmul.f32 %v3707, %v2657
      %v3746 = vmul.f32 %v3710, %v2657
      %v3747 = vmul.f32 %v3713, %v2657
      %v3748 = vmul.f32 %v3716, %v2657
      %v3749 = vsub.f32 %v3589, %v3717
      %v3750 = vsub.f32 %v3590, %v3718
      %v3751 = vsub.f32 %v3591, %v3719
      %v3752 = vsub.f32 %v3592, %v3720
      %v3753 = vsub.f32 %v3593, %v3721
      %v3754 = vsub.f32 %v3594, %v3722
      %v3755 = vsub.f32 %v3595, %v3723
      %v3756 = vsub.f32 %v3596, %v3724
      %v3757 = vsub.f32 %v3597, %v3725
      %v3758 = vsub.f32 %v3598, %v3726
      %v3759 = vsub.f32 %v3599, %v3727
      %v3760 = vsub.f32 %v3600, %v3728
      %v3761 = vsub.f32 %v3601, %v3729
      %v3762 = vsub.f32 %v3602, %v3730
      %v3763 = vsub.f32 %v3603, %v3731
      %v3764 = vsub.f32 %v3604, %v3732
      %v3765 = vsub.f32 %v3605, %v3733
      %v3766 = vsub.f32 %v3606, %v3734
      %v3767 = vsub.f32 %v3607, %v3735
      %v3768 = vsub.f32 %v3608, %v3736
      %v3769 = vsub.f32 %v3609, %v3737
      %v3770 = vsub.f32 %v3610, %v3738
      %v3771 = vsub.f32 %v3611, %v3739
      %v3772 = vsub.f32 %v3612, %v3740
      %v3773 = vsub.f32 %v3613, %v3741
      %v3774 = vsub.f32 %v3614, %v3742
      %v3775 = vsub.f32 %v3615, %v3743
      %v3776 = vsub.f32 %v3616, %v3744
      %v3777 = vsub.f32 %v3617, %v3745
      %v3778 = vsub.f32 %v3618, %v3746
      %v3779 = vsub.f32 %v3619, %v3747
      %v3780 = vsub.f32 %v3620, %v3748
      %v3781 = vmul.f32 %v3749, %v3749
      %v3782 = vmul.f32 %v3750, %v3750
      %v3783 = vmul.f32 %v3751, %v3751
      %v3784 = vmul.f32 %v3752, %v3752
      %v3785 = vmul.f32 %v3753, %v3753
      %v3786 = vmul.f32 %v3754, %v3754
      %v3787 = vmul.f32 %v3755, %v3755
      %v3788 = vmul.f32 %v3756, %v3756
      %v3789 = vmul.f32 %v3757, %v3757
      %v3790 = vmul.f32 %v3758, %v3758
      %v3791 = vmul.f32 %v3759, %v3759
      %v3792 = vmul.f32 %v3760, %v3760
      %v3793 = vmul.f32 %v3761, %v3761
      %v3794 = vmul.f32 %v3762, %v3762
      %v3795 = vmul.f32 %v3763, %v3763
      %v3796 = vmul.f32 %v3764, %v3764
      %v3797 = vmul.f32 %v3765, %v3765
      %v3798 = vmul.f32 %v3766, %v3766
      %v3799 = vmul.f32 %v3767, %v3767
      %v3800 = vmul.f32 %v3768, %v3768
      %v3801 = vmul.f32 %v3769, %v3769
      %v3802 = vmul.f32 %v3770, %v3770
      %v3803 = vmul.f32 %v3771, %v3771
      %v3804 = vmul.f32 %v3772, %v3772
      %v3805 = vmul.f32 %v3773, %v3773
      %v3806 = vmul.f32 %v3774, %v3774
      %v3807 = vmul.f32 %v3775, %v3775
      %v3808 = vmul.f32 %v3776, %v3776
      %v3809 = vmul.f32 %v3777, %v3777
      %v3810 = vmul.f32 %v3778, %v3778
      %v3811 = vmul.f32 %v3779, %v3779
      %v3812 = vmul.f32 %v3780, %v3780
      %v3813 = vsel %vm638, %v3781, 0.0
      %3814 = vadd.xlane.f32.xlu0 %v3813
      %v3815 = vpop.xlane.xlu0 %3814
      %v3816 = vsel %vm638, %v3782, 0.0
      %3817 = vadd.xlane.f32.xlu0 %v3816
      %v3818 = vpop.xlane.xlu0 %3817
      %v3819 = vsel %vm638, %v3783, 0.0
      %3820 = vadd.xlane.f32.xlu0 %v3819
      %v3821 = vpop.xlane.xlu0 %3820
      %v3822 = vsel %vm638, %v3784, 0.0
      %3823 = vadd.xlane.f32.xlu0 %v3822
      %v3824 = vpop.xlane.xlu0 %3823
      %v3825 = vsel %vm638, %v3785, 0.0
      %3826 = vadd.xlane.f32.xlu0 %v3825
      %v3827 = vpop.xlane.xlu0 %3826
      %v3828 = vsel %vm638, %v3786, 0.0
      %3829 = vadd.xlane.f32.xlu0 %v3828
      %v3830 = vpop.xlane.xlu0 %3829
      %v3831 = vsel %vm638, %v3787, 0.0
      %3832 = vadd.xlane.f32.xlu0 %v3831
      %v3833 = vpop.xlane.xlu0 %3832
      %v3834 = vsel %vm638, %v3788, 0.0
      %3835 = vadd.xlane.f32.xlu0 %v3834
      %v3836 = vpop.xlane.xlu0 %3835
      %v3837 = vsel %vm638, %v3789, 0.0
      %3838 = vadd.xlane.f32.xlu0 %v3837
      %v3839 = vpop.xlane.xlu0 %3838
      %v3840 = vsel %vm638, %v3790, 0.0
      %3841 = vadd.xlane.f32.xlu0 %v3840
      %v3842 = vpop.xlane.xlu0 %3841
      %v3843 = vsel %vm638, %v3791, 0.0
      %3844 = vadd.xlane.f32.xlu0 %v3843
      %v3845 = vpop.xlane.xlu0 %3844
      %v3846 = vsel %vm638, %v3792, 0.0
      %3847 = vadd.xlane.f32.xlu0 %v3846
      %v3848 = vpop.xlane.xlu0 %3847
      %v3849 = vsel %vm638, %v3793, 0.0
      %3850 = vadd.xlane.f32.xlu0 %v3849
      %v3851 = vpop.xlane.xlu0 %3850
      %v3852 = vsel %vm638, %v3794, 0.0
      %3853 = vadd.xlane.f32.xlu0 %v3852
      %v3854 = vpop.xlane.xlu0 %3853
      %v3855 = vsel %vm638, %v3795, 0.0
      %3856 = vadd.xlane.f32.xlu0 %v3855
      %v3857 = vpop.xlane.xlu0 %3856
      %v3858 = vsel %vm638, %v3796, 0.0
      %3859 = vadd.xlane.f32.xlu0 %v3858
      %v3860 = vpop.xlane.xlu0 %3859
      %v3861 = vsel %vm638, %v3797, 0.0
      %3862 = vadd.xlane.f32.xlu0 %v3861
      %v3863 = vpop.xlane.xlu0 %3862
      %v3864 = vsel %vm638, %v3798, 0.0
      %3865 = vadd.xlane.f32.xlu0 %v3864
      %v3866 = vpop.xlane.xlu0 %3865
      %v3867 = vsel %vm638, %v3799, 0.0
      %3868 = vadd.xlane.f32.xlu0 %v3867
      %v3869 = vpop.xlane.xlu0 %3868
      %v3870 = vsel %vm638, %v3800, 0.0
      %3871 = vadd.xlane.f32.xlu0 %v3870
      %v3872 = vpop.xlane.xlu0 %3871
      %v3873 = vsel %vm638, %v3801, 0.0
      %3874 = vadd.xlane.f32.xlu0 %v3873
      %v3875 = vpop.xlane.xlu0 %3874
      %v3876 = vsel %vm638, %v3802, 0.0
      %3877 = vadd.xlane.f32.xlu0 %v3876
      %v3878 = vpop.xlane.xlu0 %3877
      %v3879 = vsel %vm638, %v3803, 0.0
      %3880 = vadd.xlane.f32.xlu0 %v3879
      %v3881 = vpop.xlane.xlu0 %3880
      %v3882 = vsel %vm638, %v3804, 0.0
      %3883 = vadd.xlane.f32.xlu0 %v3882
      %v3884 = vpop.xlane.xlu0 %3883
      %v3885 = vsel %vm638, %v3805, 0.0
      %3886 = vadd.xlane.f32.xlu0 %v3885
      %v3887 = vpop.xlane.xlu0 %3886
      %v3888 = vsel %vm638, %v3806, 0.0
      %3889 = vadd.xlane.f32.xlu0 %v3888
      %v3890 = vpop.xlane.xlu0 %3889
      %v3891 = vsel %vm638, %v3807, 0.0
      %3892 = vadd.xlane.f32.xlu0 %v3891
      %v3893 = vpop.xlane.xlu0 %3892
      %v3894 = vsel %vm638, %v3808, 0.0
      %3895 = vadd.xlane.f32.xlu0 %v3894
      %v3896 = vpop.xlane.xlu0 %3895
      %v3897 = vsel %vm638, %v3809, 0.0
      %3898 = vadd.xlane.f32.xlu0 %v3897
      %v3899 = vpop.xlane.xlu0 %3898
      %v3900 = vsel %vm638, %v3810, 0.0
      %3901 = vadd.xlane.f32.xlu0 %v3900
      %v3902 = vpop.xlane.xlu0 %3901
      %v3903 = vsel %vm638, %v3811, 0.0
      %3904 = vadd.xlane.f32.xlu0 %v3903
      %v3905 = vpop.xlane.xlu0 %3904
      %v3906 = vsel %vm638, %v3812, 0.0
      %3907 = vadd.xlane.f32.xlu0 %v3906
      %v3908 = vpop.xlane.xlu0 %3907
      %v3909 = vmul.f32 %v3815, %v2657
      %v3910 = vmul.f32 %v3818, %v2657
      %v3911 = vmul.f32 %v3821, %v2657
      %v3912 = vmul.f32 %v3824, %v2657
      %v3913 = vmul.f32 %v3827, %v2657
      %v3914 = vmul.f32 %v3830, %v2657
      %v3915 = vmul.f32 %v3833, %v2657
      %v3916 = vmul.f32 %v3836, %v2657
      %v3917 = vmul.f32 %v3839, %v2657
      %v3918 = vmul.f32 %v3842, %v2657
      %v3919 = vmul.f32 %v3845, %v2657
      %v3920 = vmul.f32 %v3848, %v2657
      %v3921 = vmul.f32 %v3851, %v2657
      %v3922 = vmul.f32 %v3854, %v2657
      %v3923 = vmul.f32 %v3857, %v2657
      %v3924 = vmul.f32 %v3860, %v2657
      %v3925 = vmul.f32 %v3863, %v2657
      %v3926 = vmul.f32 %v3866, %v2657
      %v3927 = vmul.f32 %v3869, %v2657
      %v3928 = vmul.f32 %v3872, %v2657
      %v3929 = vmul.f32 %v3875, %v2657
      %v3930 = vmul.f32 %v3878, %v2657
      %v3931 = vmul.f32 %v3881, %v2657
      %v3932 = vmul.f32 %v3884, %v2657
      %v3933 = vmul.f32 %v3887, %v2657
      %v3934 = vmul.f32 %v3890, %v2657
      %v3935 = vmul.f32 %v3893, %v2657
      %v3936 = vmul.f32 %v3896, %v2657
      %v3937 = vmul.f32 %v3899, %v2657
      %v3938 = vmul.f32 %v3902, %v2657
      %v3939 = vmul.f32 %v3905, %v2657
      %v3940 = vmul.f32 %v3908, %v2657
      %v3941 = vadd.f32 %v3909, 1e-05
      %v3942 = vadd.f32 %v3910, 1e-05
      %v3943 = vadd.f32 %v3911, 1e-05
      %v3944 = vadd.f32 %v3912, 1e-05
      %v3945 = vadd.f32 %v3913, 1e-05
      %v3946 = vadd.f32 %v3914, 1e-05
      %v3947 = vadd.f32 %v3915, 1e-05
      %v3948 = vadd.f32 %v3916, 1e-05
      %v3949 = vadd.f32 %v3917, 1e-05
      %v3950 = vadd.f32 %v3918, 1e-05
      %v3951 = vadd.f32 %v3919, 1e-05
      %v3952 = vadd.f32 %v3920, 1e-05
      %v3953 = vadd.f32 %v3921, 1e-05
      %v3954 = vadd.f32 %v3922, 1e-05
      %v3955 = vadd.f32 %v3923, 1e-05
      %v3956 = vadd.f32 %v3924, 1e-05
      %v3957 = vadd.f32 %v3925, 1e-05
      %v3958 = vadd.f32 %v3926, 1e-05
      %v3959 = vadd.f32 %v3927, 1e-05
      %v3960 = vadd.f32 %v3928, 1e-05
      %v3961 = vadd.f32 %v3929, 1e-05
      %v3962 = vadd.f32 %v3930, 1e-05
      %v3963 = vadd.f32 %v3931, 1e-05
      %v3964 = vadd.f32 %v3932, 1e-05
      %v3965 = vadd.f32 %v3933, 1e-05
      %v3966 = vadd.f32 %v3934, 1e-05
      %v3967 = vadd.f32 %v3935, 1e-05
      %v3968 = vadd.f32 %v3936, 1e-05
      %v3969 = vadd.f32 %v3937, 1e-05
      %v3970 = vadd.f32 %v3938, 1e-05
      %v3971 = vadd.f32 %v3939, 1e-05
      %v3972 = vadd.f32 %v3940, 1e-05
      %v3973 = vrsqrt.pop %v3941
      %v3974 = vrsqrt.pop %v3942
      %v3975 = vrsqrt.pop %v3943
      %v3976 = vrsqrt.pop %v3944
      %v3977 = vrsqrt.pop %v3945
      %v3978 = vrsqrt.pop %v3946
      %v3979 = vrsqrt.pop %v3947
      %v3980 = vrsqrt.pop %v3948
      %v3981 = vrsqrt.pop %v3949
      %v3982 = vrsqrt.pop %v3950
      %v3983 = vrsqrt.pop %v3951
      %v3984 = vrsqrt.pop %v3952
      %v3985 = vrsqrt.pop %v3953
      %v3986 = vrsqrt.pop %v3954
      %v3987 = vrsqrt.pop %v3955
      %v3988 = vrsqrt.pop %v3956
      %v3989 = vrsqrt.pop %v3957
      %v3990 = vrsqrt.pop %v3958
      %v3991 = vrsqrt.pop %v3959
      %v3992 = vrsqrt.pop %v3960
      %v3993 = vrsqrt.pop %v3961
      %v3994 = vrsqrt.pop %v3962
      %v3995 = vrsqrt.pop %v3963
      %v3996 = vrsqrt.pop %v3964
      %v3997 = vrsqrt.pop %v3965
      %v3998 = vrsqrt.pop %v3966
      %v3999 = vrsqrt.pop %v3967
      %v4000 = vrsqrt.pop %v3968
      %v4001 = vrsqrt.pop %v3969
      %v4002 = vrsqrt.pop %v3970
      %v4003 = vrsqrt.pop %v3971
      %v4004 = vrsqrt.pop %v3972
      %v4005 = vmul.f32 %v3749, %v3973
      %v4006 = vmul.f32 %v3750, %v3974
      %v4007 = vmul.f32 %v3751, %v3975
      %v4008 = vmul.f32 %v3752, %v3976
      %v4009 = vmul.f32 %v3753, %v3977
      %v4010 = vmul.f32 %v3754, %v3978
      %v4011 = vmul.f32 %v3755, %v3979
      %v4012 = vmul.f32 %v3756, %v3980
      %v4013 = vmul.f32 %v3757, %v3981
      %v4014 = vmul.f32 %v3758, %v3982
      %v4015 = vmul.f32 %v3759, %v3983
      %v4016 = vmul.f32 %v3760, %v3984
      %v4017 = vmul.f32 %v3761, %v3985
      %v4018 = vmul.f32 %v3762, %v3986
      %v4019 = vmul.f32 %v3763, %v3987
      %v4020 = vmul.f32 %v3764, %v3988
      %v4021 = vmul.f32 %v3765, %v3989
      %v4022 = vmul.f32 %v3766, %v3990
      %v4023 = vmul.f32 %v3767, %v3991
      %v4024 = vmul.f32 %v3768, %v3992
      %v4025 = vmul.f32 %v3769, %v3993
      %v4026 = vmul.f32 %v3770, %v3994
      %v4027 = vmul.f32 %v3771, %v3995
      %v4028 = vmul.f32 %v3772, %v3996
      %v4029 = vmul.f32 %v3773, %v3997
      %v4030 = vmul.f32 %v3774, %v3998
      %v4031 = vmul.f32 %v3775, %v3999
      %v4032 = vmul.f32 %v3776, %v4000
      %v4033 = vmul.f32 %v3777, %v4001
      %v4034 = vmul.f32 %v3778, %v4002
      %v4035 = vmul.f32 %v3779, %v4003
      %v4036 = vmul.f32 %v3780, %v4004
      %v4037 = vlaneseq
      %v4038 = vshrl.u32 %v4037, 7
      %v4039 = vsub.s32 0, %v4038
      %v4040 = vrot.slane %v537, %v4039
      %v4041 = vmul.f32 %v4005, %v4040
      %v4042 = vmul.f32 %v4006, %v4040
      %v4043 = vmul.f32 %v4007, %v4040
      %v4044 = vmul.f32 %v4008, %v4040
      %v4045 = vmul.f32 %v4009, %v4040
      %v4046 = vmul.f32 %v4010, %v4040
      %v4047 = vmul.f32 %v4011, %v4040
      %v4048 = vmul.f32 %v4012, %v4040
      %v4049 = vmul.f32 %v4013, %v4040
      %v4050 = vmul.f32 %v4014, %v4040
      %v4051 = vmul.f32 %v4015, %v4040
      %v4052 = vmul.f32 %v4016, %v4040
      %v4053 = vmul.f32 %v4017, %v4040
      %v4054 = vmul.f32 %v4018, %v4040
      %v4055 = vmul.f32 %v4019, %v4040
      %v4056 = vmul.f32 %v4020, %v4040
      %v4057 = vmul.f32 %v4021, %v4040
      %v4058 = vmul.f32 %v4022, %v4040
      %v4059 = vmul.f32 %v4023, %v4040
      %v4060 = vmul.f32 %v4024, %v4040
      %v4061 = vmul.f32 %v4025, %v4040
      %v4062 = vmul.f32 %v4026, %v4040
      %v4063 = vmul.f32 %v4027, %v4040
      %v4064 = vmul.f32 %v4028, %v4040
      %v4065 = vmul.f32 %v4029, %v4040
      %v4066 = vmul.f32 %v4030, %v4040
      %v4067 = vmul.f32 %v4031, %v4040
      %v4068 = vmul.f32 %v4032, %v4040
      %v4069 = vmul.f32 %v4033, %v4040
      %v4070 = vmul.f32 %v4034, %v4040
      %v4071 = vmul.f32 %v4035, %v4040
      %v4072 = vmul.f32 %v4036, %v4040
      %v4073 = vlaneseq
      %v4074 = vshrl.u32 %v4073, 7
      %v4075 = vsub.s32 1, %v4074
      %v4076 = vrot.slane %v537, %v4075
      %v4077 = vadd.f32 %v4041, %v4076
      %v4078 = vadd.f32 %v4042, %v4076
      %v4079 = vadd.f32 %v4043, %v4076
      %v4080 = vadd.f32 %v4044, %v4076
      %v4081 = vadd.f32 %v4045, %v4076
      %v4082 = vadd.f32 %v4046, %v4076
      %v4083 = vadd.f32 %v4047, %v4076
      %v4084 = vadd.f32 %v4048, %v4076
      %v4085 = vadd.f32 %v4049, %v4076
      %v4086 = vadd.f32 %v4050, %v4076
      %v4087 = vadd.f32 %v4051, %v4076
      %v4088 = vadd.f32 %v4052, %v4076
      %v4089 = vadd.f32 %v4053, %v4076
      %v4090 = vadd.f32 %v4054, %v4076
      %v4091 = vadd.f32 %v4055, %v4076
      %v4092 = vadd.f32 %v4056, %v4076
      %v4093 = vadd.f32 %v4057, %v4076
      %v4094 = vadd.f32 %v4058, %v4076
      %v4095 = vadd.f32 %v4059, %v4076
      %v4096 = vadd.f32 %v4060, %v4076
      %v4097 = vadd.f32 %v4061, %v4076
      %v4098 = vadd.f32 %v4062, %v4076
      %v4099 = vadd.f32 %v4063, %v4076
      %v4100 = vadd.f32 %v4064, %v4076
      %v4101 = vadd.f32 %v4065, %v4076
      %v4102 = vadd.f32 %v4066, %v4076
      %v4103 = vadd.f32 %v4067, %v4076
      %v4104 = vadd.f32 %v4068, %v4076
      %v4105 = vadd.f32 %v4069, %v4076
      %v4106 = vadd.f32 %v4070, %v4076
      %v4107 = vadd.f32 %v4071, %v4076
      %v4108 = vadd.f32 %v4072, %v4076
      %v4109 = vld [vmem:[%s8] sm:$0xff]
      %v4110 = vld [vmem:[%s8 + $0x8] sm:$0xff]
      %v4111 = vld [vmem:[%s8 + $0x10] sm:$0xff]
      %v4112 = vld [vmem:[%s8 + $0x18] sm:$0xff]
      %v4113 = vld [vmem:[%s8 + $0x20] sm:$0xff]
      %v4114 = vld [vmem:[%s8 + $0x28] sm:$0xff]
      %v4115 = vld [vmem:[%s8 + $0x30] sm:$0xff]
      %v4116 = vld [vmem:[%s8 + $0x38] sm:$0xff]
      %v4117 = vld [vmem:[%s8 + $0x40] sm:$0xff]
      %v4118 = vld [vmem:[%s8 + $0x48] sm:$0xff]
      %v4119 = vld [vmem:[%s8 + $0x50] sm:$0xff]
      %v4120 = vld [vmem:[%s8 + $0x58] sm:$0xff]
      %v4121 = vld [vmem:[%s8 + $0x60] sm:$0xff]
      %v4122 = vld [vmem:[%s8 + $0x68] sm:$0xff]
      %v4123 = vld [vmem:[%s8 + $0x70] sm:$0xff]
      %v4124 = vld [vmem:[%s8 + $0x78] sm:$0xff]
      %v4125 = vld [vmem:[%s8 + $0x80] sm:$0xff]
      %v4126 = vld [vmem:[%s8 + $0x88] sm:$0xff]
      %v4127 = vld [vmem:[%s8 + $0x90] sm:$0xff]
      %v4128 = vld [vmem:[%s8 + $0x98] sm:$0xff]
      %v4129 = vld [vmem:[%s8 + $0xa0] sm:$0xff]
      %v4130 = vld [vmem:[%s8 + $0xa8] sm:$0xff]
      %v4131 = vld [vmem:[%s8 + $0xb0] sm:$0xff]
      %v4132 = vld [vmem:[%s8 + $0xb8] sm:$0xff]
      %v4133 = vld [vmem:[%s8 + $0xc0] sm:$0xff]
      %v4134 = vld [vmem:[%s8 + $0xc8] sm:$0xff]
      %v4135 = vld [vmem:[%s8 + $0xd0] sm:$0xff]
      %v4136 = vld [vmem:[%s8 + $0xd8] sm:$0xff]
      %v4137 = vld [vmem:[%s8 + $0xe0] sm:$0xff]
      %v4138 = vld [vmem:[%s8 + $0xe8] sm:$0xff]
      %v4139 = vld [vmem:[%s8 + $0xf0] sm:$0xff]
      %v4140 = vld [vmem:[%s8 + $0xf8] sm:$0xff]
      %v4141 = vpack.c.bf16 %v4078, %v4077
      %v4142 = vpack.c.bf16 %v4080, %v4079
      %v4143 = vpack.c.bf16 %v4082, %v4081
      %v4144 = vpack.c.bf16 %v4084, %v4083
      %v4145 = vpack.c.bf16 %v4086, %v4085
      %v4146 = vpack.c.bf16 %v4088, %v4087
      %v4147 = vpack.c.bf16 %v4090, %v4089
      %v4148 = vpack.c.bf16 %v4092, %v4091
      %v4149 = vpack.c.bf16 %v4094, %v4093
      %v4150 = vpack.c.bf16 %v4096, %v4095
      %v4151 = vpack.c.bf16 %v4098, %v4097
      %v4152 = vpack.c.bf16 %v4100, %v4099
      %v4153 = vpack.c.bf16 %v4102, %v4101
      %v4154 = vpack.c.bf16 %v4104, %v4103
      %v4155 = vpack.c.bf16 %v4106, %v4105
      %v4156 = vpack.c.bf16 %v4108, %v4107
      %v4157 = vld [vmem:[%s12] sm:$0xff]
      %v4158 = vld [vmem:[%s12 + $0x8] sm:$0xff]
      %v4159 = vld [vmem:[%s12 + $0x10] sm:$0xff]
      %v4160 = vld [vmem:[%s12 + $0x18] sm:$0xff]
      %v4161 = vld [vmem:[%s12 + $0x20] sm:$0xff]
      %v4162 = vld [vmem:[%s12 + $0x28] sm:$0xff]
      %v4163 = vld [vmem:[%s12 + $0x30] sm:$0xff]
      %v4164 = vld [vmem:[%s12 + $0x38] sm:$0xff]
      %v4165 = vld [vmem:[%s12 + $0x40] sm:$0xff]
      %v4166 = vld [vmem:[%s12 + $0x48] sm:$0xff]
      %v4167 = vld [vmem:[%s12 + $0x50] sm:$0xff]
      %v4168 = vld [vmem:[%s12 + $0x58] sm:$0xff]
      %v4169 = vld [vmem:[%s12 + $0x60] sm:$0xff]
      %v4170 = vld [vmem:[%s12 + $0x68] sm:$0xff]
      %v4171 = vld [vmem:[%s12 + $0x70] sm:$0xff]
      %v4172 = vld [vmem:[%s12 + $0x78] sm:$0xff]
      %v4173 = vld [vmem:[%s12 + $0x80] sm:$0xff]
      %v4174 = vld [vmem:[%s12 + $0x88] sm:$0xff]
      %v4175 = vld [vmem:[%s12 + $0x90] sm:$0xff]
      %v4176 = vld [vmem:[%s12 + $0x98] sm:$0xff]
      %v4177 = vld [vmem:[%s12 + $0xa0] sm:$0xff]
      %v4178 = vld [vmem:[%s12 + $0xa8] sm:$0xff]
      %v4179 = vld [vmem:[%s12 + $0xb0] sm:$0xff]
      %v4180 = vld [vmem:[%s12 + $0xb8] sm:$0xff]
      %v4181 = vld [vmem:[%s12 + $0xc0] sm:$0xff]
      %v4182 = vld [vmem:[%s12 + $0xc8] sm:$0xff]
      %v4183 = vld [vmem:[%s12 + $0xd0] sm:$0xff]
      %v4184 = vld [vmem:[%s12 + $0xd8] sm:$0xff]
      %v4185 = vld [vmem:[%s12 + $0xe0] sm:$0xff]
      %v4186 = vld [vmem:[%s12 + $0xe8] sm:$0xff]
      %v4187 = vld [vmem:[%s12 + $0xf0] sm:$0xff]
      %v4188 = vld [vmem:[%s12 + $0xf8] sm:$0xff]
      %4190 = vset.pattern.permute.xlu0 0
      %4191 = vperm.xlu0 %4190, %v4157
      %v4192 = vpop.permute.xlu0 %4191
      %4195 = vset.pattern.permute.xlu0 0
      %4196 = vperm.xlu0 %4195, %v4158
      %v4197 = vpop.permute.xlu0 %4196
      %4200 = vset.pattern.permute.xlu0 0
      %4201 = vperm.xlu0 %4200, %v4159
      %v4202 = vpop.permute.xlu0 %4201
      %4205 = vset.pattern.permute.xlu0 0
      %4206 = vperm.xlu0 %4205, %v4160
      %v4207 = vpop.permute.xlu0 %4206
      %4210 = vset.pattern.permute.xlu0 0
      %4211 = vperm.xlu0 %4210, %v4161
      %v4212 = vpop.permute.xlu0 %4211
      %4215 = vset.pattern.permute.xlu0 0
      %4216 = vperm.xlu0 %4215, %v4162
      %v4217 = vpop.permute.xlu0 %4216
      %4220 = vset.pattern.permute.xlu0 0
      %4221 = vperm.xlu0 %4220, %v4163
      %v4222 = vpop.permute.xlu0 %4221
      %4225 = vset.pattern.permute.xlu0 0
      %4226 = vperm.xlu0 %4225, %v4164
      %v4227 = vpop.permute.xlu0 %4226
      %4230 = vset.pattern.permute.xlu0 0
      %4231 = vperm.xlu0 %4230, %v4165
      %v4232 = vpop.permute.xlu0 %4231
      %4235 = vset.pattern.permute.xlu0 0
      %4236 = vperm.xlu0 %4235, %v4166
      %v4237 = vpop.permute.xlu0 %4236
      %4240 = vset.pattern.permute.xlu0 0
      %4241 = vperm.xlu0 %4240, %v4167
      %v4242 = vpop.permute.xlu0 %4241
      %4245 = vset.pattern.permute.xlu0 0
      %4246 = vperm.xlu0 %4245, %v4168
      %v4247 = vpop.permute.xlu0 %4246
      %4250 = vset.pattern.permute.xlu0 0
      %4251 = vperm.xlu0 %4250, %v4169
      %v4252 = vpop.permute.xlu0 %4251
      %4255 = vset.pattern.permute.xlu0 0
      %4256 = vperm.xlu0 %4255, %v4170
      %v4257 = vpop.permute.xlu0 %4256
      %4260 = vset.pattern.permute.xlu0 0
      %4261 = vperm.xlu0 %4260, %v4171
      %v4262 = vpop.permute.xlu0 %4261
      %4265 = vset.pattern.permute.xlu0 0
      %4266 = vperm.xlu0 %4265, %v4172
      %v4267 = vpop.permute.xlu0 %4266
      %4270 = vset.pattern.permute.xlu0 0
      %4271 = vperm.xlu0 %4270, %v4173
      %v4272 = vpop.permute.xlu0 %4271
      %4275 = vset.pattern.permute.xlu0 0
      %4276 = vperm.xlu0 %4275, %v4174
      %v4277 = vpop.permute.xlu0 %4276
      %4280 = vset.pattern.permute.xlu0 0
      %4281 = vperm.xlu0 %4280, %v4175
      %v4282 = vpop.permute.xlu0 %4281
      %4285 = vset.pattern.permute.xlu0 0
      %4286 = vperm.xlu0 %4285, %v4176
      %v4287 = vpop.permute.xlu0 %4286
      %4290 = vset.pattern.permute.xlu0 0
      %4291 = vperm.xlu0 %4290, %v4177
      %v4292 = vpop.permute.xlu0 %4291
      %4295 = vset.pattern.permute.xlu0 0
      %4296 = vperm.xlu0 %4295, %v4178
      %v4297 = vpop.permute.xlu0 %4296
      %4300 = vset.pattern.permute.xlu0 0
      %4301 = vperm.xlu0 %4300, %v4179
      %v4302 = vpop.permute.xlu0 %4301
      %4305 = vset.pattern.permute.xlu0 0
      %4306 = vperm.xlu0 %4305, %v4180
      %v4307 = vpop.permute.xlu0 %4306
      %4310 = vset.pattern.permute.xlu0 0
      %4311 = vperm.xlu0 %4310, %v4181
      %v4312 = vpop.permute.xlu0 %4311
      %4315 = vset.pattern.permute.xlu0 0
      %4316 = vperm.xlu0 %4315, %v4182
      %v4317 = vpop.permute.xlu0 %4316
      %4320 = vset.pattern.permute.xlu0 0
      %4321 = vperm.xlu0 %4320, %v4183
      %v4322 = vpop.permute.xlu0 %4321
      %4325 = vset.pattern.permute.xlu0 0
      %4326 = vperm.xlu0 %4325, %v4184
      %v4327 = vpop.permute.xlu0 %4326
      %4330 = vset.pattern.permute.xlu0 0
      %4331 = vperm.xlu0 %4330, %v4185
      %v4332 = vpop.permute.xlu0 %4331
      %4335 = vset.pattern.permute.xlu0 0
      %4336 = vperm.xlu0 %4335, %v4186
      %v4337 = vpop.permute.xlu0 %4336
      %4340 = vset.pattern.permute.xlu0 0
      %4341 = vperm.xlu0 %4340, %v4187
      %v4342 = vpop.permute.xlu0 %4341
      %4345 = vset.pattern.permute.xlu0 0
      %4346 = vperm.xlu0 %4345, %v4188
      %v4347 = vpop.permute.xlu0 %4346
      %v4381 = vunpack.c.l.b16 %v4109
      %v4382 = vunpack.c.h.b16 %v4109
      %v4383 = vunpack.c.l.b16 %v4110
      %v4384 = vunpack.c.h.b16 %v4110
      %v4385 = vunpack.c.l.b16 %v4111
      %v4386 = vunpack.c.h.b16 %v4111
      %v4387 = vunpack.c.l.b16 %v4112
      %v4388 = vunpack.c.h.b16 %v4112
      %v4389 = vunpack.c.l.b16 %v4113
      %v4390 = vunpack.c.h.b16 %v4113
      %v4391 = vunpack.c.l.b16 %v4114
      %v4392 = vunpack.c.h.b16 %v4114
      %v4393 = vunpack.c.l.b16 %v4115
      %v4394 = vunpack.c.h.b16 %v4115
      %v4395 = vunpack.c.l.b16 %v4116
      %v4396 = vunpack.c.h.b16 %v4116
      %v4397 = vunpack.c.l.b16 %v4117
      %v4398 = vunpack.c.h.b16 %v4117
      %v4399 = vunpack.c.l.b16 %v4118
      %v4400 = vunpack.c.h.b16 %v4118
      %v4401 = vunpack.c.l.b16 %v4119
      %v4402 = vunpack.c.h.b16 %v4119
      %v4403 = vunpack.c.l.b16 %v4120
      %v4404 = vunpack.c.h.b16 %v4120
      %v4405 = vunpack.c.l.b16 %v4121
      %v4406 = vunpack.c.h.b16 %v4121
      %v4407 = vunpack.c.l.b16 %v4122
      %v4408 = vunpack.c.h.b16 %v4122
      %v4409 = vunpack.c.l.b16 %v4123
      %v4410 = vunpack.c.h.b16 %v4123
      %v4411 = vunpack.c.l.b16 %v4124
      %v4412 = vunpack.c.h.b16 %v4124
      %v4413 = vunpack.c.l.b16 %v4125
      %v4414 = vunpack.c.h.b16 %v4125
      %v4415 = vunpack.c.l.b16 %v4126
      %v4416 = vunpack.c.h.b16 %v4126
      %v4417 = vunpack.c.l.b16 %v4127
      %v4418 = vunpack.c.h.b16 %v4127
      %v4419 = vunpack.c.l.b16 %v4128
      %v4420 = vunpack.c.h.b16 %v4128
      %v4421 = vunpack.c.l.b16 %v4129
      %v4422 = vunpack.c.h.b16 %v4129
      %v4423 = vunpack.c.l.b16 %v4130
      %v4424 = vunpack.c.h.b16 %v4130
      %v4425 = vunpack.c.l.b16 %v4131
      %v4426 = vunpack.c.h.b16 %v4131
      %v4427 = vunpack.c.l.b16 %v4132
      %v4428 = vunpack.c.h.b16 %v4132
      %v4429 = vunpack.c.l.b16 %v4133
      %v4430 = vunpack.c.h.b16 %v4133
      %v4431 = vunpack.c.l.b16 %v4134
      %v4432 = vunpack.c.h.b16 %v4134
      %v4433 = vunpack.c.l.b16 %v4135
      %v4434 = vunpack.c.h.b16 %v4135
      %v4435 = vunpack.c.l.b16 %v4136
      %v4436 = vunpack.c.h.b16 %v4136
      %v4437 = vunpack.c.l.b16 %v4137
      %v4438 = vunpack.c.h.b16 %v4137
      %v4439 = vunpack.c.l.b16 %v4138
      %v4440 = vunpack.c.h.b16 %v4138
      %v4441 = vunpack.c.l.b16 %v4139
      %v4442 = vunpack.c.h.b16 %v4139
      %v4443 = vunpack.c.l.b16 %v4140
      %v4444 = vunpack.c.h.b16 %v4140
      %v4445 = vpack.c.b16 %v4383, %v4381
      %v4446 = vpack.c.b16 %v4384, %v4382
      %v4447 = vpack.c.b16 %v4387, %v4385
      %v4448 = vpack.c.b16 %v4388, %v4386
      %v4449 = vpack.c.b16 %v4391, %v4389
      %v4450 = vpack.c.b16 %v4392, %v4390
      %v4451 = vpack.c.b16 %v4395, %v4393
      %v4452 = vpack.c.b16 %v4396, %v4394
      %v4453 = vpack.c.b16 %v4399, %v4397
      %v4454 = vpack.c.b16 %v4400, %v4398
      %v4455 = vpack.c.b16 %v4403, %v4401
      %v4456 = vpack.c.b16 %v4404, %v4402
      %v4457 = vpack.c.b16 %v4407, %v4405
      %v4458 = vpack.c.b16 %v4408, %v4406
      %v4459 = vpack.c.b16 %v4411, %v4409
      %v4460 = vpack.c.b16 %v4412, %v4410
      %v4461 = vpack.c.b16 %v4415, %v4413
      %v4462 = vpack.c.b16 %v4416, %v4414
      %v4463 = vpack.c.b16 %v4419, %v4417
      %v4464 = vpack.c.b16 %v4420, %v4418
      %v4465 = vpack.c.b16 %v4423, %v4421
      %v4466 = vpack.c.b16 %v4424, %v4422
      %v4467 = vpack.c.b16 %v4427, %v4425
      %v4468 = vpack.c.b16 %v4428, %v4426
      %v4469 = vpack.c.b16 %v4431, %v4429
      %v4470 = vpack.c.b16 %v4432, %v4430
      %v4471 = vpack.c.b16 %v4435, %v4433
      %v4472 = vpack.c.b16 %v4436, %v4434
      %v4473 = vpack.c.b16 %v4439, %v4437
      %v4474 = vpack.c.b16 %v4440, %v4438
      %v4475 = vpack.c.b16 %v4443, %v4441
      %v4476 = vpack.c.b16 %v4444, %v4442
      %4509 = vmatprep.subr.bf16.mxu0 0
      %4510 = vmatpush1.bf16.msra.mxu0 %v4141
      %4511 = vmatprep.subr.bf16.mxu0 0
      %4512 = vmatpush1.bf16.msra.mxu0 %v4142
      %4513 = vmatprep.subr.bf16.mxu0 0
      %4514 = vmatpush1.bf16.msra.mxu0 %v4143
      %4515 = vmatprep.subr.bf16.mxu0 0
      %4516 = vmatpush1.bf16.msra.mxu0 %v4144
      %4517 = vmatprep.subr.bf16.mxu0 0
      %4518 = vmatpush1.bf16.msra.mxu0 %v4145
      %4519 = vmatprep.subr.bf16.mxu0 0
      %4520 = vmatpush1.bf16.msra.mxu0 %v4146
      %4521 = vmatprep.subr.bf16.mxu0 0
      %4522 = vmatpush1.bf16.msra.mxu0 %v4147
      %4523 = vmatprep.subr.bf16.mxu0 0
      %4524 = vmatpush1.bf16.msra.mxu0 %v4148
      %4525 = vmatprep.subr.bf16.mxu0 0
      %4526 = vmatpush1.bf16.msra.mxu0 %v4149
      %4527 = vmatprep.subr.bf16.mxu0 0
      %4528 = vmatpush1.bf16.msra.mxu0 %v4150
      %4529 = vmatprep.subr.bf16.mxu0 0
      %4530 = vmatpush1.bf16.msra.mxu0 %v4151
      %4531 = vmatprep.subr.bf16.mxu0 0
      %4532 = vmatpush1.bf16.msra.mxu0 %v4152
      %4533 = vmatprep.subr.bf16.mxu0 0
      %4534 = vmatpush1.bf16.msra.mxu0 %v4153
      %4535 = vmatprep.subr.bf16.mxu0 0
      %4536 = vmatpush1.bf16.msra.mxu0 %v4154
      %4537 = vmatprep.subr.bf16.mxu0 0
      %4538 = vmatpush1.bf16.msra.mxu0 %v4155
      %4539 = vmatprep.subr.bf16.mxu0 0
      %4540 = vmatpush1.bf16.msra.mxu0 %v4156
      %4541 = vmatprep.mubr.bf16.mxu0 %v4446
      %4542 = vmatmul.mubr.bf16.gmra.mrb[0].mxu0 %v4445
      %v4543 = vpop.f32.mrb[0].mxu0
      %v4544 = vadd.f32 %v4192, %v4543
      %v4545 = vpop.f32.mrb[0].mxu0
      %v4546 = vpop.f32.mrb[0].mxu0
      %v4547 = vadd.f32 %v4197, %v4546
      %v4548 = vpop.f32.mrb[0].mxu0
      %4549 = vmatprep.mubr.bf16.mxu0 %v4448
      %4550 = vmatmul.mubr.bf16.gmra.mrb[0].mxu0 %v4447
      %v4551 = vpop.f32.mrb[0].mxu0
      %v4552 = vadd.f32 %v4202, %v4551
      %v4553 = vpop.f32.mrb[0].mxu0
      %v4554 = vpop.f32.mrb[0].mxu0
      %v4555 = vadd.f32 %v4207, %v4554
      %v4556 = vpop.f32.mrb[0].mxu0
      %4557 = vmatprep.mubr.bf16.mxu0 %v4450
      %4558 = vmatmul.mubr.bf16.gmra.mrb[0].mxu0 %v4449
      %v4559 = vpop.f32.mrb[0].mxu0
      %v4560 = vadd.f32 %v4212, %v4559
      %v4561 = vpop.f32.mrb[0].mxu0
      %v4562 = vpop.f32.mrb[0].mxu0
      %v4563 = vadd.f32 %v4217, %v4562
      %v4564 = vpop.f32.mrb[0].mxu0
      %4565 = vmatprep.mubr.bf16.mxu0 %v4452
      %4566 = vmatmul.mubr.bf16.gmra.mrb[0].mxu0 %v4451
      %v4567 = vpop.f32.mrb[0].mxu0
      %v4568 = vadd.f32 %v4222, %v4567
      %v4569 = vpop.f32.mrb[0].mxu0
      %v4570 = vpop.f32.mrb[0].mxu0
      %v4571 = vadd.f32 %v4227, %v4570
      %v4572 = vpop.f32.mrb[0].mxu0
      %4573 = vmatprep.mubr.bf16.mxu0 %v4454
      %4574 = vmatmul.mubr.bf16.gmra.mrb[0].mxu0 %v4453
      %v4575 = vpop.f32.mrb[0].mxu0
      %v4576 = vadd.f32 %v4232, %v4575
      %v4577 = vpop.f32.mrb[0].mxu0
      %v4578 = vpop.f32.mrb[0].mxu0
      %v4579 = vadd.f32 %v4237, %v4578
      %v4580 = vpop.f32.mrb[0].mxu0
      %4581 = vmatprep.mubr.bf16.mxu0 %v4456
      %4582 = vmatmul.mubr.bf16.gmra.mrb[0].mxu0 %v4455
      %v4583 = vpop.f32.mrb[0].mxu0
      %v4584 = vadd.f32 %v4242, %v4583
      %v4585 = vpop.f32.mrb[0].mxu0
      %v4586 = vpop.f32.mrb[0].mxu0
      %v4587 = vadd.f32 %v4247, %v4586
      %v4588 = vpop.f32.mrb[0].mxu0
      %4589 = vmatprep.mubr.bf16.mxu0 %v4458
      %4590 = vmatmul.mubr.bf16.gmra.mrb[0].mxu0 %v4457
      %v4591 = vpop.f32.mrb[0].mxu0
      %v4592 = vadd.f32 %v4252, %v4591
      %v4593 = vpop.f32.mrb[0].mxu0
      %v4594 = vpop.f32.mrb[0].mxu0
      %v4595 = vadd.f32 %v4257, %v4594
      %v4596 = vpop.f32.mrb[0].mxu0
      %4597 = vmatprep.mubr.bf16.mxu0 %v4460
      %4598 = vmatmul.mubr.bf16.gmra.mrb[0].mxu0 %v4459
      %v4599 = vpop.f32.mrb[0].mxu0
      %v4600 = vadd.f32 %v4262, %v4599
      %v4601 = vpop.f32.mrb[0].mxu0
      %v4602 = vpop.f32.mrb[0].mxu0
      %v4603 = vadd.f32 %v4267, %v4602
      %v4604 = vpop.f32.mrb[0].mxu0
      %4605 = vmatprep.mubr.bf16.mxu0 %v4462
      %4606 = vmatmul.mubr.bf16.gmra.mrb[0].mxu0 %v4461
      %v4607 = vpop.f32.mrb[0].mxu0
      %v4608 = vadd.f32 %v4272, %v4607
      %v4609 = vpop.f32.mrb[0].mxu0
      %v4610 = vpop.f32.mrb[0].mxu0
      %v4611 = vadd.f32 %v4277, %v4610
      %v4612 = vpop.f32.mrb[0].mxu0
      %4613 = vmatprep.mubr.bf16.mxu0 %v4464
      %4614 = vmatmul.mubr.bf16.gmra.mrb[0].mxu0 %v4463
      %v4615 = vpop.f32.mrb[0].mxu0
      %v4616 = vadd.f32 %v4282, %v4615
      %v4617 = vpop.f32.mrb[0].mxu0
      %v4618 = vpop.f32.mrb[0].mxu0
      %v4619 = vadd.f32 %v4287, %v4618
      %v4620 = vpop.f32.mrb[0].mxu0
      %4621 = vmatprep.mubr.bf16.mxu0 %v4466
      %4622 = vmatmul.mubr.bf16.gmra.mrb[0].mxu0 %v4465
      %v4623 = vpop.f32.mrb[0].mxu0
      %v4624 = vadd.f32 %v4292, %v4623
      %v4625 = vpop.f32.mrb[0].mxu0
      %v4626 = vpop.f32.mrb[0].mxu0
      %v4627 = vadd.f32 %v4297, %v4626
      %v4628 = vpop.f32.mrb[0].mxu0
      %4629 = vmatprep.mubr.bf16.mxu0 %v4468
      %4630 = vmatmul.mubr.bf16.gmra.mrb[0].mxu0 %v4467
      %v4631 = vpop.f32.mrb[0].mxu0
      %v4632 = vadd.f32 %v4302, %v4631
      %v4633 = vpop.f32.mrb[0].mxu0
      %v4634 = vpop.f32.mrb[0].mxu0
      %v4635 = vadd.f32 %v4307, %v4634
      %v4636 = vpop.f32.mrb[0].mxu0
      %4637 = vmatprep.mubr.bf16.mxu0 %v4470
      %4638 = vmatmul.mubr.bf16.gmra.mrb[0].mxu0 %v4469
      %v4639 = vpop.f32.mrb[0].mxu0
      %v4640 = vadd.f32 %v4312, %v4639
      %v4641 = vpop.f32.mrb[0].mxu0
      %v4642 = vpop.f32.mrb[0].mxu0
      %v4643 = vadd.f32 %v4317, %v4642
      %v4644 = vpop.f32.mrb[0].mxu0
      %4645 = vmatprep.mubr.bf16.mxu0 %v4472
      %4646 = vmatmul.mubr.bf16.gmra.mrb[0].mxu0 %v4471
      %v4647 = vpop.f32.mrb[0].mxu0
      %v4648 = vadd.f32 %v4322, %v4647
      %v4649 = vpop.f32.mrb[0].mxu0
      %v4650 = vpop.f32.mrb[0].mxu0
      %v4651 = vadd.f32 %v4327, %v4650
      %v4652 = vpop.f32.mrb[0].mxu0
      %4653 = vmatprep.mubr.bf16.mxu0 %v4474
      %4654 = vmatmul.mubr.bf16.gmra.mrb[0].mxu0 %v4473
      %v4655 = vpop.f32.mrb[0].mxu0
      %v4656 = vadd.f32 %v4332, %v4655
      %v4657 = vpop.f32.mrb[0].mxu0
      %v4658 = vpop.f32.mrb[0].mxu0
      %v4659 = vadd.f32 %v4337, %v4658
      %v4660 = vpop.f32.mrb[0].mxu0
      %4661 = vmatprep.mubr.bf16.mxu0 %v4476
      %4662 = vmatmul.mubr.bf16.gmra.mrb[0].mxu0 %v4475
      %v4663 = vpop.f32.mrb[0].mxu0
      %v4664 = vadd.f32 %v4342, %v4663
      %v4665 = vpop.f32.mrb[0].mxu0
      %v4666 = vpop.f32.mrb[0].mxu0
      %v4667 = vadd.f32 %v4347, %v4666
      %v4668 = vpop.f32.mrb[0].mxu0
      %4669 = vdwg.mxu0
      %v4670 = vxor.u32 %v4544, 2147483648
      %v4671 = vxor.u32 %v4547, 2147483648
      %v4672 = vxor.u32 %v4552, 2147483648
      %v4673 = vxor.u32 %v4555, 2147483648
      %v4674 = vxor.u32 %v4560, 2147483648
      %v4675 = vxor.u32 %v4563, 2147483648
      %v4676 = vxor.u32 %v4568, 2147483648
      %v4677 = vxor.u32 %v4571, 2147483648
      %v4678 = vxor.u32 %v4576, 2147483648
      %v4679 = vxor.u32 %v4579, 2147483648
      %v4680 = vxor.u32 %v4584, 2147483648
      %v4681 = vxor.u32 %v4587, 2147483648
      %v4682 = vxor.u32 %v4592, 2147483648
      %v4683 = vxor.u32 %v4595, 2147483648
      %v4684 = vxor.u32 %v4600, 2147483648
      %v4685 = vxor.u32 %v4603, 2147483648
      %v4686 = vxor.u32 %v4608, 2147483648
      %v4687 = vxor.u32 %v4611, 2147483648
      %v4688 = vxor.u32 %v4616, 2147483648
      %v4689 = vxor.u32 %v4619, 2147483648
      %v4690 = vxor.u32 %v4624, 2147483648
      %v4691 = vxor.u32 %v4627, 2147483648
      %v4692 = vxor.u32 %v4632, 2147483648
      %v4693 = vxor.u32 %v4635, 2147483648
      %v4694 = vxor.u32 %v4640, 2147483648
      %v4695 = vxor.u32 %v4643, 2147483648
      %v4696 = vxor.u32 %v4648, 2147483648
      %v4697 = vxor.u32 %v4651, 2147483648
      %v4698 = vxor.u32 %v4656, 2147483648
      %v4699 = vxor.u32 %v4659, 2147483648
      %v4700 = vxor.u32 %v4664, 2147483648
      %v4701 = vxor.u32 %v4667, 2147483648
      %v4702 = vmul.f32 %v4670, 1.442695
      %v4703 = vpow.pop %v4702
      %v4704 = vmul.f32 %v4671, 1.442695
      %v4705 = vpow.pop %v4704
      %v4706 = vmul.f32 %v4672, 1.442695
      %v4707 = vpow.pop %v4706
      %v4708 = vmul.f32 %v4673, 1.442695
      %v4709 = vpow.pop %v4708
      %v4710 = vmul.f32 %v4674, 1.442695
      %v4711 = vpow.pop %v4710
      %v4712 = vmul.f32 %v4675, 1.442695
      %v4713 = vpow.pop %v4712
      %v4714 = vmul.f32 %v4676, 1.442695
      %v4715 = vpow.pop %v4714
      %v4716 = vmul.f32 %v4677, 1.442695
      %v4717 = vpow.pop %v4716
      %v4718 = vmul.f32 %v4678, 1.442695
      %v4719 = vpow.pop %v4718
      %v4720 = vmul.f32 %v4679, 1.442695
      %v4721 = vpow.pop %v4720
      %v4722 = vmul.f32 %v4680, 1.442695
      %v4723 = vpow.pop %v4722
      %v4724 = vmul.f32 %v4681, 1.442695
      %v4725 = vpow.pop %v4724
      %v4726 = vmul.f32 %v4682, 1.442695
      %v4727 = vpow.pop %v4726
      %v4728 = vmul.f32 %v4683, 1.442695
      %v4729 = vpow.pop %v4728
      %v4730 = vmul.f32 %v4684, 1.442695
      %v4731 = vpow.pop %v4730
      %v4732 = vmul.f32 %v4685, 1.442695
      %v4733 = vpow.pop %v4732
      %v4734 = vmul.f32 %v4686, 1.442695
      %v4735 = vpow.pop %v4734
      %v4736 = vmul.f32 %v4687, 1.442695
      %v4737 = vpow.pop %v4736
      %v4738 = vmul.f32 %v4688, 1.442695
      %v4739 = vpow.pop %v4738
      %v4740 = vmul.f32 %v4689, 1.442695
      %v4741 = vpow.pop %v4740
      %v4742 = vmul.f32 %v4690, 1.442695
      %v4743 = vpow.pop %v4742
      %v4744 = vmul.f32 %v4691, 1.442695
      %v4745 = vpow.pop %v4744
      %v4746 = vmul.f32 %v4692, 1.442695
      %v4747 = vpow.pop %v4746
      %v4748 = vmul.f32 %v4693, 1.442695
      %v4749 = vpow.pop %v4748
      %v4750 = vmul.f32 %v4694, 1.442695
      %v4751 = vpow.pop %v4750
      %v4752 = vmul.f32 %v4695, 1.442695
      %v4753 = vpow.pop %v4752
      %v4754 = vmul.f32 %v4696, 1.442695
      %v4755 = vpow.pop %v4754
      %v4756 = vmul.f32 %v4697, 1.442695
      %v4757 = vpow.pop %v4756
      %v4758 = vmul.f32 %v4698, 1.442695
      %v4759 = vpow.pop %v4758
      %v4760 = vmul.f32 %v4699, 1.442695
      %v4761 = vpow.pop %v4760
      %v4762 = vmul.f32 %v4700, 1.442695
      %v4763 = vpow.pop %v4762
      %v4764 = vmul.f32 %v4701, 1.442695
      %v4765 = vpow.pop %v4764
      %v4766 = vadd.f32 %v4703, 1.0
      %v4767 = vadd.f32 %v4705, 1.0
      %v4768 = vadd.f32 %v4707, 1.0
      %v4769 = vadd.f32 %v4709, 1.0
      %v4770 = vadd.f32 %v4711, 1.0
      %v4771 = vadd.f32 %v4713, 1.0
      %v4772 = vadd.f32 %v4715, 1.0
      %v4773 = vadd.f32 %v4717, 1.0
      %v4774 = vadd.f32 %v4719, 1.0
      %v4775 = vadd.f32 %v4721, 1.0
      %v4776 = vadd.f32 %v4723, 1.0
      %v4777 = vadd.f32 %v4725, 1.0
      %v4778 = vadd.f32 %v4727, 1.0
      %v4779 = vadd.f32 %v4729, 1.0
      %v4780 = vadd.f32 %v4731, 1.0
      %v4781 = vadd.f32 %v4733, 1.0
      %v4782 = vadd.f32 %v4735, 1.0
      %v4783 = vadd.f32 %v4737, 1.0
      %v4784 = vadd.f32 %v4739, 1.0
      %v4785 = vadd.f32 %v4741, 1.0
      %v4786 = vadd.f32 %v4743, 1.0
      %v4787 = vadd.f32 %v4745, 1.0
      %v4788 = vadd.f32 %v4747, 1.0
      %v4789 = vadd.f32 %v4749, 1.0
      %v4790 = vadd.f32 %v4751, 1.0
      %v4791 = vadd.f32 %v4753, 1.0
      %v4792 = vadd.f32 %v4755, 1.0
      %v4793 = vadd.f32 %v4757, 1.0
      %v4794 = vadd.f32 %v4759, 1.0
      %v4795 = vadd.f32 %v4761, 1.0
      %v4796 = vadd.f32 %v4763, 1.0
      %v4797 = vadd.f32 %v4765, 1.0
      %v4798 = vrcp.pop %v4766
      %v4799 = vmul.f32 1.0, %v4798
      %v4800 = vrcp.pop %v4767
      %v4801 = vmul.f32 1.0, %v4800
      %v4802 = vrcp.pop %v4768
      %v4803 = vmul.f32 1.0, %v4802
      %v4804 = vrcp.pop %v4769
      %v4805 = vmul.f32 1.0, %v4804
      %v4806 = vrcp.pop %v4770
      %v4807 = vmul.f32 1.0, %v4806
      %v4808 = vrcp.pop %v4771
      %v4809 = vmul.f32 1.0, %v4808
      %v4810 = vrcp.pop %v4772
      %v4811 = vmul.f32 1.0, %v4810
      %v4812 = vrcp.pop %v4773
      %v4813 = vmul.f32 1.0, %v4812
      %v4814 = vrcp.pop %v4774
      %v4815 = vmul.f32 1.0, %v4814
      %v4816 = vrcp.pop %v4775
      %v4817 = vmul.f32 1.0, %v4816
      %v4818 = vrcp.pop %v4776
      %v4819 = vmul.f32 1.0, %v4818
      %v4820 = vrcp.pop %v4777
      %v4821 = vmul.f32 1.0, %v4820
      %v4822 = vrcp.pop %v4778
      %v4823 = vmul.f32 1.0, %v4822
      %v4824 = vrcp.pop %v4779
      %v4825 = vmul.f32 1.0, %v4824
      %v4826 = vrcp.pop %v4780
      %v4827 = vmul.f32 1.0, %v4826
      %v4828 = vrcp.pop %v4781
      %v4829 = vmul.f32 1.0, %v4828
      %v4830 = vrcp.pop %v4782
      %v4831 = vmul.f32 1.0, %v4830
      %v4832 = vrcp.pop %v4783
      %v4833 = vmul.f32 1.0, %v4832
      %v4834 = vrcp.pop %v4784
      %v4835 = vmul.f32 1.0, %v4834
      %v4836 = vrcp.pop %v4785
      %v4837 = vmul.f32 1.0, %v4836
      %v4838 = vrcp.pop %v4786
      %v4839 = vmul.f32 1.0, %v4838
      %v4840 = vrcp.pop %v4787
      %v4841 = vmul.f32 1.0, %v4840
      %v4842 = vrcp.pop %v4788
      %v4843 = vmul.f32 1.0, %v4842
      %v4844 = vrcp.pop %v4789
      %v4845 = vmul.f32 1.0, %v4844
      %v4846 = vrcp.pop %v4790
      %v4847 = vmul.f32 1.0, %v4846
      %v4848 = vrcp.pop %v4791
      %v4849 = vmul.f32 1.0, %v4848
      %v4850 = vrcp.pop %v4792
      %v4851 = vmul.f32 1.0, %v4850
      %v4852 = vrcp.pop %v4793
      %v4853 = vmul.f32 1.0, %v4852
      %v4854 = vrcp.pop %v4794
      %v4855 = vmul.f32 1.0, %v4854
      %v4856 = vrcp.pop %v4795
      %v4857 = vmul.f32 1.0, %v4856
      %v4858 = vrcp.pop %v4796
      %v4859 = vmul.f32 1.0, %v4858
      %v4860 = vrcp.pop %v4797
      %v4861 = vmul.f32 1.0, %v4860
      %v4862 = vmul.f32 %v4077, %v4799
      %v4863 = vmul.f32 %v4078, %v4801
      %v4864 = vmul.f32 %v4079, %v4803
      %v4865 = vmul.f32 %v4080, %v4805
      %v4866 = vmul.f32 %v4081, %v4807
      %v4867 = vmul.f32 %v4082, %v4809
      %v4868 = vmul.f32 %v4083, %v4811
      %v4869 = vmul.f32 %v4084, %v4813
      %v4870 = vmul.f32 %v4085, %v4815
      %v4871 = vmul.f32 %v4086, %v4817
      %v4872 = vmul.f32 %v4087, %v4819
      %v4873 = vmul.f32 %v4088, %v4821
      %v4874 = vmul.f32 %v4089, %v4823
      %v4875 = vmul.f32 %v4090, %v4825
      %v4876 = vmul.f32 %v4091, %v4827
      %v4877 = vmul.f32 %v4092, %v4829
      %v4878 = vmul.f32 %v4093, %v4831
      %v4879 = vmul.f32 %v4094, %v4833
      %v4880 = vmul.f32 %v4095, %v4835
      %v4881 = vmul.f32 %v4096, %v4837
      %v4882 = vmul.f32 %v4097, %v4839
      %v4883 = vmul.f32 %v4098, %v4841
      %v4884 = vmul.f32 %v4099, %v4843
      %v4885 = vmul.f32 %v4100, %v4845
      %v4886 = vmul.f32 %v4101, %v4847
      %v4887 = vmul.f32 %v4102, %v4849
      %v4888 = vmul.f32 %v4103, %v4851
      %v4889 = vmul.f32 %v4104, %v4853
      %v4890 = vmul.f32 %v4105, %v4855
      %v4891 = vmul.f32 %v4106, %v4857
      %v4892 = vmul.f32 %v4107, %v4859
      %v4893 = vmul.f32 %v4108, %v4861
      %v4894 = vld [vmem:[%s11] sm:$0xff]
      %v4895 = vld [vmem:[%s11 + $0x8] sm:$0xff]
      %v4896 = vld [vmem:[%s11 + $0x10] sm:$0xff]
      %v4897 = vld [vmem:[%s11 + $0x18] sm:$0xff]
      %v4898 = vld [vmem:[%s11 + $0x20] sm:$0xff]
      %v4899 = vld [vmem:[%s11 + $0x28] sm:$0xff]
      %v4900 = vld [vmem:[%s11 + $0x30] sm:$0xff]
      %v4901 = vld [vmem:[%s11 + $0x38] sm:$0xff]
      %v4902 = vld [vmem:[%s11 + $0x40] sm:$0xff]
      %v4903 = vld [vmem:[%s11 + $0x48] sm:$0xff]
      %v4904 = vld [vmem:[%s11 + $0x50] sm:$0xff]
      %v4905 = vld [vmem:[%s11 + $0x58] sm:$0xff]
      %v4906 = vld [vmem:[%s11 + $0x60] sm:$0xff]
      %v4907 = vld [vmem:[%s11 + $0x68] sm:$0xff]
      %v4908 = vld [vmem:[%s11 + $0x70] sm:$0xff]
      %v4909 = vld [vmem:[%s11 + $0x78] sm:$0xff]
      %v4910 = vld [vmem:[%s11 + $0x80] sm:$0xff]
      %v4911 = vld [vmem:[%s11 + $0x88] sm:$0xff]
      %v4912 = vld [vmem:[%s11 + $0x90] sm:$0xff]
      %v4913 = vld [vmem:[%s11 + $0x98] sm:$0xff]
      %v4914 = vld [vmem:[%s11 + $0xa0] sm:$0xff]
      %v4915 = vld [vmem:[%s11 + $0xa8] sm:$0xff]
      %v4916 = vld [vmem:[%s11 + $0xb0] sm:$0xff]
      %v4917 = vld [vmem:[%s11 + $0xb8] sm:$0xff]
      %v4918 = vld [vmem:[%s11 + $0xc0] sm:$0xff]
      %v4919 = vld [vmem:[%s11 + $0xc8] sm:$0xff]
      %v4920 = vld [vmem:[%s11 + $0xd0] sm:$0xff]
      %v4921 = vld [vmem:[%s11 + $0xd8] sm:$0xff]
      %v4922 = vld [vmem:[%s11 + $0xe0] sm:$0xff]
      %v4923 = vld [vmem:[%s11 + $0xe8] sm:$0xff]
      %v4924 = vld [vmem:[%s11 + $0xf0] sm:$0xff]
      %v4925 = vld [vmem:[%s11 + $0xf8] sm:$0xff]
      %v4926 = vmul.f32 %v4862, %v4894
      %v4927 = vmul.f32 %v4863, %v4895
      %v4928 = vmul.f32 %v4864, %v4896
      %v4929 = vmul.f32 %v4865, %v4897
      %v4930 = vmul.f32 %v4866, %v4898
      %v4931 = vmul.f32 %v4867, %v4899
      %v4932 = vmul.f32 %v4868, %v4900
      %v4933 = vmul.f32 %v4869, %v4901
      %v4934 = vmul.f32 %v4870, %v4902
      %v4935 = vmul.f32 %v4871, %v4903
      %v4936 = vmul.f32 %v4872, %v4904
      %v4937 = vmul.f32 %v4873, %v4905
      %v4938 = vmul.f32 %v4874, %v4906
      %v4939 = vmul.f32 %v4875, %v4907
      %v4940 = vmul.f32 %v4876, %v4908
      %v4941 = vmul.f32 %v4877, %v4909
      %v4942 = vmul.f32 %v4878, %v4910
      %v4943 = vmul.f32 %v4879, %v4911
      %v4944 = vmul.f32 %v4880, %v4912
      %v4945 = vmul.f32 %v4881, %v4913
      %v4946 = vmul.f32 %v4882, %v4914
      %v4947 = vmul.f32 %v4883, %v4915
      %v4948 = vmul.f32 %v4884, %v4916
      %v4949 = vmul.f32 %v4885, %v4917
      %v4950 = vmul.f32 %v4886, %v4918
      %v4951 = vmul.f32 %v4887, %v4919
      %v4952 = vmul.f32 %v4888, %v4920
      %v4953 = vmul.f32 %v4889, %v4921
      %v4954 = vmul.f32 %v4890, %v4922
      %v4955 = vmul.f32 %v4891, %v4923
      %v4956 = vmul.f32 %v4892, %v4924
      %v4957 = vmul.f32 %v4893, %v4925
      %v4958 = vld [vmem:[%s10] sm:$0xff]
      %v4959 = vld [vmem:[%s10 + $0x8] sm:$0xff]
      %v4960 = vld [vmem:[%s10 + $0x10] sm:$0xff]
      %v4961 = vld [vmem:[%s10 + $0x18] sm:$0xff]
      %v4962 = vpack.c.bf16 %v4927, %v4926
      %v4963 = vpack.c.bf16 %v4929, %v4928
      %v4964 = vpack.c.bf16 %v4931, %v4930
      %v4965 = vpack.c.bf16 %v4933, %v4932
      %v4966 = vpack.c.bf16 %v4935, %v4934
      %v4967 = vpack.c.bf16 %v4937, %v4936
      %v4968 = vpack.c.bf16 %v4939, %v4938
      %v4969 = vpack.c.bf16 %v4941, %v4940
      %v4970 = vpack.c.bf16 %v4943, %v4942
      %v4971 = vpack.c.bf16 %v4945, %v4944
      %v4972 = vpack.c.bf16 %v4947, %v4946
      %v4973 = vpack.c.bf16 %v4949, %v4948
      %v4974 = vpack.c.bf16 %v4951, %v4950
      %v4975 = vpack.c.bf16 %v4953, %v4952
      %v4976 = vpack.c.bf16 %v4955, %v4954
      %v4977 = vpack.c.bf16 %v4957, %v4956
      %v4982 = vunpack.c.l.b16 %v4958
      %v4983 = vunpack.c.h.b16 %v4958
      %v4984 = vunpack.c.l.b16 %v4959
      %v4985 = vunpack.c.h.b16 %v4959
      %v4986 = vunpack.c.l.b16 %v4960
      %v4987 = vunpack.c.h.b16 %v4960
      %v4988 = vunpack.c.l.b16 %v4961
      %v4989 = vunpack.c.h.b16 %v4961
      %v4990 = vpack.c.b16 %v4984, %v4982
      %v4991 = vpack.c.b16 %v4985, %v4983
      %v4992 = vpack.c.b16 %v4988, %v4986
      %v4993 = vpack.c.b16 %v4989, %v4987
      %4998 = vmatprep.subr.bf16.mxu0 0
      %4999 = vmatpush1.bf16.msra.mxu0 %v4962
      %5000 = vmatprep.subr.bf16.mxu0 0
      %5001 = vmatpush1.bf16.msra.mxu0 %v4963
      %5002 = vmatprep.subr.bf16.mxu0 0
      %5003 = vmatpush1.bf16.msra.mxu0 %v4964
      %5004 = vmatprep.subr.bf16.mxu0 0
      %5005 = vmatpush1.bf16.msra.mxu0 %v4965
      %5006 = vmatprep.subr.bf16.mxu0 0
      %5007 = vmatpush1.bf16.msra.mxu0 %v4966
      %5008 = vmatprep.subr.bf16.mxu0 0
      %5009 = vmatpush1.bf16.msra.mxu0 %v4967
      %5010 = vmatprep.subr.bf16.mxu0 0
      %5011 = vmatpush1.bf16.msra.mxu0 %v4968
      %5012 = vmatprep.subr.bf16.mxu0 0
      %5013 = vmatpush1.bf16.msra.mxu0 %v4969
      %5014 = vmatprep.subr.bf16.mxu0 0
      %5015 = vmatpush1.bf16.msra.mxu0 %v4970
      %5016 = vmatprep.subr.bf16.mxu0 0
      %5017 = vmatpush1.bf16.msra.mxu0 %v4971
      %5018 = vmatprep.subr.bf16.mxu0 0
      %5019 = vmatpush1.bf16.msra.mxu0 %v4972
      %5020 = vmatprep.subr.bf16.mxu0 0
      %5021 = vmatpush1.bf16.msra.mxu0 %v4973
      %5022 = vmatprep.subr.bf16.mxu0 0
      %5023 = vmatpush1.bf16.msra.mxu0 %v4974
      %5024 = vmatprep.subr.bf16.mxu0 0
      %5025 = vmatpush1.bf16.msra.mxu0 %v4975
      %5026 = vmatprep.subr.bf16.mxu0 0
      %5027 = vmatpush1.bf16.msra.mxu0 %v4976
      %5028 = vmatprep.subr.bf16.mxu0 0
      %5029 = vmatpush1.bf16.msra.mxu0 %v4977
      %5030 = vmatprep.mubr.bf16.mxu0 %v4991
      %5031 = vmatmul.mubr.bf16.gmra.mrb[0].mxu0 %v4990
      %v5032 = vpop.f32.mrb[0].mxu0
      %v5033 = vadd.f32 0.0, %v5032
      %v5034 = vpop.f32.mrb[0].mxu0
      %v5035 = vpop.f32.mrb[0].mxu0
      %v5036 = vadd.f32 0.0, %v5035
      %v5037 = vpop.f32.mrb[0].mxu0
      %5038 = vmatprep.mubr.bf16.mxu0 %v4993
      %5039 = vmatmul.mubr.bf16.gmra.mrb[0].mxu0 %v4992
      %v5040 = vpop.f32.mrb[0].mxu0
      %v5041 = vadd.f32 0.0, %v5040
      %v5042 = vpop.f32.mrb[0].mxu0
      %v5043 = vpop.f32.mrb[0].mxu0
      %v5044 = vadd.f32 0.0, %v5043
      %v5045 = vpop.f32.mrb[0].mxu0
      %5046 = vdwg.mxu0
      %v5047 = vpack.c.bf16 %v5036, %v5033
      %v5048 = vpack.c.bf16 %v5044, %v5041
      %v5049 = vld [vmem:[%s7] sm:$0xf]
      %v5050 = vld [vmem:[%s7 + $0x4] sm:$0xf]
      %v5051 = vld [vmem:[%s7 + $0x8] sm:$0xf]
      %v5052 = vld [vmem:[%s7 + $0xc] sm:$0xf]
      %v5054 = vrot.slane %v537, 2
      %s5055 = vtos %v5054
      %v5056 = vstv %s5055
      %v5062 = vunpack.c.l.b16 %v5049
      %v5063 = vunpack.c.l.b16 %v5050
      %v5064 = vunpack.c.l.b16 %v5051
      %v5065 = vunpack.c.l.b16 %v5052
      %v5066 = vpack.c.b16 %v5063, %v5062
      %v5067 = vpack.c.b16 %v5065, %v5064
      %v5071 = vsel %vm638, %v5047, 0
      %v5074 = vsel %vm638, %v5048, 0
      %5076 = vmatprep.subr.bf16.mxu0 0
      %5077 = vmatpush1.bf16.msra.mxu0 %v5066
      %5078 = vmatprep.subr.bf16.mxu0 0
      %5079 = vmatpush1.bf16.msra.mxu0 %v5067
      %5080 = vmatprep.subr.bf16.mxu0 0
      %5081 = vmatpush1.bf16.msra.mxu0 0
      %5082 = vmatprep.subr.bf16.mxu0 0
      %5083 = vmatpush1.bf16.msra.mxu0 0
      %5084 = vmatprep.subr.bf16.mxu0 0
      %5085 = vmatpush1.bf16.msra.mxu0 0
      %5086 = vmatprep.subr.bf16.mxu0 0
      %5087 = vmatpush1.bf16.msra.mxu0 0
      %5088 = vmatprep.subr.bf16.mxu0 0
      %5089 = vmatpush1.bf16.msra.mxu0 0
      %5090 = vmatprep.subr.bf16.mxu0 0
      %5091 = vmatpush1.bf16.msra.mxu0 0
      %5092 = vmatprep.subr.bf16.mxu0 0
      %5093 = vmatpush1.bf16.msra.mxu0 0
      %5094 = vmatprep.subr.bf16.mxu0 0
      %5095 = vmatpush1.bf16.msra.mxu0 0
      %5096 = vmatprep.subr.bf16.mxu0 0
      %5097 = vmatpush1.bf16.msra.mxu0 0
      %5098 = vmatprep.subr.bf16.mxu0 0
      %5099 = vmatpush1.bf16.msra.mxu0 0
      %5100 = vmatprep.subr.bf16.mxu0 0
      %5101 = vmatpush1.bf16.msra.mxu0 0
      %5102 = vmatprep.subr.bf16.mxu0 0
      %5103 = vmatpush1.bf16.msra.mxu0 0
      %5104 = vmatprep.subr.bf16.mxu0 0
      %5105 = vmatpush1.bf16.msra.mxu0 0
      %5106 = vmatprep.subr.bf16.mxu0 0
      %5107 = vmatpush1.bf16.msra.mxu0 0
      %5108 = vmatprep.mubr.bf16.mxu0 0
      %5109 = vmatmul.mubr.bf16.gmra.mrb[0].mxu0 %v5071
      %v5110 = vpop.f32.mrb[0].mxu0
      %v5111 = vadd.f32 %v5056, %v5110
      %v5112 = vpop.f32.mrb[0].mxu0
      %v5113 = vpop.f32.mrb[0].mxu0
      %v5114 = vadd.f32 %v5056, %v5113
      %v5115 = vpop.f32.mrb[0].mxu0
      %5116 = vmatprep.mubr.bf16.mxu0 0
      %5117 = vmatmul.mubr.bf16.gmra.mrb[0].mxu0 %v5074
      %v5118 = vpop.f32.mrb[0].mxu0
      %v5119 = vadd.f32 %v5056, %v5118
      %v5120 = vpop.f32.mrb[0].mxu0
      %v5121 = vpop.f32.mrb[0].mxu0
      %v5122 = vadd.f32 %v5056, %v5121
      %v5123 = vpop.f32.mrb[0].mxu0
      %5124 = vdwg.mxu0
      %5125 = vst [vmem:[%s469] sm:$0xff] %v5111
      %5126 = vst [vmem:[%s469 + $0x8] sm:$0xff] %v5114
      %5127 = vst [vmem:[%s469 + $0x10] sm:$0xff] %v5119
      %5128 = vst [vmem:[%s469 + $0x18] sm:$0xff] %v5122
      %s5129 = smul.u32 4, %s25
      %p5130 = scmp.lt.s32.totalorder %s5129, 7
      %s5131 = scalar_select %p5130, %s5129, 7
      %s5132 = smul.addr %s5131, 8
      %s5133 = scalar_lea.vmem %s14, %s5132
      // Predicated region
      $region77: #{value_network_forward.1} parent=75 // pred_check
        %p5134 = pneg %p342
      $region78: #{value_network_forward.1} parent=75 // pred_check_branch
        %5136 = sbr.rel (%p5134) target = $region80
      $region79: #{value_network_forward.1} parent=75 // pred_region
        %s5137 = smul.u32 4, %s25
      $region80: #{value_network_forward.1} parent=75 // pred_fallthru
        _
    $region76: #{value_network_forward.1} parent=5 // pred_fallthru
      _
    %p5138 = scmp.le.s32.totalorder 2, %s20
    // Predicated region
    $region81: #{value_network_forward.1} parent=5 // pred_check
      %p5139 = pneg %p5138
    $region82: #{value_network_forward.1} parent=5 // pred_check_branch
      %5141 = sbr.rel (%p5139) target = $region84
    $region83: #{value_network_forward.1} parent=5 // pred_region
      %s5142 = ssub.s32 %s20, 2
      // Predicated region
      $region85: #{value_network_forward.1} parent=83 // pred_check
        %p5143 = pneg %p348
      $region86: #{value_network_forward.1} parent=83 // pred_check_branch
        %5145 = sbr.rel (%p5143) target = $region88
      $region87: #{value_network_forward.1} parent=83 // pred_region
        %s5146 = smul.u32 4, %s26
        %p5147 = scmp.lt.s32.totalorder %s5146, 7
        %s5148 = scalar_select %p5147, %s5146, 7
        %s5149 = smul.addr %s5148, 8
        %s5150 = scalar_lea.vmem %s14, %s5149
      $region88: #{value_network_forward.1} parent=83 // pred_fallthru
        _
    $region84: #{value_network_forward.1} parent=5 // pred_fallthru
      _
  $region6: #{value_network_forward.1} parent=0 // loop_footer
    %s24 = sadd.s32 1, %s20
  $region7: #{value_network_forward.1} parent=0 // loop_footer_branch
    %19 = sbr.rel target = $region3
  $region8: #{value_network_forward.1} parent=0 // loop_exit
    _

</llo_original>
